<compile_context>
chip_gen: v6e
topology: v6e:2x2x1
jax: 0.10.0
libtpu: 0.0.40
codegen_flags: <defaults>
</compile_context>

<pallas_src>
import functools
import math

import jax
import jax.numpy as jnp
from jax.experimental import pallas as pl
from jax.experimental.pallas import tpu as pltpu


# ----------------------------------------------------------------------------
# Fused Pallas kernel: [EncoderModule x M] -> flatten -> Linear(L*E, 1)
# ----------------------------------------------------------------------------
def fused_value_encoder_kernel(
    x_ref,                                   # (N*L, E)   batch-major rows: row = n*L + l
    wqkv_ref, bqkv_ref,                      # (M, E, 3E), (M, 1, 3E)  Q part pre-scaled
    wo_ref, bo_ref,                          # (M, E, E), (M, 1, E)
    lnw_ref, lnb_ref,                        # (M, 1, E)  shared LayerNorm (used twice)
    w1_ref, b1_ref,                          # (M, E, H), (M, 1, H)
    w2_ref, b2_ref,                          # (M, H, E), (M, 1, E)
    wdense_ref,                              # (N*L, E)   permuted value-head weight
    sel_ref,                                 # (N*L, N)   slab-row -> output-row one-hot
    bh_ref,                                  # (1, 1)
    o_ref,                                   # (1, N)     lane-dense output
    ctx_ref,                                 # VMEM scratch (N*L, E): attention contexts
    *, seq_len, batch, num_heads, head_dim, num_modules, eps=1e-5,
):
    L, N = seq_len, batch
    E = num_heads * head_dim

    h = x_ref[...]                                                   # (N*L, E)

    for m in range(num_modules):
        # --- hoist every parameter load out of the unrolled batch/head loops ---
        wqkv = wqkv_ref[m]; bqkv = bqkv_ref[m]
        wo = wo_ref[m]; bo = bo_ref[m]
        lnw = lnw_ref[m]; lnb = lnb_ref[m]
        w1 = w1_ref[m]; b1 = b1_ref[m]
        w2 = w2_ref[m]; b2 = b2_ref[m]

        def layernorm(t, _w=lnw, _b=lnb):
            # independent cross-lane reduces: mean(x) and mean(x*x)
            mu = jnp.mean(t, axis=-1, keepdims=True)
            msq = jnp.mean(t * t, axis=-1, keepdims=True)
            var = jnp.maximum(msq - mu * mu, 0.0)
            return (t - mu) * jax.lax.rsqrt(var + eps) * _w + _b

        # --- fused QKV projection: ONE MXU push over the whole slab ---
        qkv = jnp.dot(h, wqkv, preferred_element_type=jnp.float32) + bqkv   # (N*L, 3E)

        # --- attention per (batch, head); contexts stored straight into scratch ---
        for n in range(N):
            r0 = n * L
            for hh in range(num_heads):
                c0 = hh * head_dim
                qh = qkv[r0:r0 + L, c0:c0 + head_dim]           # already 1/sqrt(Dh)-scaled
                kh = qkv[r0:r0 + L, E + c0:E + c0 + head_dim]
                vh = qkv[r0:r0 + L, 2 * E + c0:2 * E + c0 + head_dim]
                s = jax.lax.dot_general(
                    qh, kh, (((1,), (1,)), ((), ())),
                    preferred_element_type=jnp.float32)          # (L, L) = qh @ kh.T
                s = s - jnp.max(s, axis=-1, keepdims=True)
                p = jnp.exp(s)
                p = p / jnp.sum(p, axis=-1, keepdims=True)       # exact reciprocal
                ctx_ref[pl.ds(r0, L), pl.ds(c0, head_dim)] = jnp.dot(
                    p, vh, preferred_element_type=jnp.float32)   # (L, Dh)

        # --- single out_proj over the whole slab, then residual/LN/FFN/LN ---
        attn = jnp.dot(ctx_ref[...], wo, preferred_element_type=jnp.float32) + bo
        h1 = layernorm(h + attn)
        ff = jnp.maximum(
            jnp.dot(h1, w1, preferred_element_type=jnp.float32) + b1, 0.0)
        ff = jnp.dot(ff, w2, preferred_element_type=jnp.float32) + b2
        h = layernorm(h1 + ff)

    # --- value head: one (N*L, E) VPU multiply + lane reduce, then a tiny
    #     (N*L, N) one-hot fold onto the lane-dense (1, N) output ---
    rv = jnp.sum(h * wdense_ref[...], axis=-1, keepdims=True)           # (N*L, 1)
    o_ref[...] = jnp.sum(rv * sel_ref[...], axis=0, keepdims=True) + bh_ref[...]


# ----------------------------------------------------------------------------
# One-time parameter preparation (NOT in the per-call path)
# ----------------------------------------------------------------------------
def prepare_params(module_params, head_params, num_heads, seq_len, batch):
    """Stack/fuse/permute all weights once. Returns a dict of device arrays."""
    E = module_params[0][0].shape[0]
    Dh = E // num_heads
    scale = jnp.float32(1.0 / math.sqrt(Dh))
    L, N = seq_len, batch

    wqkv, bqkv, wo, bo, lnw, lnb, w1, b1, w2, b2 = ([] for _ in range(10))
    for p in module_params:
        pwq, pwk, pwv, pbq, pbk, pbv, pwo, pbo, plnw, plnb, pw1, pb1, pw2, pb2 = p
        # fuse QKV and fold the 1/sqrt(Dh) scale into the Q part
        wqkv.append(jnp.concatenate([pwq * scale, pwk, pwv], axis=1))   # (E, 3E)
        bqkv.append(jnp.concatenate([pbq * scale, pbk, pbv], axis=1))   # (1, 3E)
        wo.append(pwo); bo.append(pbo)
        lnw.append(plnw); lnb.append(plnb)
        w1.append(pw1); b1.append(pb1); w2.append(pw2); b2.append(pb2)

    # Value head: torch does x(L,N,E).view(-1, L*E) @ w + b.
    # Slab row i = n*L + l holds x[l, n, :]. Its position in torch's row-major
    # (l, n) order is m = l*N + n, so it contributes to output row r = m // L
    # with weight row l' = m % L.  Dense permuted weight + tiny one-hot selector.
    w_t, b_head = head_params                      # (L*E, 1), (1, 1)
    w2d = w_t.reshape(L, E)
    i = jnp.arange(N * L)
    n_of_i = i // L
    l_of_i = i % L
    m_of_i = l_of_i * N + n_of_i
    wdense = w2d[m_of_i % L]                                        # (N*L, E)
    sel = jax.nn.one_hot(m_of_i // L, N, dtype=jnp.float32)         # (N*L, N)

    return dict(
        wqkv=jnp.stack(wqkv), bqkv=jnp.stack(bqkv),
        wo=jnp.stack(wo), bo=jnp.stack(bo),
        lnw=jnp.stack(lnw), lnb=jnp.stack(lnb),
        w1=jnp.stack(w1), b1=jnp.stack(b1),
        w2=jnp.stack(w2), b2=jnp.stack(b2),
        wdense=wdense, sel=sel, bhead=b_head,
    )


# ----------------------------------------------------------------------------
# Per-call wrapper: input layout + single pallas_call
# ----------------------------------------------------------------------------
@functools.partial(jax.jit, static_argnames=("num_heads",))
def value_encoder_forward(x, params, *, num_heads):
    L, N, E = x.shape
    M = params["wqkv"].shape[0]
    head_dim = E // num_heads

    # Batch-major 2-D slab: row n*L + l  <->  original (l, n).
    x_nm = jnp.transpose(x, (1, 0, 2)).reshape(N * L, E)

    kern = functools.partial(
        fused_value_encoder_kernel,
        seq_len=L, batch=N, num_heads=num_heads, head_dim=head_dim,
        num_modules=M)

    vmem = pl.BlockSpec(memory_space=pltpu.MemorySpace.VMEM)
    order = ("wqkv", "bqkv", "wo", "bo", "lnw", "lnb",
             "w1", "b1", "w2", "b2", "wdense", "sel", "bhead")
    args = (x_nm,) + tuple(params[k] for k in order)

    out_1n = pl.pallas_call(
        kern,
        out_shape=jax.ShapeDtypeStruct((1, N), jnp.float32),   # lane-dense
        in_specs=[vmem] * len(args),
        out_specs=vmem,
        scratch_shapes=[pltpu.VMEM((N * L, E), jnp.float32)],  # attention contexts
    )(*args)
    return out_1n.reshape(N, 1)                                # torch output layout


# ----------------------------------------------------------------------------
# Pure-JAX reference (same math, same parameter layout) for validation
# ----------------------------------------------------------------------------
def encoder_module_ref(x, p, num_heads, eps=1e-5):
    wq, wk, wv, bq, bk, bv, wo, bo, lnw, lnb, w1, b1, w2, b2 = p
    L, N, E = x.shape
    Dh = E // num_heads

    def ln(h):
        mu = h.mean(-1, keepdims=True)
        var = ((h - mu) ** 2).mean(-1, keepdims=True)
        return (h - mu) / jnp.sqrt(var + eps) * lnw[0] + lnb[0]

    q = x @ wq + bq[0]
    k = x @ wk + bk[0]
    v = x @ wv + bv[0]
    outs = []
    for n in range(N):
        acc = jnp.zeros((L, E), jnp.float32)
        for h in range(num_heads):
            sl = slice(h * Dh, (h + 1) * Dh)
            s = (q[:, n, sl] / jnp.sqrt(Dh)) @ k[:, n, sl].T
            pr = jax.nn.softmax(s, axis=-1)
            acc = acc + (pr @ v[:, n, sl]) @ wo[sl, :]
        outs.append(acc + bo[0])
    attn = jnp.stack(outs, axis=1)
    h1 = ln(x + attn)
    ff = jnp.maximum(h1 @ w1 + b1[0], 0.0) @ w2 + b2[0]
    return ln(h1 + ff)


def value_encoder_ref(x, module_params, head_params, num_heads):
    L, N, E = x.shape
    h = x
    for p in module_params:
        h = encoder_module_ref(h, p, num_heads)
    x_flat = h.reshape(-1, L * E)          # exact torch view(-1, input_dim*emb_dim)
    w_t, b = head_params
    return x_flat @ w_t + b[0]


# ----------------------------------------------------------------------------
# Deterministic parameter init (shapes from the PyTorch module __init__)
# ----------------------------------------------------------------------------
def _u(key, shape, scale=0.1):
    return jax.random.uniform(key, shape, jnp.float32, minval=-scale, maxval=scale)


def init_params(key, num_modules, L, E, hidden):
    module_params = []
    for _ in range(num_modules):
        key, *ks = jax.random.split(key, 13)
        p = (
            _u(ks[0], (E, E)),                  # wq^T  (in_proj Q, transposed (in, out))
            _u(ks[1], (E, E)),                  # wk^T
            _u(ks[2], (E, E)),                  # wv^T
            _u(ks[3], (1, E)),                  # bq
            _u(ks[4], (1, E)),                  # bk
            _u(ks[5], (1, E)),                  # bv
            _u(ks[6], (E, E)),                  # out_proj.weight^T
            _u(ks[7], (1, E)),                  # out_proj.bias
            jnp.ones((1, E), jnp.float32),      # LayerNorm.weight (torch default)
            jnp.zeros((1, E), jnp.float32),     # LayerNorm.bias
            _u(ks[8], (E, hidden)),             # feed_forward[0].weight^T
            _u(ks[9], (1, hidden)),             # feed_forward[0].bias
            _u(ks[10], (hidden, E)),            # feed_forward[2].weight^T
            _u(ks[11], (1, E)),                 # feed_forward[2].bias
        )
        module_params.append(p)
    key, k1, k2 = jax.random.split(key, 3)
    head_params = (_u(k1, (L * E, 1)), _u(k2, (1, 1)))  # final Linear(L*E, 1)
    return module_params, head_params


# ----------------------------------------------------------------------------
if __name__ == "__main__":
    # obs_dim = (input_dim=8, emb_dim=32), num_modules=2, num_heads=2, hidden=32
    L, N, E = 8, 2, 32          # (seq=input_dim, batch, emb_dim)
    num_modules, num_heads, hidden = 2, 2, 32

    key = jax.random.PRNGKey(0)
    key, xk = jax.random.split(key)
    x = jax.random.normal(xk, (L, N, E), dtype=jnp.float32)

    module_params, head_params = init_params(key, num_modules, L, E, hidden)

    # One-time prep (stacking / QKV fusion / scale folding / head permutation)
    params = prepare_params(module_params, head_params, num_heads, L, N)

    out = value_encoder_forward(x, params, num_heads=num_heads)
    out = jax.block_until_ready(out)

    ref = value_encoder_ref(x, module_params, head_params, num_heads)
    assert out.shape == (N, 1), out.shape
    max_err = float(jnp.max(jnp.abs(out - ref)))
    assert max_err < 1e-3, f"mismatch vs reference: {max_err}"
    print("KERNEL_OK")
</pallas_src>

<mosaic_0001>
module attributes {stable_mosaic.version = 11 : i64} {
  func.func @fused_value_encoder_kernel(%arg0: memref<16x32xf32, #tpu.memory_space<vmem>>, %arg1: memref<2x32x96xf32, #tpu.memory_space<vmem>>, %arg2: memref<2x1x96xf32, #tpu.memory_space<vmem>>, %arg3: memref<2x32x32xf32, #tpu.memory_space<vmem>>, %arg4: memref<2x1x32xf32, #tpu.memory_space<vmem>>, %arg5: memref<2x1x32xf32, #tpu.memory_space<vmem>>, %arg6: memref<2x1x32xf32, #tpu.memory_space<vmem>>, %arg7: memref<2x32x32xf32, #tpu.memory_space<vmem>>, %arg8: memref<2x1x32xf32, #tpu.memory_space<vmem>>, %arg9: memref<2x32x32xf32, #tpu.memory_space<vmem>>, %arg10: memref<2x1x32xf32, #tpu.memory_space<vmem>>, %arg11: memref<16x32xf32, #tpu.memory_space<vmem>>, %arg12: memref<16x2xf32, #tpu.memory_space<vmem>>, %arg13: memref<1x1xf32, #tpu.memory_space<vmem>>, %arg14: memref<1x2xf32, #tpu.memory_space<vmem>>, %arg15: memref<16x32xf32, #tpu.memory_space<vmem>>) attributes {dimension_semantics = [], scalar_prefetch = 0 : i64, scratch_operands = 1 : i64, tpu.core_type = #tpu.core_type<tc>} {
    %c0 = arith.constant 0 : index
    %c0_0 = arith.constant 0 : index
    %0 = vector.load %arg0[%c0, %c0_0] : memref<16x32xf32, #tpu.memory_space<vmem>>, vector<16x32xf32>
    %c0_1 = arith.constant 0 : index
    %c0_2 = arith.constant 0 : index
    %c0_3 = arith.constant 0 : index
    %1 = vector.load %arg1[%c0_1, %c0_2, %c0_3] : memref<2x32x96xf32, #tpu.memory_space<vmem>>, vector<1x32x96xf32>
    %2 = vector.shape_cast %1 : vector<1x32x96xf32> to vector<32x96xf32>
    %c0_4 = arith.constant 0 : index
    %c0_5 = arith.constant 0 : index
    %c0_6 = arith.constant 0 : index
    %3 = vector.load %arg2[%c0_4, %c0_5, %c0_6] : memref<2x1x96xf32, #tpu.memory_space<vmem>>, vector<1x1x96xf32>
    %4 = vector.shape_cast %3 : vector<1x1x96xf32> to vector<1x96xf32>
    %c0_7 = arith.constant 0 : index
    %c0_8 = arith.constant 0 : index
    %c0_9 = arith.constant 0 : index
    %5 = vector.load %arg3[%c0_7, %c0_8, %c0_9] : memref<2x32x32xf32, #tpu.memory_space<vmem>>, vector<1x32x32xf32>
    %6 = vector.shape_cast %5 : vector<1x32x32xf32> to vector<32x32xf32>
    %c0_10 = arith.constant 0 : index
    %c0_11 = arith.constant 0 : index
    %c0_12 = arith.constant 0 : index
    %7 = vector.load %arg4[%c0_10, %c0_11, %c0_12] : memref<2x1x32xf32, #tpu.memory_space<vmem>>, vector<1x1x32xf32>
    %8 = vector.shape_cast %7 : vector<1x1x32xf32> to vector<1x32xf32>
    %c0_13 = arith.constant 0 : index
    %c0_14 = arith.constant 0 : index
    %c0_15 = arith.constant 0 : index
    %9 = vector.load %arg5[%c0_13, %c0_14, %c0_15] : memref<2x1x32xf32, #tpu.memory_space<vmem>>, vector<1x1x32xf32>
    %10 = vector.shape_cast %9 : vector<1x1x32xf32> to vector<1x32xf32>
    %c0_16 = arith.constant 0 : index
    %c0_17 = arith.constant 0 : index
    %c0_18 = arith.constant 0 : index
    %11 = vector.load %arg6[%c0_16, %c0_17, %c0_18] : memref<2x1x32xf32, #tpu.memory_space<vmem>>, vector<1x1x32xf32>
    %12 = vector.shape_cast %11 : vector<1x1x32xf32> to vector<1x32xf32>
    %c0_19 = arith.constant 0 : index
    %c0_20 = arith.constant 0 : index
    %c0_21 = arith.constant 0 : index
    %13 = vector.load %arg7[%c0_19, %c0_20, %c0_21] : memref<2x32x32xf32, #tpu.memory_space<vmem>>, vector<1x32x32xf32>
    %14 = vector.shape_cast %13 : vector<1x32x32xf32> to vector<32x32xf32>
    %c0_22 = arith.constant 0 : index
    %c0_23 = arith.constant 0 : index
    %c0_24 = arith.constant 0 : index
    %15 = vector.load %arg8[%c0_22, %c0_23, %c0_24] : memref<2x1x32xf32, #tpu.memory_space<vmem>>, vector<1x1x32xf32>
    %16 = vector.shape_cast %15 : vector<1x1x32xf32> to vector<1x32xf32>
    %c0_25 = arith.constant 0 : index
    %c0_26 = arith.constant 0 : index
    %c0_27 = arith.constant 0 : index
    %17 = vector.load %arg9[%c0_25, %c0_26, %c0_27] : memref<2x32x32xf32, #tpu.memory_space<vmem>>, vector<1x32x32xf32>
    %18 = vector.shape_cast %17 : vector<1x32x32xf32> to vector<32x32xf32>
    %c0_28 = arith.constant 0 : index
    %c0_29 = arith.constant 0 : index
    %c0_30 = arith.constant 0 : index
    %19 = vector.load %arg10[%c0_28, %c0_29, %c0_30] : memref<2x1x32xf32, #tpu.memory_space<vmem>>, vector<1x1x32xf32>
    %20 = vector.shape_cast %19 : vector<1x1x32xf32> to vector<1x32xf32>
    %cst = arith.constant dense<0.000000e+00> : vector<16x96xf32>
    %21 = tpu.matmul %0, %2, %cst {dimension_numbers = #tpu.dot_dimension_numbers<[1], [0], [0], [1], [0, 0, 1, 1], [], []>} : vector<16x32xf32>, vector<32x96xf32>, vector<16x96xf32> -> vector<16x96xf32>
    %22 = vector.broadcast %4 : vector<1x96xf32> to vector<16x96xf32>
    %23 = arith.addf %21, %22 : vector<16x96xf32>
    %24 = vector.extract_strided_slice %23 {offsets = [0, 0], sizes = [8, 16], strides = [1, 1]} : vector<16x96xf32> to vector<8x16xf32>
    %25 = vector.extract_strided_slice %23 {offsets = [0, 32], sizes = [8, 16], strides = [1, 1]} : vector<16x96xf32> to vector<8x16xf32>
    %26 = vector.extract_strided_slice %23 {offsets = [0, 64], sizes = [8, 16], strides = [1, 1]} : vector<16x96xf32> to vector<8x16xf32>
    %cst_31 = arith.constant dense<0.000000e+00> : vector<8x8xf32>
    %27 = tpu.matmul %24, %25, %cst_31 {dimension_numbers = #tpu.dot_dimension_numbers<[1], [1], [0], [0], [0, 0, 1, 0], [], []>} : vector<8x16xf32>, vector<8x16xf32>, vector<8x8xf32> -> vector<8x8xf32>
    %cst_32 = arith.constant dense<0xFF800000> : vector<8xf32>
    %28 = vector.multi_reduction <maximumf>, %27, %cst_32 [1] : vector<8x8xf32> to vector<8xf32>
    %29 = vector.shape_cast %28 : vector<8xf32> to vector<8x1xf32>
    %30 = vector.broadcast %29 : vector<8x1xf32> to vector<8x8xf32>
    %31 = arith.subf %27, %30 : vector<8x8xf32>
    %32 = math.exp %31 : vector<8x8xf32>
    %cst_33 = arith.constant dense<0.000000e+00> : vector<8xf32>
    %33 = vector.multi_reduction <add>, %32, %cst_33 [1] : vector<8x8xf32> to vector<8xf32>
    %34 = vector.shape_cast %33 : vector<8xf32> to vector<8x1xf32>
    %35 = vector.broadcast %34 : vector<8x1xf32> to vector<8x8xf32>
    %36 = arith.divf %32, %35 : vector<8x8xf32>
    %cst_34 = arith.constant dense<0.000000e+00> : vector<8x16xf32>
    %37 = tpu.matmul %36, %26, %cst_34 {dimension_numbers = #tpu.dot_dimension_numbers<[1], [0], [0], [1], [0, 0, 1, 1], [], []>} : vector<8x8xf32>, vector<8x16xf32>, vector<8x16xf32> -> vector<8x16xf32>
    %c0_35 = arith.constant 0 : index
    %c0_36 = arith.constant 0 : index
    %38 = vector.load %arg15[%c0_35, %c0_36] : memref<16x32xf32, #tpu.memory_space<vmem>>, vector<8x16xf32>
    tpu.vector_store %arg15[%c0_35, %c0_36], %37 {strides = array<i32>} : memref<16x32xf32, #tpu.memory_space<vmem>>, vector<8x16xf32>,
    %39 = vector.extract_strided_slice %23 {offsets = [0, 16], sizes = [8, 16], strides = [1, 1]} : vector<16x96xf32> to vector<8x16xf32>
    %40 = vector.extract_strided_slice %23 {offsets = [0, 48], sizes = [8, 16], strides = [1, 1]} : vector<16x96xf32> to vector<8x16xf32>
    %41 = vector.extract_strided_slice %23 {offsets = [0, 80], sizes = [8, 16], strides = [1, 1]} : vector<16x96xf32> to vector<8x16xf32>
    %cst_37 = arith.constant dense<0.000000e+00> : vector<8x8xf32>
    %42 = tpu.matmul %39, %40, %cst_37 {dimension_numbers = #tpu.dot_dimension_numbers<[1], [1], [0], [0], [0, 0, 1, 0], [], []>} : vector<8x16xf32>, vector<8x16xf32>, vector<8x8xf32> -> vector<8x8xf32>
    %cst_38 = arith.constant dense<0xFF800000> : vector<8xf32>
    %43 = vector.multi_reduction <maximumf>, %42, %cst_38 [1] : vector<8x8xf32> to vector<8xf32>
    %44 = vector.shape_cast %43 : vector<8xf32> to vector<8x1xf32>
    %45 = vector.broadcast %44 : vector<8x1xf32> to vector<8x8xf32>
    %46 = arith.subf %42, %45 : vector<8x8xf32>
    %47 = math.exp %46 : vector<8x8xf32>
    %cst_39 = arith.constant dense<0.000000e+00> : vector<8xf32>
    %48 = vector.multi_reduction <add>, %47, %cst_39 [1] : vector<8x8xf32> to vector<8xf32>
    %49 = vector.shape_cast %48 : vector<8xf32> to vector<8x1xf32>
    %50 = vector.broadcast %49 : vector<8x1xf32> to vector<8x8xf32>
    %51 = arith.divf %47, %50 : vector<8x8xf32>
    %cst_40 = arith.constant dense<0.000000e+00> : vector<8x16xf32>
    %52 = tpu.matmul %51, %41, %cst_40 {dimension_numbers = #tpu.dot_dimension_numbers<[1], [0], [0], [1], [0, 0, 1, 1], [], []>} : vector<8x8xf32>, vector<8x16xf32>, vector<8x16xf32> -> vector<8x16xf32>
    %c0_41 = arith.constant 0 : index
    %c16 = arith.constant 16 : index
    %53 = vector.load %arg15[%c0_41, %c16] : memref<16x32xf32, #tpu.memory_space<vmem>>, vector<8x16xf32>
    tpu.vector_store %arg15[%c0_41, %c16], %52 {strides = array<i32>} : memref<16x32xf32, #tpu.memory_space<vmem>>, vector<8x16xf32>,
    %54 = vector.extract_strided_slice %23 {offsets = [8, 0], sizes = [8, 16], strides = [1, 1]} : vector<16x96xf32> to vector<8x16xf32>
    %55 = vector.extract_strided_slice %23 {offsets = [8, 32], sizes = [8, 16], strides = [1, 1]} : vector<16x96xf32> to vector<8x16xf32>
    %56 = vector.extract_strided_slice %23 {offsets = [8, 64], sizes = [8, 16], strides = [1, 1]} : vector<16x96xf32> to vector<8x16xf32>
    %cst_42 = arith.constant dense<0.000000e+00> : vector<8x8xf32>
    %57 = tpu.matmul %54, %55, %cst_42 {dimension_numbers = #tpu.dot_dimension_numbers<[1], [1], [0], [0], [0, 0, 1, 0], [], []>} : vector<8x16xf32>, vector<8x16xf32>, vector<8x8xf32> -> vector<8x8xf32>
    %cst_43 = arith.constant dense<0xFF800000> : vector<8xf32>
    %58 = vector.multi_reduction <maximumf>, %57, %cst_43 [1] : vector<8x8xf32> to vector<8xf32>
    %59 = vector.shape_cast %58 : vector<8xf32> to vector<8x1xf32>
    %60 = vector.broadcast %59 : vector<8x1xf32> to vector<8x8xf32>
    %61 = arith.subf %57, %60 : vector<8x8xf32>
    %62 = math.exp %61 : vector<8x8xf32>
    %cst_44 = arith.constant dense<0.000000e+00> : vector<8xf32>
    %63 = vector.multi_reduction <add>, %62, %cst_44 [1] : vector<8x8xf32> to vector<8xf32>
    %64 = vector.shape_cast %63 : vector<8xf32> to vector<8x1xf32>
    %65 = vector.broadcast %64 : vector<8x1xf32> to vector<8x8xf32>
    %66 = arith.divf %62, %65 : vector<8x8xf32>
    %cst_45 = arith.constant dense<0.000000e+00> : vector<8x16xf32>
    %67 = tpu.matmul %66, %56, %cst_45 {dimension_numbers = #tpu.dot_dimension_numbers<[1], [0], [0], [1], [0, 0, 1, 1], [], []>} : vector<8x8xf32>, vector<8x16xf32>, vector<8x16xf32> -> vector<8x16xf32>
    %c8 = arith.constant 8 : index
    %c0_46 = arith.constant 0 : index
    %68 = vector.load %arg15[%c8, %c0_46] : memref<16x32xf32, #tpu.memory_space<vmem>>, vector<8x16xf32>
    tpu.vector_store %arg15[%c8, %c0_46], %67 {strides = array<i32>} : memref<16x32xf32, #tpu.memory_space<vmem>>, vector<8x16xf32>,
    %69 = vector.extract_strided_slice %23 {offsets = [8, 16], sizes = [8, 16], strides = [1, 1]} : vector<16x96xf32> to vector<8x16xf32>
    %70 = vector.extract_strided_slice %23 {offsets = [8, 48], sizes = [8, 16], strides = [1, 1]} : vector<16x96xf32> to vector<8x16xf32>
    %71 = vector.extract_strided_slice %23 {offsets = [8, 80], sizes = [8, 16], strides = [1, 1]} : vector<16x96xf32> to vector<8x16xf32>
    %cst_47 = arith.constant dense<0.000000e+00> : vector<8x8xf32>
    %72 = tpu.matmul %69, %70, %cst_47 {dimension_numbers = #tpu.dot_dimension_numbers<[1], [1], [0], [0], [0, 0, 1, 0], [], []>} : vector<8x16xf32>, vector<8x16xf32>, vector<8x8xf32> -> vector<8x8xf32>
    %cst_48 = arith.constant dense<0xFF800000> : vector<8xf32>
    %73 = vector.multi_reduction <maximumf>, %72, %cst_48 [1] : vector<8x8xf32> to vector<8xf32>
    %74 = vector.shape_cast %73 : vector<8xf32> to vector<8x1xf32>
    %75 = vector.broadcast %74 : vector<8x1xf32> to vector<8x8xf32>
    %76 = arith.subf %72, %75 : vector<8x8xf32>
    %77 = math.exp %76 : vector<8x8xf32>
    %cst_49 = arith.constant dense<0.000000e+00> : vector<8xf32>
    %78 = vector.multi_reduction <add>, %77, %cst_49 [1] : vector<8x8xf32> to vector<8xf32>
    %79 = vector.shape_cast %78 : vector<8xf32> to vector<8x1xf32>
    %80 = vector.broadcast %79 : vector<8x1xf32> to vector<8x8xf32>
    %81 = arith.divf %77, %80 : vector<8x8xf32>
    %cst_50 = arith.constant dense<0.000000e+00> : vector<8x16xf32>
    %82 = tpu.matmul %81, %71, %cst_50 {dimension_numbers = #tpu.dot_dimension_numbers<[1], [0], [0], [1], [0, 0, 1, 1], [], []>} : vector<8x8xf32>, vector<8x16xf32>, vector<8x16xf32> -> vector<8x16xf32>
    %c8_51 = arith.constant 8 : index
    %c16_52 = arith.constant 16 : index
    %83 = vector.load %arg15[%c8_51, %c16_52] : memref<16x32xf32, #tpu.memory_space<vmem>>, vector<8x16xf32>
    tpu.vector_store %arg15[%c8_51, %c16_52], %82 {strides = array<i32>} : memref<16x32xf32, #tpu.memory_space<vmem>>, vector<8x16xf32>,
    %c0_53 = arith.constant 0 : index
    %c0_54 = arith.constant 0 : index
    %84 = vector.load %arg15[%c0_53, %c0_54] : memref<16x32xf32, #tpu.memory_space<vmem>>, vector<16x32xf32>
    %cst_55 = arith.constant dense<0.000000e+00> : vector<16x32xf32>
    %85 = tpu.matmul %84, %6, %cst_55 {dimension_numbers = #tpu.dot_dimension_numbers<[1], [0], [0], [1], [0, 0, 1, 1], [], []>} : vector<16x32xf32>, vector<32x32xf32>, vector<16x32xf32> -> vector<16x32xf32>
    %86 = vector.broadcast %8 : vector<1x32xf32> to vector<16x32xf32>
    %87 = arith.addf %85, %86 : vector<16x32xf32>
    %88 = arith.addf %0, %87 : vector<16x32xf32>
    %cst_56 = arith.constant dense<0.000000e+00> : vector<16xf32>
    %89 = vector.multi_reduction <add>, %88, %cst_56 [1] : vector<16x32xf32> to vector<16xf32>
    %90 = vector.shape_cast %89 : vector<16xf32> to vector<16x1xf32>
    %cst_57 = arith.constant 3.200000e+01 : f32
    %91 = vector.broadcast %cst_57 : f32 to vector<16x1xf32>
    %92 = arith.divf %90, %91 : vector<16x1xf32>
    %93 = arith.mulf %88, %88 : vector<16x32xf32>
    %cst_58 = arith.constant dense<0.000000e+00> : vector<16xf32>
    %94 = vector.multi_reduction <add>, %93, %cst_58 [1] : vector<16x32xf32> to vector<16xf32>
    %95 = vector.shape_cast %94 : vector<16xf32> to vector<16x1xf32>
    %cst_59 = arith.constant 3.200000e+01 : f32
    %96 = vector.broadcast %cst_59 : f32 to vector<16x1xf32>
    %97 = arith.divf %95, %96 : vector<16x1xf32>
    %98 = arith.mulf %92, %92 : vector<16x1xf32>
    %99 = arith.subf %97, %98 : vector<16x1xf32>
    %cst_60 = arith.constant 0.000000e+00 : f32
    %100 = vector.broadcast %cst_60 : f32 to vector<16x1xf32>
    %101 = arith.maximumf %99, %100 : vector<16x1xf32>
    %102 = vector.broadcast %92 : vector<16x1xf32> to vector<16x32xf32>
    %103 = arith.subf %88, %102 : vector<16x32xf32>
    %cst_61 = arith.constant 9.99999974E-6 : f32
    %104 = vector.broadcast %cst_61 : f32 to vector<16x1xf32>
    %105 = arith.addf %101, %104 : vector<16x1xf32>
    %106 = math.rsqrt %105 : vector<16x1xf32>
    %107 = vector.broadcast %106 : vector<16x1xf32> to vector<16x32xf32>
    %108 = arith.mulf %103, %107 : vector<16x32xf32>
    %109 = vector.broadcast %10 : vector<1x32xf32> to vector<16x32xf32>
    %110 = arith.mulf %108, %109 : vector<16x32xf32>
    %111 = vector.broadcast %12 : vector<1x32xf32> to vector<16x32xf32>
    %112 = arith.addf %110, %111 : vector<16x32xf32>
    %cst_62 = arith.constant dense<0.000000e+00> : vector<16x32xf32>
    %113 = tpu.matmul %112, %14, %cst_62 {dimension_numbers = #tpu.dot_dimension_numbers<[1], [0], [0], [1], [0, 0, 1, 1], [], []>} : vector<16x32xf32>, vector<32x32xf32>, vector<16x32xf32> -> vector<16x32xf32>
    %114 = vector.broadcast %16 : vector<1x32xf32> to vector<16x32xf32>
    %115 = arith.addf %113, %114 : vector<16x32xf32>
    %cst_63 = arith.constant 0.000000e+00 : f32
    %116 = vector.broadcast %cst_63 : f32 to vector<16x32xf32>
    %117 = arith.maximumf %115, %116 : vector<16x32xf32>
    %cst_64 = arith.constant dense<0.000000e+00> : vector<16x32xf32>
    %118 = tpu.matmul %117, %18, %cst_64 {dimension_numbers = #tpu.dot_dimension_numbers<[1], [0], [0], [1], [0, 0, 1, 1], [], []>} : vector<16x32xf32>, vector<32x32xf32>, vector<16x32xf32> -> vector<16x32xf32>
    %119 = vector.broadcast %20 : vector<1x32xf32> to vector<16x32xf32>
    %120 = arith.addf %118, %119 : vector<16x32xf32>
    %121 = arith.addf %112, %120 : vector<16x32xf32>
    %cst_65 = arith.constant dense<0.000000e+00> : vector<16xf32>
    %122 = vector.multi_reduction <add>, %121, %cst_65 [1] : vector<16x32xf32> to vector<16xf32>
    %123 = vector.shape_cast %122 : vector<16xf32> to vector<16x1xf32>
    %cst_66 = arith.constant 3.200000e+01 : f32
    %124 = vector.broadcast %cst_66 : f32 to vector<16x1xf32>
    %125 = arith.divf %123, %124 : vector<16x1xf32>
    %126 = arith.mulf %121, %121 : vector<16x32xf32>
    %cst_67 = arith.constant dense<0.000000e+00> : vector<16xf32>
    %127 = vector.multi_reduction <add>, %126, %cst_67 [1] : vector<16x32xf32> to vector<16xf32>
    %128 = vector.shape_cast %127 : vector<16xf32> to vector<16x1xf32>
    %cst_68 = arith.constant 3.200000e+01 : f32
    %129 = vector.broadcast %cst_68 : f32 to vector<16x1xf32>
    %130 = arith.divf %128, %129 : vector<16x1xf32>
    %131 = arith.mulf %125, %125 : vector<16x1xf32>
    %132 = arith.subf %130, %131 : vector<16x1xf32>
    %cst_69 = arith.constant 0.000000e+00 : f32
    %133 = vector.broadcast %cst_69 : f32 to vector<16x1xf32>
    %134 = arith.maximumf %132, %133 : vector<16x1xf32>
    %135 = vector.broadcast %125 : vector<16x1xf32> to vector<16x32xf32>
    %136 = arith.subf %121, %135 : vector<16x32xf32>
    %cst_70 = arith.constant 9.99999974E-6 : f32
    %137 = vector.broadcast %cst_70 : f32 to vector<16x1xf32>
    %138 = arith.addf %134, %137 : vector<16x1xf32>
    %139 = math.rsqrt %138 : vector<16x1xf32>
    %140 = vector.broadcast %139 : vector<16x1xf32> to vector<16x32xf32>
    %141 = arith.mulf %136, %140 : vector<16x32xf32>
    %142 = vector.broadcast %10 : vector<1x32xf32> to vector<16x32xf32>
    %143 = arith.mulf %141, %142 : vector<16x32xf32>
    %144 = vector.broadcast %12 : vector<1x32xf32> to vector<16x32xf32>
    %145 = arith.addf %143, %144 : vector<16x32xf32>
    %c1 = arith.constant 1 : index
    %c0_71 = arith.constant 0 : index
    %c0_72 = arith.constant 0 : index
    %146 = vector.load %arg1[%c1, %c0_71, %c0_72] : memref<2x32x96xf32, #tpu.memory_space<vmem>>, vector<1x32x96xf32>
    %147 = vector.shape_cast %146 : vector<1x32x96xf32> to vector<32x96xf32>
    %c1_73 = arith.constant 1 : index
    %c0_74 = arith.constant 0 : index
    %c0_75 = arith.constant 0 : index
    %148 = vector.load %arg2[%c1_73, %c0_74, %c0_75] : memref<2x1x96xf32, #tpu.memory_space<vmem>>, vector<1x1x96xf32>
    %149 = vector.shape_cast %148 : vector<1x1x96xf32> to vector<1x96xf32>
    %c1_76 = arith.constant 1 : index
    %c0_77 = arith.constant 0 : index
    %c0_78 = arith.constant 0 : index
    %150 = vector.load %arg3[%c1_76, %c0_77, %c0_78] : memref<2x32x32xf32, #tpu.memory_space<vmem>>, vector<1x32x32xf32>
    %151 = vector.shape_cast %150 : vector<1x32x32xf32> to vector<32x32xf32>
    %c1_79 = arith.constant 1 : index
    %c0_80 = arith.constant 0 : index
    %c0_81 = arith.constant 0 : index
    %152 = vector.load %arg4[%c1_79, %c0_80, %c0_81] : memref<2x1x32xf32, #tpu.memory_space<vmem>>, vector<1x1x32xf32>
    %153 = vector.shape_cast %152 : vector<1x1x32xf32> to vector<1x32xf32>
    %c1_82 = arith.constant 1 : index
    %c0_83 = arith.constant 0 : index
    %c0_84 = arith.constant 0 : index
    %154 = vector.load %arg5[%c1_82, %c0_83, %c0_84] : memref<2x1x32xf32, #tpu.memory_space<vmem>>, vector<1x1x32xf32>
    %155 = vector.shape_cast %154 : vector<1x1x32xf32> to vector<1x32xf32>
    %c1_85 = arith.constant 1 : index
    %c0_86 = arith.constant 0 : index
    %c0_87 = arith.constant 0 : index
    %156 = vector.load %arg6[%c1_85, %c0_86, %c0_87] : memref<2x1x32xf32, #tpu.memory_space<vmem>>, vector<1x1x32xf32>
    %157 = vector.shape_cast %156 : vector<1x1x32xf32> to vector<1x32xf32>
    %c1_88 = arith.constant 1 : index
    %c0_89 = arith.constant 0 : index
    %c0_90 = arith.constant 0 : index
    %158 = vector.load %arg7[%c1_88, %c0_89, %c0_90] : memref<2x32x32xf32, #tpu.memory_space<vmem>>, vector<1x32x32xf32>
    %159 = vector.shape_cast %158 : vector<1x32x32xf32> to vector<32x32xf32>
    %c1_91 = arith.constant 1 : index
    %c0_92 = arith.constant 0 : index
    %c0_93 = arith.constant 0 : index
    %160 = vector.load %arg8[%c1_91, %c0_92, %c0_93] : memref<2x1x32xf32, #tpu.memory_space<vmem>>, vector<1x1x32xf32>
    %161 = vector.shape_cast %160 : vector<1x1x32xf32> to vector<1x32xf32>
    %c1_94 = arith.constant 1 : index
    %c0_95 = arith.constant 0 : index
    %c0_96 = arith.constant 0 : index
    %162 = vector.load %arg9[%c1_94, %c0_95, %c0_96] : memref<2x32x32xf32, #tpu.memory_space<vmem>>, vector<1x32x32xf32>
    %163 = vector.shape_cast %162 : vector<1x32x32xf32> to vector<32x32xf32>
    %c1_97 = arith.constant 1 : index
    %c0_98 = arith.constant 0 : index
    %c0_99 = arith.constant 0 : index
    %164 = vector.load %arg10[%c1_97, %c0_98, %c0_99] : memref<2x1x32xf32, #tpu.memory_space<vmem>>, vector<1x1x32xf32>
    %165 = vector.shape_cast %164 : vector<1x1x32xf32> to vector<1x32xf32>
    %cst_100 = arith.constant dense<0.000000e+00> : vector<16x96xf32>
    %166 = tpu.matmul %145, %147, %cst_100 {dimension_numbers = #tpu.dot_dimension_numbers<[1], [0], [0], [1], [0, 0, 1, 1], [], []>} : vector<16x32xf32>, vector<32x96xf32>, vector<16x96xf32> -> vector<16x96xf32>
    %167 = vector.broadcast %149 : vector<1x96xf32> to vector<16x96xf32>
    %168 = arith.addf %166, %167 : vector<16x96xf32>
    %169 = vector.extract_strided_slice %168 {offsets = [0, 0], sizes = [8, 16], strides = [1, 1]} : vector<16x96xf32> to vector<8x16xf32>
    %170 = vector.extract_strided_slice %168 {offsets = [0, 32], sizes = [8, 16], strides = [1, 1]} : vector<16x96xf32> to vector<8x16xf32>
    %171 = vector.extract_strided_slice %168 {offsets = [0, 64], sizes = [8, 16], strides = [1, 1]} : vector<16x96xf32> to vector<8x16xf32>
    %cst_101 = arith.constant dense<0.000000e+00> : vector<8x8xf32>
    %172 = tpu.matmul %169, %170, %cst_101 {dimension_numbers = #tpu.dot_dimension_numbers<[1], [1], [0], [0], [0, 0, 1, 0], [], []>} : vector<8x16xf32>, vector<8x16xf32>, vector<8x8xf32> -> vector<8x8xf32>
    %cst_102 = arith.constant dense<0xFF800000> : vector<8xf32>
    %173 = vector.multi_reduction <maximumf>, %172, %cst_102 [1] : vector<8x8xf32> to vector<8xf32>
    %174 = vector.shape_cast %173 : vector<8xf32> to vector<8x1xf32>
    %175 = vector.broadcast %174 : vector<8x1xf32> to vector<8x8xf32>
    %176 = arith.subf %172, %175 : vector<8x8xf32>
    %177 = math.exp %176 : vector<8x8xf32>
    %cst_103 = arith.constant dense<0.000000e+00> : vector<8xf32>
    %178 = vector.multi_reduction <add>, %177, %cst_103 [1] : vector<8x8xf32> to vector<8xf32>
    %179 = vector.shape_cast %178 : vector<8xf32> to vector<8x1xf32>
    %180 = vector.broadcast %179 : vector<8x1xf32> to vector<8x8xf32>
    %181 = arith.divf %177, %180 : vector<8x8xf32>
    %cst_104 = arith.constant dense<0.000000e+00> : vector<8x16xf32>
    %182 = tpu.matmul %181, %171, %cst_104 {dimension_numbers = #tpu.dot_dimension_numbers<[1], [0], [0], [1], [0, 0, 1, 1], [], []>} : vector<8x8xf32>, vector<8x16xf32>, vector<8x16xf32> -> vector<8x16xf32>
    %c0_105 = arith.constant 0 : index
    %c0_106 = arith.constant 0 : index
    %183 = vector.load %arg15[%c0_105, %c0_106] : memref<16x32xf32, #tpu.memory_space<vmem>>, vector<8x16xf32>
    tpu.vector_store %arg15[%c0_105, %c0_106], %182 {strides = array<i32>} : memref<16x32xf32, #tpu.memory_space<vmem>>, vector<8x16xf32>,
    %184 = vector.extract_strided_slice %168 {offsets = [0, 16], sizes = [8, 16], strides = [1, 1]} : vector<16x96xf32> to vector<8x16xf32>
    %185 = vector.extract_strided_slice %168 {offsets = [0, 48], sizes = [8, 16], strides = [1, 1]} : vector<16x96xf32> to vector<8x16xf32>
    %186 = vector.extract_strided_slice %168 {offsets = [0, 80], sizes = [8, 16], strides = [1, 1]} : vector<16x96xf32> to vector<8x16xf32>
    %cst_107 = arith.constant dense<0.000000e+00> : vector<8x8xf32>
    %187 = tpu.matmul %184, %185, %cst_107 {dimension_numbers = #tpu.dot_dimension_numbers<[1], [1], [0], [0], [0, 0, 1, 0], [], []>} : vector<8x16xf32>, vector<8x16xf32>, vector<8x8xf32> -> vector<8x8xf32>
    %cst_108 = arith.constant dense<0xFF800000> : vector<8xf32>
    %188 = vector.multi_reduction <maximumf>, %187, %cst_108 [1] : vector<8x8xf32> to vector<8xf32>
    %189 = vector.shape_cast %188 : vector<8xf32> to vector<8x1xf32>
    %190 = vector.broadcast %189 : vector<8x1xf32> to vector<8x8xf32>
    %191 = arith.subf %187, %190 : vector<8x8xf32>
    %192 = math.exp %191 : vector<8x8xf32>
    %cst_109 = arith.constant dense<0.000000e+00> : vector<8xf32>
    %193 = vector.multi_reduction <add>, %192, %cst_109 [1] : vector<8x8xf32> to vector<8xf32>
    %194 = vector.shape_cast %193 : vector<8xf32> to vector<8x1xf32>
    %195 = vector.broadcast %194 : vector<8x1xf32> to vector<8x8xf32>
    %196 = arith.divf %192, %195 : vector<8x8xf32>
    %cst_110 = arith.constant dense<0.000000e+00> : vector<8x16xf32>
    %197 = tpu.matmul %196, %186, %cst_110 {dimension_numbers = #tpu.dot_dimension_numbers<[1], [0], [0], [1], [0, 0, 1, 1], [], []>} : vector<8x8xf32>, vector<8x16xf32>, vector<8x16xf32> -> vector<8x16xf32>
    %c0_111 = arith.constant 0 : index
    %c16_112 = arith.constant 16 : index
    %198 = vector.load %arg15[%c0_111, %c16_112] : memref<16x32xf32, #tpu.memory_space<vmem>>, vector<8x16xf32>
    tpu.vector_store %arg15[%c0_111, %c16_112], %197 {strides = array<i32>} : memref<16x32xf32, #tpu.memory_space<vmem>>, vector<8x16xf32>,
    %199 = vector.extract_strided_slice %168 {offsets = [8, 0], sizes = [8, 16], strides = [1, 1]} : vector<16x96xf32> to vector<8x16xf32>
    %200 = vector.extract_strided_slice %168 {offsets = [8, 32], sizes = [8, 16], strides = [1, 1]} : vector<16x96xf32> to vector<8x16xf32>
    %201 = vector.extract_strided_slice %168 {offsets = [8, 64], sizes = [8, 16], strides = [1, 1]} : vector<16x96xf32> to vector<8x16xf32>
    %cst_113 = arith.constant dense<0.000000e+00> : vector<8x8xf32>
    %202 = tpu.matmul %199, %200, %cst_113 {dimension_numbers = #tpu.dot_dimension_numbers<[1], [1], [0], [0], [0, 0, 1, 0], [], []>} : vector<8x16xf32>, vector<8x16xf32>, vector<8x8xf32> -> vector<8x8xf32>
    %cst_114 = arith.constant dense<0xFF800000> : vector<8xf32>
    %203 = vector.multi_reduction <maximumf>, %202, %cst_114 [1] : vector<8x8xf32> to vector<8xf32>
    %204 = vector.shape_cast %203 : vector<8xf32> to vector<8x1xf32>
    %205 = vector.broadcast %204 : vector<8x1xf32> to vector<8x8xf32>
    %206 = arith.subf %202, %205 : vector<8x8xf32>
    %207 = math.exp %206 : vector<8x8xf32>
    %cst_115 = arith.constant dense<0.000000e+00> : vector<8xf32>
    %208 = vector.multi_reduction <add>, %207, %cst_115 [1] : vector<8x8xf32> to vector<8xf32>
    %209 = vector.shape_cast %208 : vector<8xf32> to vector<8x1xf32>
    %210 = vector.broadcast %209 : vector<8x1xf32> to vector<8x8xf32>
    %211 = arith.divf %207, %210 : vector<8x8xf32>
    %cst_116 = arith.constant dense<0.000000e+00> : vector<8x16xf32>
    %212 = tpu.matmul %211, %201, %cst_116 {dimension_numbers = #tpu.dot_dimension_numbers<[1], [0], [0], [1], [0, 0, 1, 1], [], []>} : vector<8x8xf32>, vector<8x16xf32>, vector<8x16xf32> -> vector<8x16xf32>
    %c8_117 = arith.constant 8 : index
    %c0_118 = arith.constant 0 : index
    %213 = vector.load %arg15[%c8_117, %c0_118] : memref<16x32xf32, #tpu.memory_space<vmem>>, vector<8x16xf32>
    tpu.vector_store %arg15[%c8_117, %c0_118], %212 {strides = array<i32>} : memref<16x32xf32, #tpu.memory_space<vmem>>, vector<8x16xf32>,
    %214 = vector.extract_strided_slice %168 {offsets = [8, 16], sizes = [8, 16], strides = [1, 1]} : vector<16x96xf32> to vector<8x16xf32>
    %215 = vector.extract_strided_slice %168 {offsets = [8, 48], sizes = [8, 16], strides = [1, 1]} : vector<16x96xf32> to vector<8x16xf32>
    %216 = vector.extract_strided_slice %168 {offsets = [8, 80], sizes = [8, 16], strides = [1, 1]} : vector<16x96xf32> to vector<8x16xf32>
    %cst_119 = arith.constant dense<0.000000e+00> : vector<8x8xf32>
    %217 = tpu.matmul %214, %215, %cst_119 {dimension_numbers = #tpu.dot_dimension_numbers<[1], [1], [0], [0], [0, 0, 1, 0], [], []>} : vector<8x16xf32>, vector<8x16xf32>, vector<8x8xf32> -> vector<8x8xf32>
    %cst_120 = arith.constant dense<0xFF800000> : vector<8xf32>
    %218 = vector.multi_reduction <maximumf>, %217, %cst_120 [1] : vector<8x8xf32> to vector<8xf32>
    %219 = vector.shape_cast %218 : vector<8xf32> to vector<8x1xf32>
    %220 = vector.broadcast %219 : vector<8x1xf32> to vector<8x8xf32>
    %221 = arith.subf %217, %220 : vector<8x8xf32>
    %222 = math.exp %221 : vector<8x8xf32>
    %cst_121 = arith.constant dense<0.000000e+00> : vector<8xf32>
    %223 = vector.multi_reduction <add>, %222, %cst_121 [1] : vector<8x8xf32> to vector<8xf32>
    %224 = vector.shape_cast %223 : vector<8xf32> to vector<8x1xf32>
    %225 = vector.broadcast %224 : vector<8x1xf32> to vector<8x8xf32>
    %226 = arith.divf %222, %225 : vector<8x8xf32>
    %cst_122 = arith.constant dense<0.000000e+00> : vector<8x16xf32>
    %227 = tpu.matmul %226, %216, %cst_122 {dimension_numbers = #tpu.dot_dimension_numbers<[1], [0], [0], [1], [0, 0, 1, 1], [], []>} : vector<8x8xf32>, vector<8x16xf32>, vector<8x16xf32> -> vector<8x16xf32>
    %c8_123 = arith.constant 8 : index
    %c16_124 = arith.constant 16 : index
    %228 = vector.load %arg15[%c8_123, %c16_124] : memref<16x32xf32, #tpu.memory_space<vmem>>, vector<8x16xf32>
    tpu.vector_store %arg15[%c8_123, %c16_124], %227 {strides = array<i32>} : memref<16x32xf32, #tpu.memory_space<vmem>>, vector<8x16xf32>,
    %c0_125 = arith.constant 0 : index
    %c0_126 = arith.constant 0 : index
    %229 = vector.load %arg15[%c0_125, %c0_126] : memref<16x32xf32, #tpu.memory_space<vmem>>, vector<16x32xf32>
    %cst_127 = arith.constant dense<0.000000e+00> : vector<16x32xf32>
    %230 = tpu.matmul %229, %151, %cst_127 {dimension_numbers = #tpu.dot_dimension_numbers<[1], [0], [0], [1], [0, 0, 1, 1], [], []>} : vector<16x32xf32>, vector<32x32xf32>, vector<16x32xf32> -> vector<16x32xf32>
    %231 = vector.broadcast %153 : vector<1x32xf32> to vector<16x32xf32>
    %232 = arith.addf %230, %231 : vector<16x32xf32>
    %233 = arith.addf %145, %232 : vector<16x32xf32>
    %cst_128 = arith.constant dense<0.000000e+00> : vector<16xf32>
    %234 = vector.multi_reduction <add>, %233, %cst_128 [1] : vector<16x32xf32> to vector<16xf32>
    %235 = vector.shape_cast %234 : vector<16xf32> to vector<16x1xf32>
    %cst_129 = arith.constant 3.200000e+01 : f32
    %236 = vector.broadcast %cst_129 : f32 to vector<16x1xf32>
    %237 = arith.divf %235, %236 : vector<16x1xf32>
    %238 = arith.mulf %233, %233 : vector<16x32xf32>
    %cst_130 = arith.constant dense<0.000000e+00> : vector<16xf32>
    %239 = vector.multi_reduction <add>, %238, %cst_130 [1] : vector<16x32xf32> to vector<16xf32>
    %240 = vector.shape_cast %239 : vector<16xf32> to vector<16x1xf32>
    %cst_131 = arith.constant 3.200000e+01 : f32
    %241 = vector.broadcast %cst_131 : f32 to vector<16x1xf32>
    %242 = arith.divf %240, %241 : vector<16x1xf32>
    %243 = arith.mulf %237, %237 : vector<16x1xf32>
    %244 = arith.subf %242, %243 : vector<16x1xf32>
    %cst_132 = arith.constant 0.000000e+00 : f32
    %245 = vector.broadcast %cst_132 : f32 to vector<16x1xf32>
    %246 = arith.maximumf %244, %245 : vector<16x1xf32>
    %247 = vector.broadcast %237 : vector<16x1xf32> to vector<16x32xf32>
    %248 = arith.subf %233, %247 : vector<16x32xf32>
    %cst_133 = arith.constant 9.99999974E-6 : f32
    %249 = vector.broadcast %cst_133 : f32 to vector<16x1xf32>
    %250 = arith.addf %246, %249 : vector<16x1xf32>
    %251 = math.rsqrt %250 : vector<16x1xf32>
    %252 = vector.broadcast %251 : vector<16x1xf32> to vector<16x32xf32>
    %253 = arith.mulf %248, %252 : vector<16x32xf32>
    %254 = vector.broadcast %155 : vector<1x32xf32> to vector<16x32xf32>
    %255 = arith.mulf %253, %254 : vector<16x32xf32>
    %256 = vector.broadcast %157 : vector<1x32xf32> to vector<16x32xf32>
    %257 = arith.addf %255, %256 : vector<16x32xf32>
    %cst_134 = arith.constant dense<0.000000e+00> : vector<16x32xf32>
    %258 = tpu.matmul %257, %159, %cst_134 {dimension_numbers = #tpu.dot_dimension_numbers<[1], [0], [0], [1], [0, 0, 1, 1], [], []>} : vector<16x32xf32>, vector<32x32xf32>, vector<16x32xf32> -> vector<16x32xf32>
    %259 = vector.broadcast %161 : vector<1x32xf32> to vector<16x32xf32>
    %260 = arith.addf %258, %259 : vector<16x32xf32>
    %cst_135 = arith.constant 0.000000e+00 : f32
    %261 = vector.broadcast %cst_135 : f32 to vector<16x32xf32>
    %262 = arith.maximumf %260, %261 : vector<16x32xf32>
    %cst_136 = arith.constant dense<0.000000e+00> : vector<16x32xf32>
    %263 = tpu.matmul %262, %163, %cst_136 {dimension_numbers = #tpu.dot_dimension_numbers<[1], [0], [0], [1], [0, 0, 1, 1], [], []>} : vector<16x32xf32>, vector<32x32xf32>, vector<16x32xf32> -> vector<16x32xf32>
    %264 = vector.broadcast %165 : vector<1x32xf32> to vector<16x32xf32>
    %265 = arith.addf %263, %264 : vector<16x32xf32>
    %266 = arith.addf %257, %265 : vector<16x32xf32>
    %cst_137 = arith.constant dense<0.000000e+00> : vector<16xf32>
    %267 = vector.multi_reduction <add>, %266, %cst_137 [1] : vector<16x32xf32> to vector<16xf32>
    %268 = vector.shape_cast %267 : vector<16xf32> to vector<16x1xf32>
    %cst_138 = arith.constant 3.200000e+01 : f32
    %269 = vector.broadcast %cst_138 : f32 to vector<16x1xf32>
    %270 = arith.divf %268, %269 : vector<16x1xf32>
    %271 = arith.mulf %266, %266 : vector<16x32xf32>
    %cst_139 = arith.constant dense<0.000000e+00> : vector<16xf32>
    %272 = vector.multi_reduction <add>, %271, %cst_139 [1] : vector<16x32xf32> to vector<16xf32>
    %273 = vector.shape_cast %272 : vector<16xf32> to vector<16x1xf32>
    %cst_140 = arith.constant 3.200000e+01 : f32
    %274 = vector.broadcast %cst_140 : f32 to vector<16x1xf32>
    %275 = arith.divf %273, %274 : vector<16x1xf32>
    %276 = arith.mulf %270, %270 : vector<16x1xf32>
    %277 = arith.subf %275, %276 : vector<16x1xf32>
    %cst_141 = arith.constant 0.000000e+00 : f32
    %278 = vector.broadcast %cst_141 : f32 to vector<16x1xf32>
    %279 = arith.maximumf %277, %278 : vector<16x1xf32>
    %280 = vector.broadcast %270 : vector<16x1xf32> to vector<16x32xf32>
    %281 = arith.subf %266, %280 : vector<16x32xf32>
    %cst_142 = arith.constant 9.99999974E-6 : f32
    %282 = vector.broadcast %cst_142 : f32 to vector<16x1xf32>
    %283 = arith.addf %279, %282 : vector<16x1xf32>
    %284 = math.rsqrt %283 : vector<16x1xf32>
    %285 = vector.broadcast %284 : vector<16x1xf32> to vector<16x32xf32>
    %286 = arith.mulf %281, %285 : vector<16x32xf32>
    %287 = vector.broadcast %155 : vector<1x32xf32> to vector<16x32xf32>
    %288 = arith.mulf %286, %287 : vector<16x32xf32>
    %289 = vector.broadcast %157 : vector<1x32xf32> to vector<16x32xf32>
    %290 = arith.addf %288, %289 : vector<16x32xf32>
    %c0_143 = arith.constant 0 : index
    %c0_144 = arith.constant 0 : index
    %291 = vector.load %arg11[%c0_143, %c0_144] : memref<16x32xf32, #tpu.memory_space<vmem>>, vector<16x32xf32>
    %292 = arith.mulf %290, %291 : vector<16x32xf32>
    %cst_145 = arith.constant dense<0.000000e+00> : vector<16xf32>
    %293 = vector.multi_reduction <add>, %292, %cst_145 [1] : vector<16x32xf32> to vector<16xf32>
    %294 = vector.shape_cast %293 : vector<16xf32> to vector<16x1xf32>
    %c0_146 = arith.constant 0 : index
    %c0_147 = arith.constant 0 : index
    %295 = vector.load %arg12[%c0_146, %c0_147] : memref<16x2xf32, #tpu.memory_space<vmem>>, vector<16x2xf32>
    %296 = vector.broadcast %294 : vector<16x1xf32> to vector<16x2xf32>
    %297 = arith.mulf %296, %295 : vector<16x2xf32>
    %cst_148 = arith.constant dense<0.000000e+00> : vector<2xf32>
    %298 = vector.multi_reduction <add>, %297, %cst_148 [0] : vector<16x2xf32> to vector<2xf32>
    %299 = vector.shape_cast %298 : vector<2xf32> to vector<1x2xf32>
    %c0_149 = arith.constant 0 : index
    %c0_150 = arith.constant 0 : index
    %300 = vector.load %arg13[%c0_149, %c0_150] : memref<1x1xf32, #tpu.memory_space<vmem>>, vector<1x1xf32>
    %301 = vector.broadcast %300 : vector<1x1xf32> to vector<1x2xf32>
    %302 = arith.addf %299, %301 : vector<1x2xf32>
    %c0_151 = arith.constant 0 : index
    %c0_152 = arith.constant 0 : index
    %303 = vector.load %arg14[%c0_151, %c0_152] : memref<1x2xf32, #tpu.memory_space<vmem>>, vector<1x2xf32>
    tpu.vector_store %arg14[%c0_151, %c0_152], %302 {strides = array<i32>} : memref<1x2xf32, #tpu.memory_space<vmem>>, vector<1x2xf32>,
    return
  }
}

</mosaic_0001>

<llo_original>
// kernel: value_encoder_forward.1
$region0: #{value_encoder_forward.1}
  #allocation0 [shape = 'u32[]', space=smem, size = 0x4, offset = 0x4, fixed_abs, tag = 'smem constant byte address 0x4 - core index']
  #allocation1 [shape = 'u32[144,128]{1,0:T(1,128)}', space=vmem, size = 0x12000, scoped, tag = 'internal scratch']
  #allocation2 [shape = 'f32[16,32]{1,0:T(8,128)}', space=vmem, size = 0x2000, scoped, tag = 'scratch operand']
  #allocation3 [shape = 'f32[1,1]{1,0:T(1,128)S(1)}', space=vmem, size = 0x200, scoped, tag = 'scoped memory for value_encoder_forward.1']
  %s0 = inlined_call_operand.vmem [shape: f32[16,32], index: 0, kind: input, shape index: {}]
  %s1 = inlined_call_operand.vmem [shape: f32[2,32,96], index: 1, kind: input, shape index: {}]
  %s2 = inlined_call_operand.vmem [shape: f32[2,1,96], index: 2, kind: input, shape index: {}]
  %s3 = inlined_call_operand.hbm [shape: f32[2,32,32], index: 3, kind: input, shape index: {}]
  %s4 = inlined_call_operand.vmem [shape: f32[2,1,32], index: 4, kind: input, shape index: {}]
  %s5 = inlined_call_operand.vmem [shape: f32[2,1,32], index: 5, kind: input, shape index: {}]
  %s6 = inlined_call_operand.vmem [shape: f32[2,1,32], index: 6, kind: input, shape index: {}]
  %s7 = inlined_call_operand.hbm [shape: f32[2,32,32], index: 7, kind: input, shape index: {}]
  %s8 = inlined_call_operand.vmem [shape: f32[2,1,32], index: 8, kind: input, shape index: {}]
  %s9 = inlined_call_operand.hbm [shape: f32[2,32,32], index: 9, kind: input, shape index: {}]
  %s10 = inlined_call_operand.hbm [shape: f32[2,1,32], index: 10, kind: input, shape index: {}]
  %s11 = inlined_call_operand.hbm [shape: f32[16,32], index: 11, kind: input, shape index: {}]
  %s12 = inlined_call_operand.vmem [shape: f32[16,2], index: 12, kind: input, shape index: {}]
  %s13 = inlined_call_operand.<no memory space> [shape: f32[1,1], index: 13, kind: input, shape index: {}]
  %s14 = inlined_call_operand.hbm [shape: f32[1,2], index: 14, kind: output, shape index: {}]
  %s15 = sld [smem:[#allocation0]]
  $region86: #{value_encoder_forward.1} parent=0
    _
  %s17 = ssub.s32 1, %s15
  %s18 = scalar_select 0, %s17, %s15
  %v19 = vstv %s13
  %20 = vst [vmem:[#allocation3] sm:$0x1] %v19
  $region1: #{value_encoder_forward.1} parent=0
    #allocation4 [shape = 'u8[32768]{0}', space=vmem, size = 0x8000, scoped, tag = 'input window, operand 3, single buffered']
    #allocation5 [shape = 's32[1]{0}', space=sflag, size = 0x4, scoped, tag = 'scoped memory for value_encoder_forward.1']
    #allocation6 [shape = 's32[1]{0}', space=sflag, size = 0x4, scoped, tag = 'scoped memory for value_encoder_forward.1']
    #allocation7 [shape = 'u8[32768]{0}', space=vmem, size = 0x8000, scoped, tag = 'input window, operand 7, single buffered']
    #allocation8 [shape = 's32[1]{0}', space=sflag, size = 0x4, scoped, tag = 'scoped memory for value_encoder_forward.1']
    #allocation9 [shape = 'u8[32768]{0}', space=vmem, size = 0x8000, scoped, tag = 'input window, operand 9, single buffered']
    #allocation10 [shape = 'u8[1024]{0}', space=vmem, size = 0x400, scoped, tag = 'input window, operand 10, single buffered']
    #allocation11 [shape = 's32[1]{0}', space=sflag, size = 0x4, scoped, tag = 'scoped memory for value_encoder_forward.1']
    #allocation12 [shape = 'u8[8192]{0}', space=vmem, size = 0x2000, scoped, tag = 'input window, operand 11, single buffered']
    #allocation13 [shape = 'u8[512]{0}', space=vmem, size = 0x400, scoped, tag = 'output window, operand 0, single buffered']
    %21 = vsyncpa [#allocation5], 0
    %22 = vsyncpa [#allocation8], 0
    %23 = vsyncpa [#allocation11], 0
    %24 = vsyncpa [#allocation6], 0
    // Predicated region
    $region2: #{value_encoder_forward.1} parent=1 // pred_check
      _
    $region3: #{value_encoder_forward.1} parent=1 // pred_check_branch
      %26 = sbr.rel (0) target = $region5
    $region4: #{value_encoder_forward.1} parent=1 // pred_region
      _
    $region5: #{value_encoder_forward.1} parent=1 // pred_fallthru
      _
    // Predicated region
    $region6: #{value_encoder_forward.1} parent=1 // pred_check
      _
    $region7: #{value_encoder_forward.1} parent=1 // pred_check_branch
      %28 = sbr.rel (0) target = $region9
    $region8: #{value_encoder_forward.1} parent=1 // pred_region
      _
    $region9: #{value_encoder_forward.1} parent=1 // pred_fallthru
      _
    // Predicated region
    $region10: #{value_encoder_forward.1} parent=1 // pred_check
      _
    $region11: #{value_encoder_forward.1} parent=1 // pred_check_branch
      %30 = sbr.rel (0) target = $region13
    $region12: #{value_encoder_forward.1} parent=1 // pred_region
      _
    $region13: #{value_encoder_forward.1} parent=1 // pred_fallthru
      _
    // Predicated region
    $region14: #{value_encoder_forward.1} parent=1 // pred_check
      _
    $region15: #{value_encoder_forward.1} parent=1 // pred_check_branch
      %32 = sbr.rel (0) target = $region17
    $region16: #{value_encoder_forward.1} parent=1 // pred_region
      %s34 = ssub.s32 1024, 1024
      %35 = vsyncadd [#allocation5], %s34
      %s36 = sshll.u32 [#allocation4], 4
      %s37 = int_to_ptr.vmem [resolvable:$true] %s36
      %42 = dma.hbm_to_vmem [thread:$0]  %s3, 1024, %s37, [#allocation5], 128, 128, 8
    $region17: #{value_encoder_forward.1} parent=1 // pred_fallthru
      _
    // Predicated region
    $region18: #{value_encoder_forward.1} parent=1 // pred_check
      _
    $region19: #{value_encoder_forward.1} parent=1 // pred_check_branch
      %44 = sbr.rel (0) target = $region21
    $region20: #{value_encoder_forward.1} parent=1 // pred_region
      _
    $region21: #{value_encoder_forward.1} parent=1 // pred_fallthru
      _
    // Predicated region
    $region22: #{value_encoder_forward.1} parent=1 // pred_check
      _
    $region23: #{value_encoder_forward.1} parent=1 // pred_check_branch
      %46 = sbr.rel (0) target = $region25
    $region24: #{value_encoder_forward.1} parent=1 // pred_region
      _
    $region25: #{value_encoder_forward.1} parent=1 // pred_fallthru
      _
    // Predicated region
    $region26: #{value_encoder_forward.1} parent=1 // pred_check
      _
    $region27: #{value_encoder_forward.1} parent=1 // pred_check_branch
      %48 = sbr.rel (0) target = $region29
    $region28: #{value_encoder_forward.1} parent=1 // pred_region
      _
    $region29: #{value_encoder_forward.1} parent=1 // pred_fallthru
      _
    // Predicated region
    $region30: #{value_encoder_forward.1} parent=1 // pred_check
      _
    $region31: #{value_encoder_forward.1} parent=1 // pred_check_branch
      %50 = sbr.rel (0) target = $region33
    $region32: #{value_encoder_forward.1} parent=1 // pred_region
      %s52 = ssub.s32 1024, 1024
      %53 = vsyncadd [#allocation8], %s52
      %s54 = sshll.u32 [#allocation7], 4
      %s55 = int_to_ptr.vmem [resolvable:$true] %s54
      %60 = dma.hbm_to_vmem [thread:$0]  %s7, 1024, %s55, [#allocation8], 128, 128, 8
    $region33: #{value_encoder_forward.1} parent=1 // pred_fallthru
      _
    // Predicated region
    $region34: #{value_encoder_forward.1} parent=1 // pred_check
      _
    $region35: #{value_encoder_forward.1} parent=1 // pred_check_branch
      %62 = sbr.rel (0) target = $region37
    $region36: #{value_encoder_forward.1} parent=1 // pred_region
      _
    $region37: #{value_encoder_forward.1} parent=1 // pred_fallthru
      _
    // Predicated region
    $region38: #{value_encoder_forward.1} parent=1 // pred_check
      _
    $region39: #{value_encoder_forward.1} parent=1 // pred_check_branch
      %64 = sbr.rel (0) target = $region41
    $region40: #{value_encoder_forward.1} parent=1 // pred_region
      %s66 = ssub.s32 1024, 1024
      %67 = vsyncadd [#allocation8], %s66
      %s68 = sshll.u32 [#allocation9], 4
      %s69 = int_to_ptr.vmem [resolvable:$true] %s68
      %74 = dma.hbm_to_vmem [thread:$0]  %s9, 1024, %s69, [#allocation8], 128, 128, 8
    $region41: #{value_encoder_forward.1} parent=1 // pred_fallthru
      _
    // Predicated region
    $region42: #{value_encoder_forward.1} parent=1 // pred_check
      _
    $region43: #{value_encoder_forward.1} parent=1 // pred_check_branch
      %76 = sbr.rel (0) target = $region45
    $region44: #{value_encoder_forward.1} parent=1 // pred_region
      %s78 = ssub.s32 32, 32
      %79 = vsyncadd [#allocation11], %s78
      %s80 = sshll.u32 [#allocation10], 4
      %s81 = int_to_ptr.vmem [resolvable:$true] %s80
      %86 = dma.hbm_to_vmem [thread:$0]  %s10, 32, %s81, [#allocation11], 16, 16, 1
    $region45: #{value_encoder_forward.1} parent=1 // pred_fallthru
      _
    // Predicated region
    $region46: #{value_encoder_forward.1} parent=1 // pred_check
      _
    $region47: #{value_encoder_forward.1} parent=1 // pred_check_branch
      %88 = sbr.rel (0) target = $region49
    $region48: #{value_encoder_forward.1} parent=1 // pred_region
      %s90 = ssub.s32 256, 256
      %91 = vsyncadd [#allocation11], %s90
      %s92 = sshll.u32 [#allocation12], 4
      %s93 = int_to_ptr.vmem [resolvable:$true] %s92
      %98 = dma.hbm_to_vmem [thread:$0]  %s11, 256, %s93, [#allocation11], 128, 128, 8
    $region49: #{value_encoder_forward.1} parent=1 // pred_fallthru
      _
    // Predicated region
    $region50: #{value_encoder_forward.1} parent=1 // pred_check
      _
    $region51: #{value_encoder_forward.1} parent=1 // pred_check_branch
      %100 = sbr.rel (0) target = $region53
    $region52: #{value_encoder_forward.1} parent=1 // pred_region
      _
    $region53: #{value_encoder_forward.1} parent=1 // pred_fallthru
      _
    // Predicated region
    $region54: #{value_encoder_forward.1} parent=1 // pred_check
      _
    $region55: #{value_encoder_forward.1} parent=1 // pred_check_branch
      %102 = sbr.rel (0) target = $region57
    $region56: #{value_encoder_forward.1} parent=1 // pred_region
      _
    $region57: #{value_encoder_forward.1} parent=1 // pred_fallthru
      _
    // Predicated region
    $region58: #{value_encoder_forward.1} parent=1 // pred_check
      _
    $region59: #{value_encoder_forward.1} parent=1 // pred_check_branch
      %104 = sbr.rel (0) target = $region61
    $region60: #{value_encoder_forward.1} parent=1 // pred_region
      %105 = dma.done [#allocation5], 1024
    $region61: #{value_encoder_forward.1} parent=1 // pred_fallthru
      _
    // Predicated region
    $region62: #{value_encoder_forward.1} parent=1 // pred_check
      _
    $region63: #{value_encoder_forward.1} parent=1 // pred_check_branch
      %107 = sbr.rel (0) target = $region65
    $region64: #{value_encoder_forward.1} parent=1 // pred_region
      %108 = dma.done [#allocation8], 1024
    $region65: #{value_encoder_forward.1} parent=1 // pred_fallthru
      _
    // Predicated region
    $region66: #{value_encoder_forward.1} parent=1 // pred_check
      _
    $region67: #{value_encoder_forward.1} parent=1 // pred_check_branch
      %110 = sbr.rel (0) target = $region69
    $region68: #{value_encoder_forward.1} parent=1 // pred_region
      %111 = dma.done [#allocation8], 1024
    $region69: #{value_encoder_forward.1} parent=1 // pred_fallthru
      _
    // Predicated region
    $region70: #{value_encoder_forward.1} parent=1 // pred_check
      _
    $region71: #{value_encoder_forward.1} parent=1 // pred_check_branch
      %113 = sbr.rel (0) target = $region73
    $region72: #{value_encoder_forward.1} parent=1 // pred_region
      %114 = dma.done [#allocation11], 32
    $region73: #{value_encoder_forward.1} parent=1 // pred_fallthru
      _
    // Predicated region
    $region74: #{value_encoder_forward.1} parent=1 // pred_check
      _
    $region75: #{value_encoder_forward.1} parent=1 // pred_check_branch
      %116 = sbr.rel (0) target = $region77
    $region76: #{value_encoder_forward.1} parent=1 // pred_region
      %117 = dma.done [#allocation11], 256
    $region77: #{value_encoder_forward.1} parent=1 // pred_fallthru
      _
    %v118 = vld [vmem:[%s0] sm:$0xff]
    %v119 = vld [vmem:[%s0 + $0x8] sm:$0xff]
    %v120 = vld [vmem:[%s1] sm:$0xff]
    %v121 = vld [vmem:[%s1 + $0x8] sm:$0xff]
    %v122 = vld [vmem:[%s1 + $0x10] sm:$0xff]
    %v123 = vld [vmem:[%s1 + $0x18] sm:$0xff]
    %v124 = vld [vmem:[%s2] sm:$0x1]
    %v125 = vld [vmem:[#allocation4] sm:$0xff]
    %v126 = vld [vmem:[#allocation4 + $0x8] sm:$0xff]
    %v127 = vld [vmem:[#allocation4 + $0x10] sm:$0xff]
    %v128 = vld [vmem:[#allocation4 + $0x18] sm:$0xff]
    %v129 = vld [vmem:[%s4] sm:$0x1]
    %v130 = vld [vmem:[%s5] sm:$0x1]
    %v131 = vld [vmem:[%s6] sm:$0x1]
    %v132 = vld [vmem:[#allocation7] sm:$0xff]
    %v133 = vld [vmem:[#allocation7 + $0x8] sm:$0xff]
    %v134 = vld [vmem:[#allocation7 + $0x10] sm:$0xff]
    %v135 = vld [vmem:[#allocation7 + $0x18] sm:$0xff]
    %v136 = vld [vmem:[%s8] sm:$0x1]
    %v137 = vld [vmem:[#allocation9] sm:$0xff]
    %v138 = vld [vmem:[#allocation9 + $0x8] sm:$0xff]
    %v139 = vld [vmem:[#allocation9 + $0x10] sm:$0xff]
    %v140 = vld [vmem:[#allocation9 + $0x18] sm:$0xff]
    %v141 = vld [vmem:[#allocation10] sm:$0x1]
    %v143 = vlaneseq
    %v144 = vshrl.u32 %v143, 7
    %v145 = vsub.s32 0, %v144
    %v146 = vrot.slane %v124, %v145
    %vm148 = vcmask 261120
    %v150 = vsel %vm148, %v118, 0
    %v153 = vsel %vm148, %v119, 0
    %155 = vmatprep.subr.mxu0 0.0
    %156 = vmatpush1.msra.mxu0 0.0
    %157 = vmatprep.subr.mxu0 0.0
    %158 = vmatpush1.msra.mxu0 0.0
    %159 = vmatprep.subr.mxu0 0.0
    %160 = vmatpush1.msra.mxu0 0.0
    %161 = vmatprep.subr.mxu0 0.0
    %162 = vmatpush1.msra.mxu0 0.0
    %163 = vmatprep.subr.mxu0 0.0
    %164 = vmatpush1.msra.mxu0 0.0
    %165 = vmatprep.subr.mxu0 0.0
    %166 = vmatpush1.msra.mxu0 0.0
    %167 = vmatprep.subr.mxu0 0.0
    %168 = vmatpush1.msra.mxu0 0.0
    %169 = vmatprep.subr.mxu0 0.0
    %170 = vmatpush1.msra.mxu0 0.0
    %171 = vmatprep.subr.mxu0 0.0
    %172 = vmatpush1.msra.mxu0 0.0
    %173 = vmatprep.subr.mxu0 0.0
    %174 = vmatpush1.msra.mxu0 0.0
    %175 = vmatprep.subr.mxu0 0.0
    %176 = vmatpush1.msra.mxu0 0.0
    %177 = vmatprep.subr.mxu0 0.0
    %178 = vmatpush1.msra.mxu0 0.0
    %179 = vmatprep.subr.mxu0 0.0
    %180 = vmatpush1.msra.mxu0 %v123
    %181 = vmatprep.subr.mxu0 0.0
    %182 = vmatpush1.msra.mxu0 %v122
    %183 = vmatprep.subr.mxu0 0.0
    %184 = vmatpush1.msra.mxu0 %v121
    %185 = vmatprep.subr.mxu0 0.0
    %186 = vmatpush1.msra.mxu0 %v120
    %187 = vmatprep.subr.mxu0 0.0
    %188 = vmatpush2.msra.mxu0 0.0
    %189 = vmatprep.subr.mxu0 0.0
    %190 = vmatpush2.msra.mxu0 0.0
    %191 = vmatprep.subr.mxu0 0.0
    %192 = vmatpush2.msra.mxu0 0.0
    %193 = vmatprep.subr.mxu0 0.0
    %194 = vmatpush2.msra.mxu0 0.0
    %195 = vmatprep.subr.mxu0 0.0
    %196 = vmatpush2.msra.mxu0 0.0
    %197 = vmatprep.subr.mxu0 0.0
    %198 = vmatpush2.msra.mxu0 0.0
    %199 = vmatprep.subr.mxu0 0.0
    %200 = vmatpush2.msra.mxu0 0.0
    %201 = vmatprep.subr.mxu0 0.0
    %202 = vmatpush2.msra.mxu0 0.0
    %203 = vmatprep.subr.mxu0 0.0
    %204 = vmatpush2.msra.mxu0 0.0
    %205 = vmatprep.subr.mxu0 0.0
    %206 = vmatpush2.msra.mxu0 0.0
    %207 = vmatprep.subr.mxu0 0.0
    %208 = vmatpush2.msra.mxu0 0.0
    %209 = vmatprep.subr.mxu0 0.0
    %210 = vmatpush2.msra.mxu0 0.0
    %211 = vmatprep.subr.mxu0 0.0
    %212 = vmatpush2.msra.mxu0 0.0
    %213 = vmatprep.subr.mxu0 0.0
    %214 = vmatpush2.msra.mxu0 0.0
    %215 = vmatprep.subr.mxu0 0.0
    %216 = vmatpush2.msra.mxu0 0.0
    %217 = vmatprep.subr.mxu0 0.0
    %218 = vmatpush2.msra.mxu0 0.0
    %219 = vmatprep.mubr.f32.mxu0 0.0
    %220 = vmatmul.mubr.f32.gmra.mxu0 %v150
    %v221 = vpop.f32.mrf.mxu0
    %v222 = vadd.f32 %v146, %v221
    %v223 = vpop.f32.mrf.mxu0
    %224 = vmatprep.mubr.f32.mxu0 0.0
    %225 = vmatmul.mubr.f32.gmra.mxu0 %v153
    %v226 = vpop.f32.mrf.mxu0
    %v227 = vadd.f32 %v146, %v226
    %v228 = vpop.f32.mrf.mxu0
    %229 = vdwg.mxu0
    %231 = vrot.lane.b32.xlu0 %v222, 96
    %v232 = vpop.permute.xlu0 %231
    %vm233 = vcmask 130048
    %v234 = vsel %vm233, %v222, 0
    %v236 = vsel %vm233, %v232, 0
    %238 = vmatprep.subr.mxu0 0.0
    %239 = vmatpush1.xpose.msra.mxu0 0.0
    %240 = vmatprep.subr.mxu0 0.0
    %241 = vmatpush1.xpose.msra.mxu0 0.0
    %242 = vmatprep.subr.mxu0 0.0
    %243 = vmatpush1.xpose.msra.mxu0 0.0
    %244 = vmatprep.subr.mxu0 0.0
    %245 = vmatpush1.xpose.msra.mxu0 0.0
    %246 = vmatprep.subr.mxu0 0.0
    %247 = vmatpush1.xpose.msra.mxu0 0.0
    %248 = vmatprep.subr.mxu0 0.0
    %249 = vmatpush1.xpose.msra.mxu0 0.0
    %250 = vmatprep.subr.mxu0 0.0
    %251 = vmatpush1.xpose.msra.mxu0 0.0
    %252 = vmatprep.subr.mxu0 0.0
    %253 = vmatpush1.xpose.msra.mxu0 0.0
    %254 = vmatprep.subr.mxu0 0.0
    %255 = vmatpush1.xpose.msra.mxu0 0.0
    %256 = vmatprep.subr.mxu0 0.0
    %257 = vmatpush1.xpose.msra.mxu0 0.0
    %258 = vmatprep.subr.mxu0 0.0
    %259 = vmatpush1.xpose.msra.mxu0 0.0
    %260 = vmatprep.subr.mxu0 0.0
    %261 = vmatpush1.xpose.msra.mxu0 0.0
    %262 = vmatprep.subr.mxu0 0.0
    %263 = vmatpush1.xpose.msra.mxu0 0.0
    %264 = vmatprep.subr.mxu0 0.0
    %265 = vmatpush1.xpose.msra.mxu0 0.0
    %266 = vmatprep.subr.mxu0 0.0
    %267 = vmatpush1.xpose.msra.mxu0 0.0
    %268 = vmatprep.subr.mxu0 0.0
    %269 = vmatpush1.xpose.msra.mxu0 %v236
    %270 = vmatprep.subr.mxu0 0.0
    %271 = vmatpush2.xpose.msra.mxu0 0.0
    %272 = vmatprep.subr.mxu0 0.0
    %273 = vmatpush2.xpose.msra.mxu0 0.0
    %274 = vmatprep.subr.mxu0 0.0
    %275 = vmatpush2.xpose.msra.mxu0 0.0
    %276 = vmatprep.subr.mxu0 0.0
    %277 = vmatpush2.xpose.msra.mxu0 0.0
    %278 = vmatprep.subr.mxu0 0.0
    %279 = vmatpush2.xpose.msra.mxu0 0.0
    %280 = vmatprep.subr.mxu0 0.0
    %281 = vmatpush2.xpose.msra.mxu0 0.0
    %282 = vmatprep.subr.mxu0 0.0
    %283 = vmatpush2.xpose.msra.mxu0 0.0
    %284 = vmatprep.subr.mxu0 0.0
    %285 = vmatpush2.xpose.msra.mxu0 0.0
    %286 = vmatprep.subr.mxu0 0.0
    %287 = vmatpush2.xpose.msra.mxu0 0.0
    %288 = vmatprep.subr.mxu0 0.0
    %289 = vmatpush2.xpose.msra.mxu0 0.0
    %290 = vmatprep.subr.mxu0 0.0
    %291 = vmatpush2.xpose.msra.mxu0 0.0
    %292 = vmatprep.subr.mxu0 0.0
    %293 = vmatpush2.xpose.msra.mxu0 0.0
    %294 = vmatprep.subr.mxu0 0.0
    %295 = vmatpush2.xpose.msra.mxu0 0.0
    %296 = vmatprep.subr.mxu0 0.0
    %297 = vmatpush2.xpose.msra.mxu0 0.0
    %298 = vmatprep.subr.mxu0 0.0
    %299 = vmatpush2.xpose.msra.mxu0 0.0
    %300 = vmatprep.subr.mxu0 0.0
    %301 = vmatpush2.xpose.msra.mxu0 0.0
    %302 = vmatprep.mubr.f32.mxu0 0.0
    %303 = vmatmul.mubr.f32.gmra.mxu0 %v234
    %v304 = vpop.f32.mrf.mxu0
    %v305 = vadd.f32 0.0, %v304
    %v306 = vpop.f32.mrf.mxu0
    %307 = vdwg.mxu0
    %vm308 = vcmask 64512
    %v309 = vsel %vm308, %v305, -inf
    %310 = vmax.xlane.f32.xlu0 %v309
    %v311 = vpop.xlane.xlu0 %310
    %v312 = vsub.f32 %v305, %v311
    %v313 = vmul.f32 %v312, 1.442695
    %v314 = vpow.pop %v313
    %v315 = vsel %vm308, %v314, 0.0
    %316 = vadd.xlane.f32.xlu0 %v315
    %v317 = vpop.xlane.xlu0 %316
    %v318 = vrcp.pop %v317
    %v319 = vmul.f32 %v314, %v318
    %320 = vrot.lane.b32.xlu0 %v222, 64
    %v321 = vpop.permute.xlu0 %320
    %v324 = vsel %vm308, %v319, 0
    %326 = vmatprep.subr.mxu0 0.0
    %327 = vmatpush1.msra.mxu0 0.0
    %328 = vmatprep.subr.mxu0 0.0
    %329 = vmatpush1.msra.mxu0 0.0
    %330 = vmatprep.subr.mxu0 0.0
    %331 = vmatpush1.msra.mxu0 0.0
    %332 = vmatprep.subr.mxu0 0.0
    %333 = vmatpush1.msra.mxu0 0.0
    %334 = vmatprep.subr.mxu0 0.0
    %335 = vmatpush1.msra.mxu0 0.0
    %336 = vmatprep.subr.mxu0 0.0
    %337 = vmatpush1.msra.mxu0 0.0
    %338 = vmatprep.subr.mxu0 0.0
    %339 = vmatpush1.msra.mxu0 0.0
    %340 = vmatprep.subr.mxu0 0.0
    %341 = vmatpush1.msra.mxu0 0.0
    %342 = vmatprep.subr.mxu0 0.0
    %343 = vmatpush1.msra.mxu0 0.0
    %344 = vmatprep.subr.mxu0 0.0
    %345 = vmatpush1.msra.mxu0 0.0
    %346 = vmatprep.subr.mxu0 0.0
    %347 = vmatpush1.msra.mxu0 0.0
    %348 = vmatprep.subr.mxu0 0.0
    %349 = vmatpush1.msra.mxu0 0.0
    %350 = vmatprep.subr.mxu0 0.0
    %351 = vmatpush1.msra.mxu0 0.0
    %352 = vmatprep.subr.mxu0 0.0
    %353 = vmatpush1.msra.mxu0 0.0
    %354 = vmatprep.subr.mxu0 0.0
    %355 = vmatpush1.msra.mxu0 0.0
    %356 = vmatprep.subr.mxu0 0.0
    %357 = vmatpush1.msra.mxu0 %v321
    %358 = vmatprep.subr.mxu0 0.0
    %359 = vmatpush2.msra.mxu0 0.0
    %360 = vmatprep.subr.mxu0 0.0
    %361 = vmatpush2.msra.mxu0 0.0
    %362 = vmatprep.subr.mxu0 0.0
    %363 = vmatpush2.msra.mxu0 0.0
    %364 = vmatprep.subr.mxu0 0.0
    %365 = vmatpush2.msra.mxu0 0.0
    %366 = vmatprep.subr.mxu0 0.0
    %367 = vmatpush2.msra.mxu0 0.0
    %368 = vmatprep.subr.mxu0 0.0
    %369 = vmatpush2.msra.mxu0 0.0
    %370 = vmatprep.subr.mxu0 0.0
    %371 = vmatpush2.msra.mxu0 0.0
    %372 = vmatprep.subr.mxu0 0.0
    %373 = vmatpush2.msra.mxu0 0.0
    %374 = vmatprep.subr.mxu0 0.0
    %375 = vmatpush2.msra.mxu0 0.0
    %376 = vmatprep.subr.mxu0 0.0
    %377 = vmatpush2.msra.mxu0 0.0
    %378 = vmatprep.subr.mxu0 0.0
    %379 = vmatpush2.msra.mxu0 0.0
    %380 = vmatprep.subr.mxu0 0.0
    %381 = vmatpush2.msra.mxu0 0.0
    %382 = vmatprep.subr.mxu0 0.0
    %383 = vmatpush2.msra.mxu0 0.0
    %384 = vmatprep.subr.mxu0 0.0
    %385 = vmatpush2.msra.mxu0 0.0
    %386 = vmatprep.subr.mxu0 0.0
    %387 = vmatpush2.msra.mxu0 0.0
    %388 = vmatprep.subr.mxu0 0.0
    %389 = vmatpush2.msra.mxu0 0.0
    %390 = vmatprep.mubr.f32.mxu0 0.0
    %391 = vmatmul.mubr.f32.gmra.mxu0 %v324
    %v392 = vpop.f32.mrf.mxu0
    %v393 = vadd.f32 0.0, %v392
    %v394 = vpop.f32.mrf.mxu0
    %395 = vdwg.mxu0
    %396 = vst.msk [vmem:[#allocation2] sm:$0xff] %vm233, %v393
    %397 = vrot.lane.b32.xlu0 %v222, 112
    %v398 = vpop.permute.xlu0 %397
    %399 = vrot.lane.b32.xlu0 %v222, 80
    %v400 = vpop.permute.xlu0 %399
    %v401 = vsel %vm233, %v398, 0
    %v403 = vsel %vm233, %v400, 0
    %405 = vmatprep.subr.mxu0 0.0
    %406 = vmatpush1.xpose.msra.mxu0 0.0
    %407 = vmatprep.subr.mxu0 0.0
    %408 = vmatpush1.xpose.msra.mxu0 0.0
    %409 = vmatprep.subr.mxu0 0.0
    %410 = vmatpush1.xpose.msra.mxu0 0.0
    %411 = vmatprep.subr.mxu0 0.0
    %412 = vmatpush1.xpose.msra.mxu0 0.0
    %413 = vmatprep.subr.mxu0 0.0
    %414 = vmatpush1.xpose.msra.mxu0 0.0
    %415 = vmatprep.subr.mxu0 0.0
    %416 = vmatpush1.xpose.msra.mxu0 0.0
    %417 = vmatprep.subr.mxu0 0.0
    %418 = vmatpush1.xpose.msra.mxu0 0.0
    %419 = vmatprep.subr.mxu0 0.0
    %420 = vmatpush1.xpose.msra.mxu0 0.0
    %421 = vmatprep.subr.mxu0 0.0
    %422 = vmatpush1.xpose.msra.mxu0 0.0
    %423 = vmatprep.subr.mxu0 0.0
    %424 = vmatpush1.xpose.msra.mxu0 0.0
    %425 = vmatprep.subr.mxu0 0.0
    %426 = vmatpush1.xpose.msra.mxu0 0.0
    %427 = vmatprep.subr.mxu0 0.0
    %428 = vmatpush1.xpose.msra.mxu0 0.0
    %429 = vmatprep.subr.mxu0 0.0
    %430 = vmatpush1.xpose.msra.mxu0 0.0
    %431 = vmatprep.subr.mxu0 0.0
    %432 = vmatpush1.xpose.msra.mxu0 0.0
    %433 = vmatprep.subr.mxu0 0.0
    %434 = vmatpush1.xpose.msra.mxu0 0.0
    %435 = vmatprep.subr.mxu0 0.0
    %436 = vmatpush1.xpose.msra.mxu0 %v403
    %437 = vmatprep.subr.mxu0 0.0
    %438 = vmatpush2.xpose.msra.mxu0 0.0
    %439 = vmatprep.subr.mxu0 0.0
    %440 = vmatpush2.xpose.msra.mxu0 0.0
    %441 = vmatprep.subr.mxu0 0.0
    %442 = vmatpush2.xpose.msra.mxu0 0.0
    %443 = vmatprep.subr.mxu0 0.0
    %444 = vmatpush2.xpose.msra.mxu0 0.0
    %445 = vmatprep.subr.mxu0 0.0
    %446 = vmatpush2.xpose.msra.mxu0 0.0
    %447 = vmatprep.subr.mxu0 0.0
    %448 = vmatpush2.xpose.msra.mxu0 0.0
    %449 = vmatprep.subr.mxu0 0.0
    %450 = vmatpush2.xpose.msra.mxu0 0.0
    %451 = vmatprep.subr.mxu0 0.0
    %452 = vmatpush2.xpose.msra.mxu0 0.0
    %453 = vmatprep.subr.mxu0 0.0
    %454 = vmatpush2.xpose.msra.mxu0 0.0
    %455 = vmatprep.subr.mxu0 0.0
    %456 = vmatpush2.xpose.msra.mxu0 0.0
    %457 = vmatprep.subr.mxu0 0.0
    %458 = vmatpush2.xpose.msra.mxu0 0.0
    %459 = vmatprep.subr.mxu0 0.0
    %460 = vmatpush2.xpose.msra.mxu0 0.0
    %461 = vmatprep.subr.mxu0 0.0
    %462 = vmatpush2.xpose.msra.mxu0 0.0
    %463 = vmatprep.subr.mxu0 0.0
    %464 = vmatpush2.xpose.msra.mxu0 0.0
    %465 = vmatprep.subr.mxu0 0.0
    %466 = vmatpush2.xpose.msra.mxu0 0.0
    %467 = vmatprep.subr.mxu0 0.0
    %468 = vmatpush2.xpose.msra.mxu0 0.0
    %469 = vmatprep.mubr.f32.mxu0 0.0
    %470 = vmatmul.mubr.f32.gmra.mxu0 %v401
    %v471 = vpop.f32.mrf.mxu0
    %v472 = vadd.f32 0.0, %v471
    %v473 = vpop.f32.mrf.mxu0
    %474 = vdwg.mxu0
    %v475 = vsel %vm308, %v472, -inf
    %476 = vmax.xlane.f32.xlu0 %v475
    %v477 = vpop.xlane.xlu0 %476
    %v478 = vsub.f32 %v472, %v477
    %v479 = vmul.f32 %v478, 1.442695
    %v480 = vpow.pop %v479
    %v481 = vsel %vm308, %v480, 0.0
    %482 = vadd.xlane.f32.xlu0 %v481
    %v483 = vpop.xlane.xlu0 %482
    %v484 = vrcp.pop %v483
    %v485 = vmul.f32 %v480, %v484
    %486 = vrot.lane.b32.xlu0 %v222, 48
    %v487 = vpop.permute.xlu0 %486
    %v490 = vsel %vm308, %v485, 0
    %492 = vmatprep.subr.mxu0 0.0
    %493 = vmatpush1.msra.mxu0 0.0
    %494 = vmatprep.subr.mxu0 0.0
    %495 = vmatpush1.msra.mxu0 0.0
    %496 = vmatprep.subr.mxu0 0.0
    %497 = vmatpush1.msra.mxu0 0.0
    %498 = vmatprep.subr.mxu0 0.0
    %499 = vmatpush1.msra.mxu0 0.0
    %500 = vmatprep.subr.mxu0 0.0
    %501 = vmatpush1.msra.mxu0 0.0
    %502 = vmatprep.subr.mxu0 0.0
    %503 = vmatpush1.msra.mxu0 0.0
    %504 = vmatprep.subr.mxu0 0.0
    %505 = vmatpush1.msra.mxu0 0.0
    %506 = vmatprep.subr.mxu0 0.0
    %507 = vmatpush1.msra.mxu0 0.0
    %508 = vmatprep.subr.mxu0 0.0
    %509 = vmatpush1.msra.mxu0 0.0
    %510 = vmatprep.subr.mxu0 0.0
    %511 = vmatpush1.msra.mxu0 0.0
    %512 = vmatprep.subr.mxu0 0.0
    %513 = vmatpush1.msra.mxu0 0.0
    %514 = vmatprep.subr.mxu0 0.0
    %515 = vmatpush1.msra.mxu0 0.0
    %516 = vmatprep.subr.mxu0 0.0
    %517 = vmatpush1.msra.mxu0 0.0
    %518 = vmatprep.subr.mxu0 0.0
    %519 = vmatpush1.msra.mxu0 0.0
    %520 = vmatprep.subr.mxu0 0.0
    %521 = vmatpush1.msra.mxu0 0.0
    %522 = vmatprep.subr.mxu0 0.0
    %523 = vmatpush1.msra.mxu0 %v487
    %524 = vmatprep.subr.mxu0 0.0
    %525 = vmatpush2.msra.mxu0 0.0
    %526 = vmatprep.subr.mxu0 0.0
    %527 = vmatpush2.msra.mxu0 0.0
    %528 = vmatprep.subr.mxu0 0.0
    %529 = vmatpush2.msra.mxu0 0.0
    %530 = vmatprep.subr.mxu0 0.0
    %531 = vmatpush2.msra.mxu0 0.0
    %532 = vmatprep.subr.mxu0 0.0
    %533 = vmatpush2.msra.mxu0 0.0
    %534 = vmatprep.subr.mxu0 0.0
    %535 = vmatpush2.msra.mxu0 0.0
    %536 = vmatprep.subr.mxu0 0.0
    %537 = vmatpush2.msra.mxu0 0.0
    %538 = vmatprep.subr.mxu0 0.0
    %539 = vmatpush2.msra.mxu0 0.0
    %540 = vmatprep.subr.mxu0 0.0
    %541 = vmatpush2.msra.mxu0 0.0
    %542 = vmatprep.subr.mxu0 0.0
    %543 = vmatpush2.msra.mxu0 0.0
    %544 = vmatprep.subr.mxu0 0.0
    %545 = vmatpush2.msra.mxu0 0.0
    %546 = vmatprep.subr.mxu0 0.0
    %547 = vmatpush2.msra.mxu0 0.0
    %548 = vmatprep.subr.mxu0 0.0
    %549 = vmatpush2.msra.mxu0 0.0
    %550 = vmatprep.subr.mxu0 0.0
    %551 = vmatpush2.msra.mxu0 0.0
    %552 = vmatprep.subr.mxu0 0.0
    %553 = vmatpush2.msra.mxu0 0.0
    %554 = vmatprep.subr.mxu0 0.0
    %555 = vmatpush2.msra.mxu0 0.0
    %556 = vmatprep.mubr.f32.mxu0 0.0
    %557 = vmatmul.mubr.f32.gmra.mxu0 %v490
    %v558 = vpop.f32.mrf.mxu0
    %v559 = vadd.f32 0.0, %v558
    %v560 = vpop.f32.mrf.mxu0
    %561 = vdwg.mxu0
    %563 = vrot.lane.b32.xlu0 %v559, 16
    %v564 = vpop.permute.xlu0 %563
    %vm566 = vcmask 261248
    %567 = vst.msk [vmem:[#allocation2] sm:$0xff] %vm566, %v564
    %569 = vrot.lane.b32.xlu0 %v227, 96
    %v570 = vpop.permute.xlu0 %569
    %v571 = vsel %vm233, %v227, 0
    %v573 = vsel %vm233, %v570, 0
    %575 = vmatprep.subr.mxu0 0.0
    %576 = vmatpush1.xpose.msra.mxu0 0.0
    %577 = vmatprep.subr.mxu0 0.0
    %578 = vmatpush1.xpose.msra.mxu0 0.0
    %579 = vmatprep.subr.mxu0 0.0
    %580 = vmatpush1.xpose.msra.mxu0 0.0
    %581 = vmatprep.subr.mxu0 0.0
    %582 = vmatpush1.xpose.msra.mxu0 0.0
    %583 = vmatprep.subr.mxu0 0.0
    %584 = vmatpush1.xpose.msra.mxu0 0.0
    %585 = vmatprep.subr.mxu0 0.0
    %586 = vmatpush1.xpose.msra.mxu0 0.0
    %587 = vmatprep.subr.mxu0 0.0
    %588 = vmatpush1.xpose.msra.mxu0 0.0
    %589 = vmatprep.subr.mxu0 0.0
    %590 = vmatpush1.xpose.msra.mxu0 0.0
    %591 = vmatprep.subr.mxu0 0.0
    %592 = vmatpush1.xpose.msra.mxu0 0.0
    %593 = vmatprep.subr.mxu0 0.0
    %594 = vmatpush1.xpose.msra.mxu0 0.0
    %595 = vmatprep.subr.mxu0 0.0
    %596 = vmatpush1.xpose.msra.mxu0 0.0
    %597 = vmatprep.subr.mxu0 0.0
    %598 = vmatpush1.xpose.msra.mxu0 0.0
    %599 = vmatprep.subr.mxu0 0.0
    %600 = vmatpush1.xpose.msra.mxu0 0.0
    %601 = vmatprep.subr.mxu0 0.0
    %602 = vmatpush1.xpose.msra.mxu0 0.0
    %603 = vmatprep.subr.mxu0 0.0
    %604 = vmatpush1.xpose.msra.mxu0 0.0
    %605 = vmatprep.subr.mxu0 0.0
    %606 = vmatpush1.xpose.msra.mxu0 %v573
    %607 = vmatprep.subr.mxu0 0.0
    %608 = vmatpush2.xpose.msra.mxu0 0.0
    %609 = vmatprep.subr.mxu0 0.0
    %610 = vmatpush2.xpose.msra.mxu0 0.0
    %611 = vmatprep.subr.mxu0 0.0
    %612 = vmatpush2.xpose.msra.mxu0 0.0
    %613 = vmatprep.subr.mxu0 0.0
    %614 = vmatpush2.xpose.msra.mxu0 0.0
    %615 = vmatprep.subr.mxu0 0.0
    %616 = vmatpush2.xpose.msra.mxu0 0.0
    %617 = vmatprep.subr.mxu0 0.0
    %618 = vmatpush2.xpose.msra.mxu0 0.0
    %619 = vmatprep.subr.mxu0 0.0
    %620 = vmatpush2.xpose.msra.mxu0 0.0
    %621 = vmatprep.subr.mxu0 0.0
    %622 = vmatpush2.xpose.msra.mxu0 0.0
    %623 = vmatprep.subr.mxu0 0.0
    %624 = vmatpush2.xpose.msra.mxu0 0.0
    %625 = vmatprep.subr.mxu0 0.0
    %626 = vmatpush2.xpose.msra.mxu0 0.0
    %627 = vmatprep.subr.mxu0 0.0
    %628 = vmatpush2.xpose.msra.mxu0 0.0
    %629 = vmatprep.subr.mxu0 0.0
    %630 = vmatpush2.xpose.msra.mxu0 0.0
    %631 = vmatprep.subr.mxu0 0.0
    %632 = vmatpush2.xpose.msra.mxu0 0.0
    %633 = vmatprep.subr.mxu0 0.0
    %634 = vmatpush2.xpose.msra.mxu0 0.0
    %635 = vmatprep.subr.mxu0 0.0
    %636 = vmatpush2.xpose.msra.mxu0 0.0
    %637 = vmatprep.subr.mxu0 0.0
    %638 = vmatpush2.xpose.msra.mxu0 0.0
    %639 = vmatprep.mubr.f32.mxu0 0.0
    %640 = vmatmul.mubr.f32.gmra.mxu0 %v571
    %v641 = vpop.f32.mrf.mxu0
    %v642 = vadd.f32 0.0, %v641
    %v643 = vpop.f32.mrf.mxu0
    %644 = vdwg.mxu0
    %v645 = vsel %vm308, %v642, -inf
    %646 = vmax.xlane.f32.xlu0 %v645
    %v647 = vpop.xlane.xlu0 %646
    %v648 = vsub.f32 %v642, %v647
    %v649 = vmul.f32 %v648, 1.442695
    %v650 = vpow.pop %v649
    %v651 = vsel %vm308, %v650, 0.0
    %652 = vadd.xlane.f32.xlu0 %v651
    %v653 = vpop.xlane.xlu0 %652
    %v654 = vrcp.pop %v653
    %v655 = vmul.f32 %v650, %v654
    %656 = vrot.lane.b32.xlu0 %v227, 64
    %v657 = vpop.permute.xlu0 %656
    %v660 = vsel %vm308, %v655, 0
    %662 = vmatprep.subr.mxu0 0.0
    %663 = vmatpush1.msra.mxu0 0.0
    %664 = vmatprep.subr.mxu0 0.0
    %665 = vmatpush1.msra.mxu0 0.0
    %666 = vmatprep.subr.mxu0 0.0
    %667 = vmatpush1.msra.mxu0 0.0
    %668 = vmatprep.subr.mxu0 0.0
    %669 = vmatpush1.msra.mxu0 0.0
    %670 = vmatprep.subr.mxu0 0.0
    %671 = vmatpush1.msra.mxu0 0.0
    %672 = vmatprep.subr.mxu0 0.0
    %673 = vmatpush1.msra.mxu0 0.0
    %674 = vmatprep.subr.mxu0 0.0
    %675 = vmatpush1.msra.mxu0 0.0
    %676 = vmatprep.subr.mxu0 0.0
    %677 = vmatpush1.msra.mxu0 0.0
    %678 = vmatprep.subr.mxu0 0.0
    %679 = vmatpush1.msra.mxu0 0.0
    %680 = vmatprep.subr.mxu0 0.0
    %681 = vmatpush1.msra.mxu0 0.0
    %682 = vmatprep.subr.mxu0 0.0
    %683 = vmatpush1.msra.mxu0 0.0
    %684 = vmatprep.subr.mxu0 0.0
    %685 = vmatpush1.msra.mxu0 0.0
    %686 = vmatprep.subr.mxu0 0.0
    %687 = vmatpush1.msra.mxu0 0.0
    %688 = vmatprep.subr.mxu0 0.0
    %689 = vmatpush1.msra.mxu0 0.0
    %690 = vmatprep.subr.mxu0 0.0
    %691 = vmatpush1.msra.mxu0 0.0
    %692 = vmatprep.subr.mxu0 0.0
    %693 = vmatpush1.msra.mxu0 %v657
    %694 = vmatprep.subr.mxu0 0.0
    %695 = vmatpush2.msra.mxu0 0.0
    %696 = vmatprep.subr.mxu0 0.0
    %697 = vmatpush2.msra.mxu0 0.0
    %698 = vmatprep.subr.mxu0 0.0
    %699 = vmatpush2.msra.mxu0 0.0
    %700 = vmatprep.subr.mxu0 0.0
    %701 = vmatpush2.msra.mxu0 0.0
    %702 = vmatprep.subr.mxu0 0.0
    %703 = vmatpush2.msra.mxu0 0.0
    %704 = vmatprep.subr.mxu0 0.0
    %705 = vmatpush2.msra.mxu0 0.0
    %706 = vmatprep.subr.mxu0 0.0
    %707 = vmatpush2.msra.mxu0 0.0
    %708 = vmatprep.subr.mxu0 0.0
    %709 = vmatpush2.msra.mxu0 0.0
    %710 = vmatprep.subr.mxu0 0.0
    %711 = vmatpush2.msra.mxu0 0.0
    %712 = vmatprep.subr.mxu0 0.0
    %713 = vmatpush2.msra.mxu0 0.0
    %714 = vmatprep.subr.mxu0 0.0
    %715 = vmatpush2.msra.mxu0 0.0
    %716 = vmatprep.subr.mxu0 0.0
    %717 = vmatpush2.msra.mxu0 0.0
    %718 = vmatprep.subr.mxu0 0.0
    %719 = vmatpush2.msra.mxu0 0.0
    %720 = vmatprep.subr.mxu0 0.0
    %721 = vmatpush2.msra.mxu0 0.0
    %722 = vmatprep.subr.mxu0 0.0
    %723 = vmatpush2.msra.mxu0 0.0
    %724 = vmatprep.subr.mxu0 0.0
    %725 = vmatpush2.msra.mxu0 0.0
    %726 = vmatprep.mubr.f32.mxu0 0.0
    %727 = vmatmul.mubr.f32.gmra.mxu0 %v660
    %v728 = vpop.f32.mrf.mxu0
    %v729 = vadd.f32 0.0, %v728
    %v730 = vpop.f32.mrf.mxu0
    %731 = vdwg.mxu0
    %732 = vst.msk [vmem:[#allocation2 + $0x8] sm:$0xff] %vm233, %v729
    %733 = vrot.lane.b32.xlu0 %v227, 112
    %v734 = vpop.permute.xlu0 %733
    %735 = vrot.lane.b32.xlu0 %v227, 80
    %v736 = vpop.permute.xlu0 %735
    %v737 = vsel %vm233, %v734, 0
    %v739 = vsel %vm233, %v736, 0
    %741 = vmatprep.subr.mxu0 0.0
    %742 = vmatpush1.xpose.msra.mxu0 0.0
    %743 = vmatprep.subr.mxu0 0.0
    %744 = vmatpush1.xpose.msra.mxu0 0.0
    %745 = vmatprep.subr.mxu0 0.0
    %746 = vmatpush1.xpose.msra.mxu0 0.0
    %747 = vmatprep.subr.mxu0 0.0
    %748 = vmatpush1.xpose.msra.mxu0 0.0
    %749 = vmatprep.subr.mxu0 0.0
    %750 = vmatpush1.xpose.msra.mxu0 0.0
    %751 = vmatprep.subr.mxu0 0.0
    %752 = vmatpush1.xpose.msra.mxu0 0.0
    %753 = vmatprep.subr.mxu0 0.0
    %754 = vmatpush1.xpose.msra.mxu0 0.0
    %755 = vmatprep.subr.mxu0 0.0
    %756 = vmatpush1.xpose.msra.mxu0 0.0
    %757 = vmatprep.subr.mxu0 0.0
    %758 = vmatpush1.xpose.msra.mxu0 0.0
    %759 = vmatprep.subr.mxu0 0.0
    %760 = vmatpush1.xpose.msra.mxu0 0.0
    %761 = vmatprep.subr.mxu0 0.0
    %762 = vmatpush1.xpose.msra.mxu0 0.0
    %763 = vmatprep.subr.mxu0 0.0
    %764 = vmatpush1.xpose.msra.mxu0 0.0
    %765 = vmatprep.subr.mxu0 0.0
    %766 = vmatpush1.xpose.msra.mxu0 0.0
    %767 = vmatprep.subr.mxu0 0.0
    %768 = vmatpush1.xpose.msra.mxu0 0.0
    %769 = vmatprep.subr.mxu0 0.0
    %770 = vmatpush1.xpose.msra.mxu0 0.0
    %771 = vmatprep.subr.mxu0 0.0
    %772 = vmatpush1.xpose.msra.mxu0 %v739
    %773 = vmatprep.subr.mxu0 0.0
    %774 = vmatpush2.xpose.msra.mxu0 0.0
    %775 = vmatprep.subr.mxu0 0.0
    %776 = vmatpush2.xpose.msra.mxu0 0.0
    %777 = vmatprep.subr.mxu0 0.0
    %778 = vmatpush2.xpose.msra.mxu0 0.0
    %779 = vmatprep.subr.mxu0 0.0
    %780 = vmatpush2.xpose.msra.mxu0 0.0
    %781 = vmatprep.subr.mxu0 0.0
    %782 = vmatpush2.xpose.msra.mxu0 0.0
    %783 = vmatprep.subr.mxu0 0.0
    %784 = vmatpush2.xpose.msra.mxu0 0.0
    %785 = vmatprep.subr.mxu0 0.0
    %786 = vmatpush2.xpose.msra.mxu0 0.0
    %787 = vmatprep.subr.mxu0 0.0
    %788 = vmatpush2.xpose.msra.mxu0 0.0
    %789 = vmatprep.subr.mxu0 0.0
    %790 = vmatpush2.xpose.msra.mxu0 0.0
    %791 = vmatprep.subr.mxu0 0.0
    %792 = vmatpush2.xpose.msra.mxu0 0.0
    %793 = vmatprep.subr.mxu0 0.0
    %794 = vmatpush2.xpose.msra.mxu0 0.0
    %795 = vmatprep.subr.mxu0 0.0
    %796 = vmatpush2.xpose.msra.mxu0 0.0
    %797 = vmatprep.subr.mxu0 0.0
    %798 = vmatpush2.xpose.msra.mxu0 0.0
    %799 = vmatprep.subr.mxu0 0.0
    %800 = vmatpush2.xpose.msra.mxu0 0.0
    %801 = vmatprep.subr.mxu0 0.0
    %802 = vmatpush2.xpose.msra.mxu0 0.0
    %803 = vmatprep.subr.mxu0 0.0
    %804 = vmatpush2.xpose.msra.mxu0 0.0
    %805 = vmatprep.mubr.f32.mxu0 0.0
    %806 = vmatmul.mubr.f32.gmra.mxu0 %v737
    %v807 = vpop.f32.mrf.mxu0
    %v808 = vadd.f32 0.0, %v807
    %v809 = vpop.f32.mrf.mxu0
    %810 = vdwg.mxu0
    %v811 = vsel %vm308, %v808, -inf
    %812 = vmax.xlane.f32.xlu0 %v811
    %v813 = vpop.xlane.xlu0 %812
    %v814 = vsub.f32 %v808, %v813
    %v815 = vmul.f32 %v814, 1.442695
    %v816 = vpow.pop %v815
    %v817 = vsel %vm308, %v816, 0.0
    %818 = vadd.xlane.f32.xlu0 %v817
    %v819 = vpop.xlane.xlu0 %818
    %v820 = vrcp.pop %v819
    %v821 = vmul.f32 %v816, %v820
    %822 = vrot.lane.b32.xlu0 %v227, 48
    %v823 = vpop.permute.xlu0 %822
    %v826 = vsel %vm308, %v821, 0
    %828 = vmatprep.subr.mxu0 0.0
    %829 = vmatpush1.msra.mxu0 0.0
    %830 = vmatprep.subr.mxu0 0.0
    %831 = vmatpush1.msra.mxu0 0.0
    %832 = vmatprep.subr.mxu0 0.0
    %833 = vmatpush1.msra.mxu0 0.0
    %834 = vmatprep.subr.mxu0 0.0
    %835 = vmatpush1.msra.mxu0 0.0
    %836 = vmatprep.subr.mxu0 0.0
    %837 = vmatpush1.msra.mxu0 0.0
    %838 = vmatprep.subr.mxu0 0.0
    %839 = vmatpush1.msra.mxu0 0.0
    %840 = vmatprep.subr.mxu0 0.0
    %841 = vmatpush1.msra.mxu0 0.0
    %842 = vmatprep.subr.mxu0 0.0
    %843 = vmatpush1.msra.mxu0 0.0
    %844 = vmatprep.subr.mxu0 0.0
    %845 = vmatpush1.msra.mxu0 0.0
    %846 = vmatprep.subr.mxu0 0.0
    %847 = vmatpush1.msra.mxu0 0.0
    %848 = vmatprep.subr.mxu0 0.0
    %849 = vmatpush1.msra.mxu0 0.0
    %850 = vmatprep.subr.mxu0 0.0
    %851 = vmatpush1.msra.mxu0 0.0
    %852 = vmatprep.subr.mxu0 0.0
    %853 = vmatpush1.msra.mxu0 0.0
    %854 = vmatprep.subr.mxu0 0.0
    %855 = vmatpush1.msra.mxu0 0.0
    %856 = vmatprep.subr.mxu0 0.0
    %857 = vmatpush1.msra.mxu0 0.0
    %858 = vmatprep.subr.mxu0 0.0
    %859 = vmatpush1.msra.mxu0 %v823
    %860 = vmatprep.subr.mxu0 0.0
    %861 = vmatpush2.msra.mxu0 0.0
    %862 = vmatprep.subr.mxu0 0.0
    %863 = vmatpush2.msra.mxu0 0.0
    %864 = vmatprep.subr.mxu0 0.0
    %865 = vmatpush2.msra.mxu0 0.0
    %866 = vmatprep.subr.mxu0 0.0
    %867 = vmatpush2.msra.mxu0 0.0
    %868 = vmatprep.subr.mxu0 0.0
    %869 = vmatpush2.msra.mxu0 0.0
    %870 = vmatprep.subr.mxu0 0.0
    %871 = vmatpush2.msra.mxu0 0.0
    %872 = vmatprep.subr.mxu0 0.0
    %873 = vmatpush2.msra.mxu0 0.0
    %874 = vmatprep.subr.mxu0 0.0
    %875 = vmatpush2.msra.mxu0 0.0
    %876 = vmatprep.subr.mxu0 0.0
    %877 = vmatpush2.msra.mxu0 0.0
    %878 = vmatprep.subr.mxu0 0.0
    %879 = vmatpush2.msra.mxu0 0.0
    %880 = vmatprep.subr.mxu0 0.0
    %881 = vmatpush2.msra.mxu0 0.0
    %882 = vmatprep.subr.mxu0 0.0
    %883 = vmatpush2.msra.mxu0 0.0
    %884 = vmatprep.subr.mxu0 0.0
    %885 = vmatpush2.msra.mxu0 0.0
    %886 = vmatprep.subr.mxu0 0.0
    %887 = vmatpush2.msra.mxu0 0.0
    %888 = vmatprep.subr.mxu0 0.0
    %889 = vmatpush2.msra.mxu0 0.0
    %890 = vmatprep.subr.mxu0 0.0
    %891 = vmatpush2.msra.mxu0 0.0
    %892 = vmatprep.mubr.f32.mxu0 0.0
    %893 = vmatmul.mubr.f32.gmra.mxu0 %v826
    %v894 = vpop.f32.mrf.mxu0
    %v895 = vadd.f32 0.0, %v894
    %v896 = vpop.f32.mrf.mxu0
    %897 = vdwg.mxu0
    %899 = vrot.lane.b32.xlu0 %v895, 16
    %v900 = vpop.permute.xlu0 %899
    %902 = vst.msk [vmem:[#allocation2 + $0x8] sm:$0xff] %vm566, %v900
    %v903 = vld [vmem:[#allocation2] sm:$0xff]
    %v904 = vld [vmem:[#allocation2 + $0x8] sm:$0xff]
    %v906 = vlaneseq
    %v907 = vshrl.u32 %v906, 7
    %v908 = vsub.s32 0, %v907
    %v909 = vrot.slane %v129, %v908
    %v912 = vsel %vm148, %v903, 0
    %v915 = vsel %vm148, %v904, 0
    %917 = vmatprep.subr.mxu0 0.0
    %918 = vmatpush1.msra.mxu0 0.0
    %919 = vmatprep.subr.mxu0 0.0
    %920 = vmatpush1.msra.mxu0 0.0
    %921 = vmatprep.subr.mxu0 0.0
    %922 = vmatpush1.msra.mxu0 0.0
    %923 = vmatprep.subr.mxu0 0.0
    %924 = vmatpush1.msra.mxu0 0.0
    %925 = vmatprep.subr.mxu0 0.0
    %926 = vmatpush1.msra.mxu0 0.0
    %927 = vmatprep.subr.mxu0 0.0
    %928 = vmatpush1.msra.mxu0 0.0
    %929 = vmatprep.subr.mxu0 0.0
    %930 = vmatpush1.msra.mxu0 0.0
    %931 = vmatprep.subr.mxu0 0.0
    %932 = vmatpush1.msra.mxu0 0.0
    %933 = vmatprep.subr.mxu0 0.0
    %934 = vmatpush1.msra.mxu0 0.0
    %935 = vmatprep.subr.mxu0 0.0
    %936 = vmatpush1.msra.mxu0 0.0
    %937 = vmatprep.subr.mxu0 0.0
    %938 = vmatpush1.msra.mxu0 0.0
    %939 = vmatprep.subr.mxu0 0.0
    %940 = vmatpush1.msra.mxu0 0.0
    %941 = vmatprep.subr.mxu0 0.0
    %942 = vmatpush1.msra.mxu0 %v128
    %943 = vmatprep.subr.mxu0 0.0
    %944 = vmatpush1.msra.mxu0 %v127
    %945 = vmatprep.subr.mxu0 0.0
    %946 = vmatpush1.msra.mxu0 %v126
    %947 = vmatprep.subr.mxu0 0.0
    %948 = vmatpush1.msra.mxu0 %v125
    %949 = vmatprep.subr.mxu0 0.0
    %950 = vmatpush2.msra.mxu0 0.0
    %951 = vmatprep.subr.mxu0 0.0
    %952 = vmatpush2.msra.mxu0 0.0
    %953 = vmatprep.subr.mxu0 0.0
    %954 = vmatpush2.msra.mxu0 0.0
    %955 = vmatprep.subr.mxu0 0.0
    %956 = vmatpush2.msra.mxu0 0.0
    %957 = vmatprep.subr.mxu0 0.0
    %958 = vmatpush2.msra.mxu0 0.0
    %959 = vmatprep.subr.mxu0 0.0
    %960 = vmatpush2.msra.mxu0 0.0
    %961 = vmatprep.subr.mxu0 0.0
    %962 = vmatpush2.msra.mxu0 0.0
    %963 = vmatprep.subr.mxu0 0.0
    %964 = vmatpush2.msra.mxu0 0.0
    %965 = vmatprep.subr.mxu0 0.0
    %966 = vmatpush2.msra.mxu0 0.0
    %967 = vmatprep.subr.mxu0 0.0
    %968 = vmatpush2.msra.mxu0 0.0
    %969 = vmatprep.subr.mxu0 0.0
    %970 = vmatpush2.msra.mxu0 0.0
    %971 = vmatprep.subr.mxu0 0.0
    %972 = vmatpush2.msra.mxu0 0.0
    %973 = vmatprep.subr.mxu0 0.0
    %974 = vmatpush2.msra.mxu0 0.0
    %975 = vmatprep.subr.mxu0 0.0
    %976 = vmatpush2.msra.mxu0 0.0
    %977 = vmatprep.subr.mxu0 0.0
    %978 = vmatpush2.msra.mxu0 0.0
    %979 = vmatprep.subr.mxu0 0.0
    %980 = vmatpush2.msra.mxu0 0.0
    %981 = vmatprep.mubr.f32.mxu0 0.0
    %982 = vmatmul.mubr.f32.gmra.mxu0 %v912
    %v983 = vpop.f32.mrf.mxu0
    %v984 = vadd.f32 %v909, %v983
    %v985 = vpop.f32.mrf.mxu0
    %986 = vmatprep.mubr.f32.mxu0 0.0
    %987 = vmatmul.mubr.f32.gmra.mxu0 %v915
    %v988 = vpop.f32.mrf.mxu0
    %v989 = vadd.f32 %v909, %v988
    %v990 = vpop.f32.mrf.mxu0
    %991 = vdwg.mxu0
    %v992 = vadd.f32 %v118, %v984
    %v993 = vadd.f32 %v119, %v989
    %v994 = vsel %vm148, %v992, 0.0
    %995 = vadd.xlane.f32.xlu0 %v994
    %v996 = vpop.xlane.xlu0 %995
    %v997 = vsel %vm148, %v993, 0.0
    %998 = vadd.xlane.f32.xlu0 %v997
    %v999 = vpop.xlane.xlu0 %998
    %v1000 = vrcp.pop 32.0
    %v1001 = vmul.f32 %v996, %v1000
    %v1002 = vmul.f32 %v999, %v1000
    %v1003 = vmul.f32 %v992, %v992
    %v1004 = vmul.f32 %v993, %v993
    %v1005 = vsel %vm148, %v1003, 0.0
    %1006 = vadd.xlane.f32.xlu0 %v1005
    %v1007 = vpop.xlane.xlu0 %1006
    %v1008 = vsel %vm148, %v1004, 0.0
    %1009 = vadd.xlane.f32.xlu0 %v1008
    %v1010 = vpop.xlane.xlu0 %1009
    %v1011 = vmul.f32 %v1007, %v1000
    %v1012 = vmul.f32 %v1010, %v1000
    %v1013 = vmul.f32 %v1001, %v1001
    %v1014 = vmul.f32 %v1002, %v1002
    %v1015 = vsub.f32 %v1011, %v1013
    %v1016 = vsub.f32 %v1012, %v1014
    %v1017 = vmax.f32 %v1015, 0.0
    %v1018 = vmax.f32 %v1016, 0.0
    %v1019 = vsub.f32 %v992, %v1001
    %v1020 = vsub.f32 %v993, %v1002
    %v1021 = vadd.f32 %v1017, 1e-05
    %v1022 = vadd.f32 %v1018, 1e-05
    %v1023 = vrsqrt.pop %v1021
    %v1024 = vrsqrt.pop %v1022
    %v1025 = vmul.f32 %v1019, %v1023
    %v1026 = vmul.f32 %v1020, %v1024
    %v1028 = vlaneseq
    %v1029 = vshrl.u32 %v1028, 7
    %v1030 = vsub.s32 0, %v1029
    %v1031 = vrot.slane %v130, %v1030
    %v1033 = vmul.f32 %v1025, %v1031
    %v1034 = vmul.f32 %v1026, %v1031
    %v1036 = vlaneseq
    %v1037 = vshrl.u32 %v1036, 7
    %v1038 = vsub.s32 0, %v1037
    %v1039 = vrot.slane %v131, %v1038
    %v1041 = vadd.f32 %v1033, %v1039
    %v1042 = vadd.f32 %v1034, %v1039
    %v1044 = vlaneseq
    %v1045 = vshrl.u32 %v1044, 7
    %v1046 = vsub.s32 0, %v1045
    %v1047 = vrot.slane %v136, %v1046
    %v1050 = vsel %vm148, %v1041, 0
    %v1053 = vsel %vm148, %v1042, 0
    %1055 = vmatprep.subr.mxu0 0.0
    %1056 = vmatpush1.msra.mxu0 0.0
    %1057 = vmatprep.subr.mxu0 0.0
    %1058 = vmatpush1.msra.mxu0 0.0
    %1059 = vmatprep.subr.mxu0 0.0
    %1060 = vmatpush1.msra.mxu0 0.0
    %1061 = vmatprep.subr.mxu0 0.0
    %1062 = vmatpush1.msra.mxu0 0.0
    %1063 = vmatprep.subr.mxu0 0.0
    %1064 = vmatpush1.msra.mxu0 0.0
    %1065 = vmatprep.subr.mxu0 0.0
    %1066 = vmatpush1.msra.mxu0 0.0
    %1067 = vmatprep.subr.mxu0 0.0
    %1068 = vmatpush1.msra.mxu0 0.0
    %1069 = vmatprep.subr.mxu0 0.0
    %1070 = vmatpush1.msra.mxu0 0.0
    %1071 = vmatprep.subr.mxu0 0.0
    %1072 = vmatpush1.msra.mxu0 0.0
    %1073 = vmatprep.subr.mxu0 0.0
    %1074 = vmatpush1.msra.mxu0 0.0
    %1075 = vmatprep.subr.mxu0 0.0
    %1076 = vmatpush1.msra.mxu0 0.0
    %1077 = vmatprep.subr.mxu0 0.0
    %1078 = vmatpush1.msra.mxu0 0.0
    %1079 = vmatprep.subr.mxu0 0.0
    %1080 = vmatpush1.msra.mxu0 %v135
    %1081 = vmatprep.subr.mxu0 0.0
    %1082 = vmatpush1.msra.mxu0 %v134
    %1083 = vmatprep.subr.mxu0 0.0
    %1084 = vmatpush1.msra.mxu0 %v133
    %1085 = vmatprep.subr.mxu0 0.0
    %1086 = vmatpush1.msra.mxu0 %v132
    %1087 = vmatprep.subr.mxu0 0.0
    %1088 = vmatpush2.msra.mxu0 0.0
    %1089 = vmatprep.subr.mxu0 0.0
    %1090 = vmatpush2.msra.mxu0 0.0
    %1091 = vmatprep.subr.mxu0 0.0
    %1092 = vmatpush2.msra.mxu0 0.0
    %1093 = vmatprep.subr.mxu0 0.0
    %1094 = vmatpush2.msra.mxu0 0.0
    %1095 = vmatprep.subr.mxu0 0.0
    %1096 = vmatpush2.msra.mxu0 0.0
    %1097 = vmatprep.subr.mxu0 0.0
    %1098 = vmatpush2.msra.mxu0 0.0
    %1099 = vmatprep.subr.mxu0 0.0
    %1100 = vmatpush2.msra.mxu0 0.0
    %1101 = vmatprep.subr.mxu0 0.0
    %1102 = vmatpush2.msra.mxu0 0.0
    %1103 = vmatprep.subr.mxu0 0.0
    %1104 = vmatpush2.msra.mxu0 0.0
    %1105 = vmatprep.subr.mxu0 0.0
    %1106 = vmatpush2.msra.mxu0 0.0
    %1107 = vmatprep.subr.mxu0 0.0
    %1108 = vmatpush2.msra.mxu0 0.0
    %1109 = vmatprep.subr.mxu0 0.0
    %1110 = vmatpush2.msra.mxu0 0.0
    %1111 = vmatprep.subr.mxu0 0.0
    %1112 = vmatpush2.msra.mxu0 0.0
    %1113 = vmatprep.subr.mxu0 0.0
    %1114 = vmatpush2.msra.mxu0 0.0
    %1115 = vmatprep.subr.mxu0 0.0
    %1116 = vmatpush2.msra.mxu0 0.0
    %1117 = vmatprep.subr.mxu0 0.0
    %1118 = vmatpush2.msra.mxu0 0.0
    %1119 = vmatprep.mubr.f32.mxu0 0.0
    %1120 = vmatmul.mubr.f32.gmra.mxu0 %v1050
    %v1121 = vpop.f32.mrf.mxu0
    %v1122 = vadd.f32 %v1047, %v1121
    %v1123 = vpop.f32.mrf.mxu0
    %1124 = vmatprep.mubr.f32.mxu0 0.0
    %1125 = vmatmul.mubr.f32.gmra.mxu0 %v1053
    %v1126 = vpop.f32.mrf.mxu0
    %v1127 = vadd.f32 %v1047, %v1126
    %v1128 = vpop.f32.mrf.mxu0
    %1129 = vdwg.mxu0
    %v1130 = vmax.f32 %v1122, 0.0
    %v1131 = vmax.f32 %v1127, 0.0
    %v1133 = vlaneseq
    %v1134 = vshrl.u32 %v1133, 7
    %v1135 = vsub.s32 0, %v1134
    %v1136 = vrot.slane %v141, %v1135
    %v1139 = vsel %vm148, %v1130, 0
    %v1142 = vsel %vm148, %v1131, 0
    %1144 = vmatprep.subr.mxu0 0.0
    %1145 = vmatpush1.msra.mxu0 0.0
    %1146 = vmatprep.subr.mxu0 0.0
    %1147 = vmatpush1.msra.mxu0 0.0
    %1148 = vmatprep.subr.mxu0 0.0
    %1149 = vmatpush1.msra.mxu0 0.0
    %1150 = vmatprep.subr.mxu0 0.0
    %1151 = vmatpush1.msra.mxu0 0.0
    %1152 = vmatprep.subr.mxu0 0.0
    %1153 = vmatpush1.msra.mxu0 0.0
    %1154 = vmatprep.subr.mxu0 0.0
    %1155 = vmatpush1.msra.mxu0 0.0
    %1156 = vmatprep.subr.mxu0 0.0
    %1157 = vmatpush1.msra.mxu0 0.0
    %1158 = vmatprep.subr.mxu0 0.0
    %1159 = vmatpush1.msra.mxu0 0.0
    %1160 = vmatprep.subr.mxu0 0.0
    %1161 = vmatpush1.msra.mxu0 0.0
    %1162 = vmatprep.subr.mxu0 0.0
    %1163 = vmatpush1.msra.mxu0 0.0
    %1164 = vmatprep.subr.mxu0 0.0
    %1165 = vmatpush1.msra.mxu0 0.0
    %1166 = vmatprep.subr.mxu0 0.0
    %1167 = vmatpush1.msra.mxu0 0.0
    %1168 = vmatprep.subr.mxu0 0.0
    %1169 = vmatpush1.msra.mxu0 %v140
    %1170 = vmatprep.subr.mxu0 0.0
    %1171 = vmatpush1.msra.mxu0 %v139
    %1172 = vmatprep.subr.mxu0 0.0
    %1173 = vmatpush1.msra.mxu0 %v138
    %1174 = vmatprep.subr.mxu0 0.0
    %1175 = vmatpush1.msra.mxu0 %v137
    %1176 = vmatprep.subr.mxu0 0.0
    %1177 = vmatpush2.msra.mxu0 0.0
    %1178 = vmatprep.subr.mxu0 0.0
    %1179 = vmatpush2.msra.mxu0 0.0
    %1180 = vmatprep.subr.mxu0 0.0
    %1181 = vmatpush2.msra.mxu0 0.0
    %1182 = vmatprep.subr.mxu0 0.0
    %1183 = vmatpush2.msra.mxu0 0.0
    %1184 = vmatprep.subr.mxu0 0.0
    %1185 = vmatpush2.msra.mxu0 0.0
    %1186 = vmatprep.subr.mxu0 0.0
    %1187 = vmatpush2.msra.mxu0 0.0
    %1188 = vmatprep.subr.mxu0 0.0
    %1189 = vmatpush2.msra.mxu0 0.0
    %1190 = vmatprep.subr.mxu0 0.0
    %1191 = vmatpush2.msra.mxu0 0.0
    %1192 = vmatprep.subr.mxu0 0.0
    %1193 = vmatpush2.msra.mxu0 0.0
    %1194 = vmatprep.subr.mxu0 0.0
    %1195 = vmatpush2.msra.mxu0 0.0
    %1196 = vmatprep.subr.mxu0 0.0
    %1197 = vmatpush2.msra.mxu0 0.0
    %1198 = vmatprep.subr.mxu0 0.0
    %1199 = vmatpush2.msra.mxu0 0.0
    %1200 = vmatprep.subr.mxu0 0.0
    %1201 = vmatpush2.msra.mxu0 0.0
    %1202 = vmatprep.subr.mxu0 0.0
    %1203 = vmatpush2.msra.mxu0 0.0
    %1204 = vmatprep.subr.mxu0 0.0
    %1205 = vmatpush2.msra.mxu0 0.0
    %1206 = vmatprep.subr.mxu0 0.0
    %1207 = vmatpush2.msra.mxu0 0.0
    %1208 = vmatprep.mubr.f32.mxu0 0.0
    %1209 = vmatmul.mubr.f32.gmra.mxu0 %v1139
    %v1210 = vpop.f32.mrf.mxu0
    %v1211 = vadd.f32 %v1136, %v1210
    %v1212 = vpop.f32.mrf.mxu0
    %1213 = vmatprep.mubr.f32.mxu0 0.0
    %1214 = vmatmul.mubr.f32.gmra.mxu0 %v1142
    %v1215 = vpop.f32.mrf.mxu0
    %v1216 = vadd.f32 %v1136, %v1215
    %v1217 = vpop.f32.mrf.mxu0
    %1218 = vdwg.mxu0
    %v1219 = vadd.f32 %v1041, %v1211
    %v1220 = vadd.f32 %v1042, %v1216
    %v1221 = vsel %vm148, %v1219, 0.0
    %1222 = vadd.xlane.f32.xlu0 %v1221
    %v1223 = vpop.xlane.xlu0 %1222
    %v1224 = vsel %vm148, %v1220, 0.0
    %1225 = vadd.xlane.f32.xlu0 %v1224
    %v1226 = vpop.xlane.xlu0 %1225
    %v1227 = vmul.f32 %v1223, %v1000
    %v1228 = vmul.f32 %v1226, %v1000
    %v1229 = vmul.f32 %v1219, %v1219
    %v1230 = vmul.f32 %v1220, %v1220
    %v1231 = vsel %vm148, %v1229, 0.0
    %1232 = vadd.xlane.f32.xlu0 %v1231
    %v1233 = vpop.xlane.xlu0 %1232
    %v1234 = vsel %vm148, %v1230, 0.0
    %1235 = vadd.xlane.f32.xlu0 %v1234
    %v1236 = vpop.xlane.xlu0 %1235
    %v1237 = vmul.f32 %v1233, %v1000
    %v1238 = vmul.f32 %v1236, %v1000
    %v1239 = vmul.f32 %v1227, %v1227
    %v1240 = vmul.f32 %v1228, %v1228
    %v1241 = vsub.f32 %v1237, %v1239
    %v1242 = vsub.f32 %v1238, %v1240
    %v1243 = vmax.f32 %v1241, 0.0
    %v1244 = vmax.f32 %v1242, 0.0
    %v1245 = vsub.f32 %v1219, %v1227
    %v1246 = vsub.f32 %v1220, %v1228
    %v1247 = vadd.f32 %v1243, 1e-05
    %v1248 = vadd.f32 %v1244, 1e-05
    %v1249 = vrsqrt.pop %v1247
    %v1250 = vrsqrt.pop %v1248
    %v1251 = vmul.f32 %v1245, %v1249
    %v1252 = vmul.f32 %v1246, %v1250
    %v1253 = vmul.f32 %v1251, %v1031
    %v1254 = vmul.f32 %v1252, %v1031
    %v1255 = vadd.f32 %v1253, %v1039
    %v1256 = vadd.f32 %v1254, %v1039
    %s1257 = scalar_lea.vmem %s1, 32
    %v1258 = vld [vmem:[%s1257] sm:$0xff]
    %v1259 = vld [vmem:[%s1257 + $0x8] sm:$0xff]
    %v1260 = vld [vmem:[%s1257 + $0x10] sm:$0xff]
    %v1261 = vld [vmem:[%s1257 + $0x18] sm:$0xff]
    %s1262 = scalar_lea.vmem %s2, 1
    %v1263 = vld [vmem:[%s1262] sm:$0x1]
    %s1264 = scalar_lea.vmem [#allocation4], 32
    %v1265 = vld [vmem:[%s1264] sm:$0xff]
    %v1266 = vld [vmem:[%s1264 + $0x8] sm:$0xff]
    %v1267 = vld [vmem:[%s1264 + $0x10] sm:$0xff]
    %v1268 = vld [vmem:[%s1264 + $0x18] sm:$0xff]
    %s1269 = scalar_lea.vmem %s4, 1
    %v1270 = vld [vmem:[%s1269] sm:$0x1]
    %s1271 = scalar_lea.vmem %s5, 1
    %v1272 = vld [vmem:[%s1271] sm:$0x1]
    %s1273 = scalar_lea.vmem %s6, 1
    %v1274 = vld [vmem:[%s1273] sm:$0x1]
    %s1275 = scalar_lea.vmem [#allocation7], 32
    %v1276 = vld [vmem:[%s1275] sm:$0xff]
    %v1277 = vld [vmem:[%s1275 + $0x8] sm:$0xff]
    %v1278 = vld [vmem:[%s1275 + $0x10] sm:$0xff]
    %v1279 = vld [vmem:[%s1275 + $0x18] sm:$0xff]
    %s1280 = scalar_lea.vmem %s8, 1
    %v1281 = vld [vmem:[%s1280] sm:$0x1]
    %s1282 = scalar_lea.vmem [#allocation9], 32
    %v1283 = vld [vmem:[%s1282] sm:$0xff]
    %v1284 = vld [vmem:[%s1282 + $0x8] sm:$0xff]
    %v1285 = vld [vmem:[%s1282 + $0x10] sm:$0xff]
    %v1286 = vld [vmem:[%s1282 + $0x18] sm:$0xff]
    %s1287 = scalar_lea.vmem [#allocation10], 1
    %v1288 = vld [vmem:[%s1287] sm:$0x1]
    %v1290 = vlaneseq
    %v1291 = vshrl.u32 %v1290, 7
    %v1292 = vsub.s32 0, %v1291
    %v1293 = vrot.slane %v1263, %v1292
    %v1296 = vsel %vm148, %v1255, 0
    %v1299 = vsel %vm148, %v1256, 0
    %1301 = vmatprep.subr.mxu0 0.0
    %1302 = vmatpush1.msra.mxu0 0.0
    %1303 = vmatprep.subr.mxu0 0.0
    %1304 = vmatpush1.msra.mxu0 0.0
    %1305 = vmatprep.subr.mxu0 0.0
    %1306 = vmatpush1.msra.mxu0 0.0
    %1307 = vmatprep.subr.mxu0 0.0
    %1308 = vmatpush1.msra.mxu0 0.0
    %1309 = vmatprep.subr.mxu0 0.0
    %1310 = vmatpush1.msra.mxu0 0.0
    %1311 = vmatprep.subr.mxu0 0.0
    %1312 = vmatpush1.msra.mxu0 0.0
    %1313 = vmatprep.subr.mxu0 0.0
    %1314 = vmatpush1.msra.mxu0 0.0
    %1315 = vmatprep.subr.mxu0 0.0
    %1316 = vmatpush1.msra.mxu0 0.0
    %1317 = vmatprep.subr.mxu0 0.0
    %1318 = vmatpush1.msra.mxu0 0.0
    %1319 = vmatprep.subr.mxu0 0.0
    %1320 = vmatpush1.msra.mxu0 0.0
    %1321 = vmatprep.subr.mxu0 0.0
    %1322 = vmatpush1.msra.mxu0 0.0
    %1323 = vmatprep.subr.mxu0 0.0
    %1324 = vmatpush1.msra.mxu0 0.0
    %1325 = vmatprep.subr.mxu0 0.0
    %1326 = vmatpush1.msra.mxu0 %v1261
    %1327 = vmatprep.subr.mxu0 0.0
    %1328 = vmatpush1.msra.mxu0 %v1260
    %1329 = vmatprep.subr.mxu0 0.0
    %1330 = vmatpush1.msra.mxu0 %v1259
    %1331 = vmatprep.subr.mxu0 0.0
    %1332 = vmatpush1.msra.mxu0 %v1258
    %1333 = vmatprep.subr.mxu0 0.0
    %1334 = vmatpush2.msra.mxu0 0.0
    %1335 = vmatprep.subr.mxu0 0.0
    %1336 = vmatpush2.msra.mxu0 0.0
    %1337 = vmatprep.subr.mxu0 0.0
    %1338 = vmatpush2.msra.mxu0 0.0
    %1339 = vmatprep.subr.mxu0 0.0
    %1340 = vmatpush2.msra.mxu0 0.0
    %1341 = vmatprep.subr.mxu0 0.0
    %1342 = vmatpush2.msra.mxu0 0.0
    %1343 = vmatprep.subr.mxu0 0.0
    %1344 = vmatpush2.msra.mxu0 0.0
    %1345 = vmatprep.subr.mxu0 0.0
    %1346 = vmatpush2.msra.mxu0 0.0
    %1347 = vmatprep.subr.mxu0 0.0
    %1348 = vmatpush2.msra.mxu0 0.0
    %1349 = vmatprep.subr.mxu0 0.0
    %1350 = vmatpush2.msra.mxu0 0.0
    %1351 = vmatprep.subr.mxu0 0.0
    %1352 = vmatpush2.msra.mxu0 0.0
    %1353 = vmatprep.subr.mxu0 0.0
    %1354 = vmatpush2.msra.mxu0 0.0
    %1355 = vmatprep.subr.mxu0 0.0
    %1356 = vmatpush2.msra.mxu0 0.0
    %1357 = vmatprep.subr.mxu0 0.0
    %1358 = vmatpush2.msra.mxu0 0.0
    %1359 = vmatprep.subr.mxu0 0.0
    %1360 = vmatpush2.msra.mxu0 0.0
    %1361 = vmatprep.subr.mxu0 0.0
    %1362 = vmatpush2.msra.mxu0 0.0
    %1363 = vmatprep.subr.mxu0 0.0
    %1364 = vmatpush2.msra.mxu0 0.0
    %1365 = vmatprep.mubr.f32.mxu0 0.0
    %1366 = vmatmul.mubr.f32.gmra.mxu0 %v1296
    %v1367 = vpop.f32.mrf.mxu0
    %v1368 = vadd.f32 %v1293, %v1367
    %v1369 = vpop.f32.mrf.mxu0
    %1370 = vmatprep.mubr.f32.mxu0 0.0
    %1371 = vmatmul.mubr.f32.gmra.mxu0 %v1299
    %v1372 = vpop.f32.mrf.mxu0
    %v1373 = vadd.f32 %v1293, %v1372
    %v1374 = vpop.f32.mrf.mxu0
    %1375 = vdwg.mxu0
    %1377 = vrot.lane.b32.xlu0 %v1368, 96
    %v1378 = vpop.permute.xlu0 %1377
    %v1379 = vsel %vm233, %v1368, 0
    %v1381 = vsel %vm233, %v1378, 0
    %1383 = vmatprep.subr.mxu0 0.0
    %1384 = vmatpush1.xpose.msra.mxu0 0.0
    %1385 = vmatprep.subr.mxu0 0.0
    %1386 = vmatpush1.xpose.msra.mxu0 0.0
    %1387 = vmatprep.subr.mxu0 0.0
    %1388 = vmatpush1.xpose.msra.mxu0 0.0
    %1389 = vmatprep.subr.mxu0 0.0
    %1390 = vmatpush1.xpose.msra.mxu0 0.0
    %1391 = vmatprep.subr.mxu0 0.0
    %1392 = vmatpush1.xpose.msra.mxu0 0.0
    %1393 = vmatprep.subr.mxu0 0.0
    %1394 = vmatpush1.xpose.msra.mxu0 0.0
    %1395 = vmatprep.subr.mxu0 0.0
    %1396 = vmatpush1.xpose.msra.mxu0 0.0
    %1397 = vmatprep.subr.mxu0 0.0
    %1398 = vmatpush1.xpose.msra.mxu0 0.0
    %1399 = vmatprep.subr.mxu0 0.0
    %1400 = vmatpush1.xpose.msra.mxu0 0.0
    %1401 = vmatprep.subr.mxu0 0.0
    %1402 = vmatpush1.xpose.msra.mxu0 0.0
    %1403 = vmatprep.subr.mxu0 0.0
    %1404 = vmatpush1.xpose.msra.mxu0 0.0
    %1405 = vmatprep.subr.mxu0 0.0
    %1406 = vmatpush1.xpose.msra.mxu0 0.0
    %1407 = vmatprep.subr.mxu0 0.0
    %1408 = vmatpush1.xpose.msra.mxu0 0.0
    %1409 = vmatprep.subr.mxu0 0.0
    %1410 = vmatpush1.xpose.msra.mxu0 0.0
    %1411 = vmatprep.subr.mxu0 0.0
    %1412 = vmatpush1.xpose.msra.mxu0 0.0
    %1413 = vmatprep.subr.mxu0 0.0
    %1414 = vmatpush1.xpose.msra.mxu0 %v1381
    %1415 = vmatprep.subr.mxu0 0.0
    %1416 = vmatpush2.xpose.msra.mxu0 0.0
    %1417 = vmatprep.subr.mxu0 0.0
    %1418 = vmatpush2.xpose.msra.mxu0 0.0
    %1419 = vmatprep.subr.mxu0 0.0
    %1420 = vmatpush2.xpose.msra.mxu0 0.0
    %1421 = vmatprep.subr.mxu0 0.0
    %1422 = vmatpush2.xpose.msra.mxu0 0.0
    %1423 = vmatprep.subr.mxu0 0.0
    %1424 = vmatpush2.xpose.msra.mxu0 0.0
    %1425 = vmatprep.subr.mxu0 0.0
    %1426 = vmatpush2.xpose.msra.mxu0 0.0
    %1427 = vmatprep.subr.mxu0 0.0
    %1428 = vmatpush2.xpose.msra.mxu0 0.0
    %1429 = vmatprep.subr.mxu0 0.0
    %1430 = vmatpush2.xpose.msra.mxu0 0.0
    %1431 = vmatprep.subr.mxu0 0.0
    %1432 = vmatpush2.xpose.msra.mxu0 0.0
    %1433 = vmatprep.subr.mxu0 0.0
    %1434 = vmatpush2.xpose.msra.mxu0 0.0
    %1435 = vmatprep.subr.mxu0 0.0
    %1436 = vmatpush2.xpose.msra.mxu0 0.0
    %1437 = vmatprep.subr.mxu0 0.0
    %1438 = vmatpush2.xpose.msra.mxu0 0.0
    %1439 = vmatprep.subr.mxu0 0.0
    %1440 = vmatpush2.xpose.msra.mxu0 0.0
    %1441 = vmatprep.subr.mxu0 0.0
    %1442 = vmatpush2.xpose.msra.mxu0 0.0
    %1443 = vmatprep.subr.mxu0 0.0
    %1444 = vmatpush2.xpose.msra.mxu0 0.0
    %1445 = vmatprep.subr.mxu0 0.0
    %1446 = vmatpush2.xpose.msra.mxu0 0.0
    %1447 = vmatprep.mubr.f32.mxu0 0.0
    %1448 = vmatmul.mubr.f32.gmra.mxu0 %v1379
    %v1449 = vpop.f32.mrf.mxu0
    %v1450 = vadd.f32 0.0, %v1449
    %v1451 = vpop.f32.mrf.mxu0
    %1452 = vdwg.mxu0
    %v1453 = vsel %vm308, %v1450, -inf
    %1454 = vmax.xlane.f32.xlu0 %v1453
    %v1455 = vpop.xlane.xlu0 %1454
    %v1456 = vsub.f32 %v1450, %v1455
    %v1457 = vmul.f32 %v1456, 1.442695
    %v1458 = vpow.pop %v1457
    %v1459 = vsel %vm308, %v1458, 0.0
    %1460 = vadd.xlane.f32.xlu0 %v1459
    %v1461 = vpop.xlane.xlu0 %1460
    %v1462 = vrcp.pop %v1461
    %v1463 = vmul.f32 %v1458, %v1462
    %1464 = vrot.lane.b32.xlu0 %v1368, 64
    %v1465 = vpop.permute.xlu0 %1464
    %v1468 = vsel %vm308, %v1463, 0
    %1470 = vmatprep.subr.mxu0 0.0
    %1471 = vmatpush1.msra.mxu0 0.0
    %1472 = vmatprep.subr.mxu0 0.0
    %1473 = vmatpush1.msra.mxu0 0.0
    %1474 = vmatprep.subr.mxu0 0.0
    %1475 = vmatpush1.msra.mxu0 0.0
    %1476 = vmatprep.subr.mxu0 0.0
    %1477 = vmatpush1.msra.mxu0 0.0
    %1478 = vmatprep.subr.mxu0 0.0
    %1479 = vmatpush1.msra.mxu0 0.0
    %1480 = vmatprep.subr.mxu0 0.0
    %1481 = vmatpush1.msra.mxu0 0.0
    %1482 = vmatprep.subr.mxu0 0.0
    %1483 = vmatpush1.msra.mxu0 0.0
    %1484 = vmatprep.subr.mxu0 0.0
    %1485 = vmatpush1.msra.mxu0 0.0
    %1486 = vmatprep.subr.mxu0 0.0
    %1487 = vmatpush1.msra.mxu0 0.0
    %1488 = vmatprep.subr.mxu0 0.0
    %1489 = vmatpush1.msra.mxu0 0.0
    %1490 = vmatprep.subr.mxu0 0.0
    %1491 = vmatpush1.msra.mxu0 0.0
    %1492 = vmatprep.subr.mxu0 0.0
    %1493 = vmatpush1.msra.mxu0 0.0
    %1494 = vmatprep.subr.mxu0 0.0
    %1495 = vmatpush1.msra.mxu0 0.0
    %1496 = vmatprep.subr.mxu0 0.0
    %1497 = vmatpush1.msra.mxu0 0.0
    %1498 = vmatprep.subr.mxu0 0.0
    %1499 = vmatpush1.msra.mxu0 0.0
    %1500 = vmatprep.subr.mxu0 0.0
    %1501 = vmatpush1.msra.mxu0 %v1465
    %1502 = vmatprep.subr.mxu0 0.0
    %1503 = vmatpush2.msra.mxu0 0.0
    %1504 = vmatprep.subr.mxu0 0.0
    %1505 = vmatpush2.msra.mxu0 0.0
    %1506 = vmatprep.subr.mxu0 0.0
    %1507 = vmatpush2.msra.mxu0 0.0
    %1508 = vmatprep.subr.mxu0 0.0
    %1509 = vmatpush2.msra.mxu0 0.0
    %1510 = vmatprep.subr.mxu0 0.0
    %1511 = vmatpush2.msra.mxu0 0.0
    %1512 = vmatprep.subr.mxu0 0.0
    %1513 = vmatpush2.msra.mxu0 0.0
    %1514 = vmatprep.subr.mxu0 0.0
    %1515 = vmatpush2.msra.mxu0 0.0
    %1516 = vmatprep.subr.mxu0 0.0
    %1517 = vmatpush2.msra.mxu0 0.0
    %1518 = vmatprep.subr.mxu0 0.0
    %1519 = vmatpush2.msra.mxu0 0.0
    %1520 = vmatprep.subr.mxu0 0.0
    %1521 = vmatpush2.msra.mxu0 0.0
    %1522 = vmatprep.subr.mxu0 0.0
    %1523 = vmatpush2.msra.mxu0 0.0
    %1524 = vmatprep.subr.mxu0 0.0
    %1525 = vmatpush2.msra.mxu0 0.0
    %1526 = vmatprep.subr.mxu0 0.0
    %1527 = vmatpush2.msra.mxu0 0.0
    %1528 = vmatprep.subr.mxu0 0.0
    %1529 = vmatpush2.msra.mxu0 0.0
    %1530 = vmatprep.subr.mxu0 0.0
    %1531 = vmatpush2.msra.mxu0 0.0
    %1532 = vmatprep.subr.mxu0 0.0
    %1533 = vmatpush2.msra.mxu0 0.0
    %1534 = vmatprep.mubr.f32.mxu0 0.0
    %1535 = vmatmul.mubr.f32.gmra.mxu0 %v1468
    %v1536 = vpop.f32.mrf.mxu0
    %v1537 = vadd.f32 0.0, %v1536
    %v1538 = vpop.f32.mrf.mxu0
    %1539 = vdwg.mxu0
    %1540 = vst.msk [vmem:[#allocation2] sm:$0xff] %vm233, %v1537
    %1541 = vrot.lane.b32.xlu0 %v1368, 112
    %v1542 = vpop.permute.xlu0 %1541
    %1543 = vrot.lane.b32.xlu0 %v1368, 80
    %v1544 = vpop.permute.xlu0 %1543
    %v1545 = vsel %vm233, %v1542, 0
    %v1547 = vsel %vm233, %v1544, 0
    %1549 = vmatprep.subr.mxu0 0.0
    %1550 = vmatpush1.xpose.msra.mxu0 0.0
    %1551 = vmatprep.subr.mxu0 0.0
    %1552 = vmatpush1.xpose.msra.mxu0 0.0
    %1553 = vmatprep.subr.mxu0 0.0
    %1554 = vmatpush1.xpose.msra.mxu0 0.0
    %1555 = vmatprep.subr.mxu0 0.0
    %1556 = vmatpush1.xpose.msra.mxu0 0.0
    %1557 = vmatprep.subr.mxu0 0.0
    %1558 = vmatpush1.xpose.msra.mxu0 0.0
    %1559 = vmatprep.subr.mxu0 0.0
    %1560 = vmatpush1.xpose.msra.mxu0 0.0
    %1561 = vmatprep.subr.mxu0 0.0
    %1562 = vmatpush1.xpose.msra.mxu0 0.0
    %1563 = vmatprep.subr.mxu0 0.0
    %1564 = vmatpush1.xpose.msra.mxu0 0.0
    %1565 = vmatprep.subr.mxu0 0.0
    %1566 = vmatpush1.xpose.msra.mxu0 0.0
    %1567 = vmatprep.subr.mxu0 0.0
    %1568 = vmatpush1.xpose.msra.mxu0 0.0
    %1569 = vmatprep.subr.mxu0 0.0
    %1570 = vmatpush1.xpose.msra.mxu0 0.0
    %1571 = vmatprep.subr.mxu0 0.0
    %1572 = vmatpush1.xpose.msra.mxu0 0.0
    %1573 = vmatprep.subr.mxu0 0.0
    %1574 = vmatpush1.xpose.msra.mxu0 0.0
    %1575 = vmatprep.subr.mxu0 0.0
    %1576 = vmatpush1.xpose.msra.mxu0 0.0
    %1577 = vmatprep.subr.mxu0 0.0
    %1578 = vmatpush1.xpose.msra.mxu0 0.0
    %1579 = vmatprep.subr.mxu0 0.0
    %1580 = vmatpush1.xpose.msra.mxu0 %v1547
    %1581 = vmatprep.subr.mxu0 0.0
    %1582 = vmatpush2.xpose.msra.mxu0 0.0
    %1583 = vmatprep.subr.mxu0 0.0
    %1584 = vmatpush2.xpose.msra.mxu0 0.0
    %1585 = vmatprep.subr.mxu0 0.0
    %1586 = vmatpush2.xpose.msra.mxu0 0.0
    %1587 = vmatprep.subr.mxu0 0.0
    %1588 = vmatpush2.xpose.msra.mxu0 0.0
    %1589 = vmatprep.subr.mxu0 0.0
    %1590 = vmatpush2.xpose.msra.mxu0 0.0
    %1591 = vmatprep.subr.mxu0 0.0
    %1592 = vmatpush2.xpose.msra.mxu0 0.0
    %1593 = vmatprep.subr.mxu0 0.0
    %1594 = vmatpush2.xpose.msra.mxu0 0.0
    %1595 = vmatprep.subr.mxu0 0.0
    %1596 = vmatpush2.xpose.msra.mxu0 0.0
    %1597 = vmatprep.subr.mxu0 0.0
    %1598 = vmatpush2.xpose.msra.mxu0 0.0
    %1599 = vmatprep.subr.mxu0 0.0
    %1600 = vmatpush2.xpose.msra.mxu0 0.0
    %1601 = vmatprep.subr.mxu0 0.0
    %1602 = vmatpush2.xpose.msra.mxu0 0.0
    %1603 = vmatprep.subr.mxu0 0.0
    %1604 = vmatpush2.xpose.msra.mxu0 0.0
    %1605 = vmatprep.subr.mxu0 0.0
    %1606 = vmatpush2.xpose.msra.mxu0 0.0
    %1607 = vmatprep.subr.mxu0 0.0
    %1608 = vmatpush2.xpose.msra.mxu0 0.0
    %1609 = vmatprep.subr.mxu0 0.0
    %1610 = vmatpush2.xpose.msra.mxu0 0.0
    %1611 = vmatprep.subr.mxu0 0.0
    %1612 = vmatpush2.xpose.msra.mxu0 0.0
    %1613 = vmatprep.mubr.f32.mxu0 0.0
    %1614 = vmatmul.mubr.f32.gmra.mxu0 %v1545
    %v1615 = vpop.f32.mrf.mxu0
    %v1616 = vadd.f32 0.0, %v1615
    %v1617 = vpop.f32.mrf.mxu0
    %1618 = vdwg.mxu0
    %v1619 = vsel %vm308, %v1616, -inf
    %1620 = vmax.xlane.f32.xlu0 %v1619
    %v1621 = vpop.xlane.xlu0 %1620
    %v1622 = vsub.f32 %v1616, %v1621
    %v1623 = vmul.f32 %v1622, 1.442695
    %v1624 = vpow.pop %v1623
    %v1625 = vsel %vm308, %v1624, 0.0
    %1626 = vadd.xlane.f32.xlu0 %v1625
    %v1627 = vpop.xlane.xlu0 %1626
    %v1628 = vrcp.pop %v1627
    %v1629 = vmul.f32 %v1624, %v1628
    %1630 = vrot.lane.b32.xlu0 %v1368, 48
    %v1631 = vpop.permute.xlu0 %1630
    %v1634 = vsel %vm308, %v1629, 0
    %1636 = vmatprep.subr.mxu0 0.0
    %1637 = vmatpush1.msra.mxu0 0.0
    %1638 = vmatprep.subr.mxu0 0.0
    %1639 = vmatpush1.msra.mxu0 0.0
    %1640 = vmatprep.subr.mxu0 0.0
    %1641 = vmatpush1.msra.mxu0 0.0
    %1642 = vmatprep.subr.mxu0 0.0
    %1643 = vmatpush1.msra.mxu0 0.0
    %1644 = vmatprep.subr.mxu0 0.0
    %1645 = vmatpush1.msra.mxu0 0.0
    %1646 = vmatprep.subr.mxu0 0.0
    %1647 = vmatpush1.msra.mxu0 0.0
    %1648 = vmatprep.subr.mxu0 0.0
    %1649 = vmatpush1.msra.mxu0 0.0
    %1650 = vmatprep.subr.mxu0 0.0
    %1651 = vmatpush1.msra.mxu0 0.0
    %1652 = vmatprep.subr.mxu0 0.0
    %1653 = vmatpush1.msra.mxu0 0.0
    %1654 = vmatprep.subr.mxu0 0.0
    %1655 = vmatpush1.msra.mxu0 0.0
    %1656 = vmatprep.subr.mxu0 0.0
    %1657 = vmatpush1.msra.mxu0 0.0
    %1658 = vmatprep.subr.mxu0 0.0
    %1659 = vmatpush1.msra.mxu0 0.0
    %1660 = vmatprep.subr.mxu0 0.0
    %1661 = vmatpush1.msra.mxu0 0.0
    %1662 = vmatprep.subr.mxu0 0.0
    %1663 = vmatpush1.msra.mxu0 0.0
    %1664 = vmatprep.subr.mxu0 0.0
    %1665 = vmatpush1.msra.mxu0 0.0
    %1666 = vmatprep.subr.mxu0 0.0
    %1667 = vmatpush1.msra.mxu0 %v1631
    %1668 = vmatprep.subr.mxu0 0.0
    %1669 = vmatpush2.msra.mxu0 0.0
    %1670 = vmatprep.subr.mxu0 0.0
    %1671 = vmatpush2.msra.mxu0 0.0
    %1672 = vmatprep.subr.mxu0 0.0
    %1673 = vmatpush2.msra.mxu0 0.0
    %1674 = vmatprep.subr.mxu0 0.0
    %1675 = vmatpush2.msra.mxu0 0.0
    %1676 = vmatprep.subr.mxu0 0.0
    %1677 = vmatpush2.msra.mxu0 0.0
    %1678 = vmatprep.subr.mxu0 0.0
    %1679 = vmatpush2.msra.mxu0 0.0
    %1680 = vmatprep.subr.mxu0 0.0
    %1681 = vmatpush2.msra.mxu0 0.0
    %1682 = vmatprep.subr.mxu0 0.0
    %1683 = vmatpush2.msra.mxu0 0.0
    %1684 = vmatprep.subr.mxu0 0.0
    %1685 = vmatpush2.msra.mxu0 0.0
    %1686 = vmatprep.subr.mxu0 0.0
    %1687 = vmatpush2.msra.mxu0 0.0
    %1688 = vmatprep.subr.mxu0 0.0
    %1689 = vmatpush2.msra.mxu0 0.0
    %1690 = vmatprep.subr.mxu0 0.0
    %1691 = vmatpush2.msra.mxu0 0.0
    %1692 = vmatprep.subr.mxu0 0.0
    %1693 = vmatpush2.msra.mxu0 0.0
    %1694 = vmatprep.subr.mxu0 0.0
    %1695 = vmatpush2.msra.mxu0 0.0
    %1696 = vmatprep.subr.mxu0 0.0
    %1697 = vmatpush2.msra.mxu0 0.0
    %1698 = vmatprep.subr.mxu0 0.0
    %1699 = vmatpush2.msra.mxu0 0.0
    %1700 = vmatprep.mubr.f32.mxu0 0.0
    %1701 = vmatmul.mubr.f32.gmra.mxu0 %v1634
    %v1702 = vpop.f32.mrf.mxu0
    %v1703 = vadd.f32 0.0, %v1702
    %v1704 = vpop.f32.mrf.mxu0
    %1705 = vdwg.mxu0
    %1707 = vrot.lane.b32.xlu0 %v1703, 16
    %v1708 = vpop.permute.xlu0 %1707
    %1710 = vst.msk [vmem:[#allocation2] sm:$0xff] %vm566, %v1708
    %1712 = vrot.lane.b32.xlu0 %v1373, 96
    %v1713 = vpop.permute.xlu0 %1712
    %v1714 = vsel %vm233, %v1373, 0
    %v1716 = vsel %vm233, %v1713, 0
    %1718 = vmatprep.subr.mxu0 0.0
    %1719 = vmatpush1.xpose.msra.mxu0 0.0
    %1720 = vmatprep.subr.mxu0 0.0
    %1721 = vmatpush1.xpose.msra.mxu0 0.0
    %1722 = vmatprep.subr.mxu0 0.0
    %1723 = vmatpush1.xpose.msra.mxu0 0.0
    %1724 = vmatprep.subr.mxu0 0.0
    %1725 = vmatpush1.xpose.msra.mxu0 0.0
    %1726 = vmatprep.subr.mxu0 0.0
    %1727 = vmatpush1.xpose.msra.mxu0 0.0
    %1728 = vmatprep.subr.mxu0 0.0
    %1729 = vmatpush1.xpose.msra.mxu0 0.0
    %1730 = vmatprep.subr.mxu0 0.0
    %1731 = vmatpush1.xpose.msra.mxu0 0.0
    %1732 = vmatprep.subr.mxu0 0.0
    %1733 = vmatpush1.xpose.msra.mxu0 0.0
    %1734 = vmatprep.subr.mxu0 0.0
    %1735 = vmatpush1.xpose.msra.mxu0 0.0
    %1736 = vmatprep.subr.mxu0 0.0
    %1737 = vmatpush1.xpose.msra.mxu0 0.0
    %1738 = vmatprep.subr.mxu0 0.0
    %1739 = vmatpush1.xpose.msra.mxu0 0.0
    %1740 = vmatprep.subr.mxu0 0.0
    %1741 = vmatpush1.xpose.msra.mxu0 0.0
    %1742 = vmatprep.subr.mxu0 0.0
    %1743 = vmatpush1.xpose.msra.mxu0 0.0
    %1744 = vmatprep.subr.mxu0 0.0
    %1745 = vmatpush1.xpose.msra.mxu0 0.0
    %1746 = vmatprep.subr.mxu0 0.0
    %1747 = vmatpush1.xpose.msra.mxu0 0.0
    %1748 = vmatprep.subr.mxu0 0.0
    %1749 = vmatpush1.xpose.msra.mxu0 %v1716
    %1750 = vmatprep.subr.mxu0 0.0
    %1751 = vmatpush2.xpose.msra.mxu0 0.0
    %1752 = vmatprep.subr.mxu0 0.0
    %1753 = vmatpush2.xpose.msra.mxu0 0.0
    %1754 = vmatprep.subr.mxu0 0.0
    %1755 = vmatpush2.xpose.msra.mxu0 0.0
    %1756 = vmatprep.subr.mxu0 0.0
    %1757 = vmatpush2.xpose.msra.mxu0 0.0
    %1758 = vmatprep.subr.mxu0 0.0
    %1759 = vmatpush2.xpose.msra.mxu0 0.0
    %1760 = vmatprep.subr.mxu0 0.0
    %1761 = vmatpush2.xpose.msra.mxu0 0.0
    %1762 = vmatprep.subr.mxu0 0.0
    %1763 = vmatpush2.xpose.msra.mxu0 0.0
    %1764 = vmatprep.subr.mxu0 0.0
    %1765 = vmatpush2.xpose.msra.mxu0 0.0
    %1766 = vmatprep.subr.mxu0 0.0
    %1767 = vmatpush2.xpose.msra.mxu0 0.0
    %1768 = vmatprep.subr.mxu0 0.0
    %1769 = vmatpush2.xpose.msra.mxu0 0.0
    %1770 = vmatprep.subr.mxu0 0.0
    %1771 = vmatpush2.xpose.msra.mxu0 0.0
    %1772 = vmatprep.subr.mxu0 0.0
    %1773 = vmatpush2.xpose.msra.mxu0 0.0
    %1774 = vmatprep.subr.mxu0 0.0
    %1775 = vmatpush2.xpose.msra.mxu0 0.0
    %1776 = vmatprep.subr.mxu0 0.0
    %1777 = vmatpush2.xpose.msra.mxu0 0.0
    %1778 = vmatprep.subr.mxu0 0.0
    %1779 = vmatpush2.xpose.msra.mxu0 0.0
    %1780 = vmatprep.subr.mxu0 0.0
    %1781 = vmatpush2.xpose.msra.mxu0 0.0
    %1782 = vmatprep.mubr.f32.mxu0 0.0
    %1783 = vmatmul.mubr.f32.gmra.mxu0 %v1714
    %v1784 = vpop.f32.mrf.mxu0
    %v1785 = vadd.f32 0.0, %v1784
    %v1786 = vpop.f32.mrf.mxu0
    %1787 = vdwg.mxu0
    %v1788 = vsel %vm308, %v1785, -inf
    %1789 = vmax.xlane.f32.xlu0 %v1788
    %v1790 = vpop.xlane.xlu0 %1789
    %v1791 = vsub.f32 %v1785, %v1790
    %v1792 = vmul.f32 %v1791, 1.442695
    %v1793 = vpow.pop %v1792
    %v1794 = vsel %vm308, %v1793, 0.0
    %1795 = vadd.xlane.f32.xlu0 %v1794
    %v1796 = vpop.xlane.xlu0 %1795
    %v1797 = vrcp.pop %v1796
    %v1798 = vmul.f32 %v1793, %v1797
    %1799 = vrot.lane.b32.xlu0 %v1373, 64
    %v1800 = vpop.permute.xlu0 %1799
    %v1803 = vsel %vm308, %v1798, 0
    %1805 = vmatprep.subr.mxu0 0.0
    %1806 = vmatpush1.msra.mxu0 0.0
    %1807 = vmatprep.subr.mxu0 0.0
    %1808 = vmatpush1.msra.mxu0 0.0
    %1809 = vmatprep.subr.mxu0 0.0
    %1810 = vmatpush1.msra.mxu0 0.0
    %1811 = vmatprep.subr.mxu0 0.0
    %1812 = vmatpush1.msra.mxu0 0.0
    %1813 = vmatprep.subr.mxu0 0.0
    %1814 = vmatpush1.msra.mxu0 0.0
    %1815 = vmatprep.subr.mxu0 0.0
    %1816 = vmatpush1.msra.mxu0 0.0
    %1817 = vmatprep.subr.mxu0 0.0
    %1818 = vmatpush1.msra.mxu0 0.0
    %1819 = vmatprep.subr.mxu0 0.0
    %1820 = vmatpush1.msra.mxu0 0.0
    %1821 = vmatprep.subr.mxu0 0.0
    %1822 = vmatpush1.msra.mxu0 0.0
    %1823 = vmatprep.subr.mxu0 0.0
    %1824 = vmatpush1.msra.mxu0 0.0
    %1825 = vmatprep.subr.mxu0 0.0
    %1826 = vmatpush1.msra.mxu0 0.0
    %1827 = vmatprep.subr.mxu0 0.0
    %1828 = vmatpush1.msra.mxu0 0.0
    %1829 = vmatprep.subr.mxu0 0.0
    %1830 = vmatpush1.msra.mxu0 0.0
    %1831 = vmatprep.subr.mxu0 0.0
    %1832 = vmatpush1.msra.mxu0 0.0
    %1833 = vmatprep.subr.mxu0 0.0
    %1834 = vmatpush1.msra.mxu0 0.0
    %1835 = vmatprep.subr.mxu0 0.0
    %1836 = vmatpush1.msra.mxu0 %v1800
    %1837 = vmatprep.subr.mxu0 0.0
    %1838 = vmatpush2.msra.mxu0 0.0
    %1839 = vmatprep.subr.mxu0 0.0
    %1840 = vmatpush2.msra.mxu0 0.0
    %1841 = vmatprep.subr.mxu0 0.0
    %1842 = vmatpush2.msra.mxu0 0.0
    %1843 = vmatprep.subr.mxu0 0.0
    %1844 = vmatpush2.msra.mxu0 0.0
    %1845 = vmatprep.subr.mxu0 0.0
    %1846 = vmatpush2.msra.mxu0 0.0
    %1847 = vmatprep.subr.mxu0 0.0
    %1848 = vmatpush2.msra.mxu0 0.0
    %1849 = vmatprep.subr.mxu0 0.0
    %1850 = vmatpush2.msra.mxu0 0.0
    %1851 = vmatprep.subr.mxu0 0.0
    %1852 = vmatpush2.msra.mxu0 0.0
    %1853 = vmatprep.subr.mxu0 0.0
    %1854 = vmatpush2.msra.mxu0 0.0
    %1855 = vmatprep.subr.mxu0 0.0
    %1856 = vmatpush2.msra.mxu0 0.0
    %1857 = vmatprep.subr.mxu0 0.0
    %1858 = vmatpush2.msra.mxu0 0.0
    %1859 = vmatprep.subr.mxu0 0.0
    %1860 = vmatpush2.msra.mxu0 0.0
    %1861 = vmatprep.subr.mxu0 0.0
    %1862 = vmatpush2.msra.mxu0 0.0
    %1863 = vmatprep.subr.mxu0 0.0
    %1864 = vmatpush2.msra.mxu0 0.0
    %1865 = vmatprep.subr.mxu0 0.0
    %1866 = vmatpush2.msra.mxu0 0.0
    %1867 = vmatprep.subr.mxu0 0.0
    %1868 = vmatpush2.msra.mxu0 0.0
    %1869 = vmatprep.mubr.f32.mxu0 0.0
    %1870 = vmatmul.mubr.f32.gmra.mxu0 %v1803
    %v1871 = vpop.f32.mrf.mxu0
    %v1872 = vadd.f32 0.0, %v1871
    %v1873 = vpop.f32.mrf.mxu0
    %1874 = vdwg.mxu0
    %1875 = vst.msk [vmem:[#allocation2 + $0x8] sm:$0xff] %vm233, %v1872
    %1876 = vrot.lane.b32.xlu0 %v1373, 112
    %v1877 = vpop.permute.xlu0 %1876
    %1878 = vrot.lane.b32.xlu0 %v1373, 80
    %v1879 = vpop.permute.xlu0 %1878
    %v1880 = vsel %vm233, %v1877, 0
    %v1882 = vsel %vm233, %v1879, 0
    %1884 = vmatprep.subr.mxu0 0.0
    %1885 = vmatpush1.xpose.msra.mxu0 0.0
    %1886 = vmatprep.subr.mxu0 0.0
    %1887 = vmatpush1.xpose.msra.mxu0 0.0
    %1888 = vmatprep.subr.mxu0 0.0
    %1889 = vmatpush1.xpose.msra.mxu0 0.0
    %1890 = vmatprep.subr.mxu0 0.0
    %1891 = vmatpush1.xpose.msra.mxu0 0.0
    %1892 = vmatprep.subr.mxu0 0.0
    %1893 = vmatpush1.xpose.msra.mxu0 0.0
    %1894 = vmatprep.subr.mxu0 0.0
    %1895 = vmatpush1.xpose.msra.mxu0 0.0
    %1896 = vmatprep.subr.mxu0 0.0
    %1897 = vmatpush1.xpose.msra.mxu0 0.0
    %1898 = vmatprep.subr.mxu0 0.0
    %1899 = vmatpush1.xpose.msra.mxu0 0.0
    %1900 = vmatprep.subr.mxu0 0.0
    %1901 = vmatpush1.xpose.msra.mxu0 0.0
    %1902 = vmatprep.subr.mxu0 0.0
    %1903 = vmatpush1.xpose.msra.mxu0 0.0
    %1904 = vmatprep.subr.mxu0 0.0
    %1905 = vmatpush1.xpose.msra.mxu0 0.0
    %1906 = vmatprep.subr.mxu0 0.0
    %1907 = vmatpush1.xpose.msra.mxu0 0.0
    %1908 = vmatprep.subr.mxu0 0.0
    %1909 = vmatpush1.xpose.msra.mxu0 0.0
    %1910 = vmatprep.subr.mxu0 0.0
    %1911 = vmatpush1.xpose.msra.mxu0 0.0
    %1912 = vmatprep.subr.mxu0 0.0
    %1913 = vmatpush1.xpose.msra.mxu0 0.0
    %1914 = vmatprep.subr.mxu0 0.0
    %1915 = vmatpush1.xpose.msra.mxu0 %v1882
    %1916 = vmatprep.subr.mxu0 0.0
    %1917 = vmatpush2.xpose.msra.mxu0 0.0
    %1918 = vmatprep.subr.mxu0 0.0
    %1919 = vmatpush2.xpose.msra.mxu0 0.0
    %1920 = vmatprep.subr.mxu0 0.0
    %1921 = vmatpush2.xpose.msra.mxu0 0.0
    %1922 = vmatprep.subr.mxu0 0.0
    %1923 = vmatpush2.xpose.msra.mxu0 0.0
    %1924 = vmatprep.subr.mxu0 0.0
    %1925 = vmatpush2.xpose.msra.mxu0 0.0
    %1926 = vmatprep.subr.mxu0 0.0
    %1927 = vmatpush2.xpose.msra.mxu0 0.0
    %1928 = vmatprep.subr.mxu0 0.0
    %1929 = vmatpush2.xpose.msra.mxu0 0.0
    %1930 = vmatprep.subr.mxu0 0.0
    %1931 = vmatpush2.xpose.msra.mxu0 0.0
    %1932 = vmatprep.subr.mxu0 0.0
    %1933 = vmatpush2.xpose.msra.mxu0 0.0
    %1934 = vmatprep.subr.mxu0 0.0
    %1935 = vmatpush2.xpose.msra.mxu0 0.0
    %1936 = vmatprep.subr.mxu0 0.0
    %1937 = vmatpush2.xpose.msra.mxu0 0.0
    %1938 = vmatprep.subr.mxu0 0.0
    %1939 = vmatpush2.xpose.msra.mxu0 0.0
    %1940 = vmatprep.subr.mxu0 0.0
    %1941 = vmatpush2.xpose.msra.mxu0 0.0
    %1942 = vmatprep.subr.mxu0 0.0
    %1943 = vmatpush2.xpose.msra.mxu0 0.0
    %1944 = vmatprep.subr.mxu0 0.0
    %1945 = vmatpush2.xpose.msra.mxu0 0.0
    %1946 = vmatprep.subr.mxu0 0.0
    %1947 = vmatpush2.xpose.msra.mxu0 0.0
    %1948 = vmatprep.mubr.f32.mxu0 0.0
    %1949 = vmatmul.mubr.f32.gmra.mxu0 %v1880
    %v1950 = vpop.f32.mrf.mxu0
    %v1951 = vadd.f32 0.0, %v1950
    %v1952 = vpop.f32.mrf.mxu0
    %1953 = vdwg.mxu0
    %v1954 = vsel %vm308, %v1951, -inf
    %1955 = vmax.xlane.f32.xlu0 %v1954
    %v1956 = vpop.xlane.xlu0 %1955
    %v1957 = vsub.f32 %v1951, %v1956
    %v1958 = vmul.f32 %v1957, 1.442695
    %v1959 = vpow.pop %v1958
    %v1960 = vsel %vm308, %v1959, 0.0
    %1961 = vadd.xlane.f32.xlu0 %v1960
    %v1962 = vpop.xlane.xlu0 %1961
    %v1963 = vrcp.pop %v1962
    %v1964 = vmul.f32 %v1959, %v1963
    %1965 = vrot.lane.b32.xlu0 %v1373, 48
    %v1966 = vpop.permute.xlu0 %1965
    %v1969 = vsel %vm308, %v1964, 0
    %1971 = vmatprep.subr.mxu0 0.0
    %1972 = vmatpush1.msra.mxu0 0.0
    %1973 = vmatprep.subr.mxu0 0.0
    %1974 = vmatpush1.msra.mxu0 0.0
    %1975 = vmatprep.subr.mxu0 0.0
    %1976 = vmatpush1.msra.mxu0 0.0
    %1977 = vmatprep.subr.mxu0 0.0
    %1978 = vmatpush1.msra.mxu0 0.0
    %1979 = vmatprep.subr.mxu0 0.0
    %1980 = vmatpush1.msra.mxu0 0.0
    %1981 = vmatprep.subr.mxu0 0.0
    %1982 = vmatpush1.msra.mxu0 0.0
    %1983 = vmatprep.subr.mxu0 0.0
    %1984 = vmatpush1.msra.mxu0 0.0
    %1985 = vmatprep.subr.mxu0 0.0
    %1986 = vmatpush1.msra.mxu0 0.0
    %1987 = vmatprep.subr.mxu0 0.0
    %1988 = vmatpush1.msra.mxu0 0.0
    %1989 = vmatprep.subr.mxu0 0.0
    %1990 = vmatpush1.msra.mxu0 0.0
    %1991 = vmatprep.subr.mxu0 0.0
    %1992 = vmatpush1.msra.mxu0 0.0
    %1993 = vmatprep.subr.mxu0 0.0
    %1994 = vmatpush1.msra.mxu0 0.0
    %1995 = vmatprep.subr.mxu0 0.0
    %1996 = vmatpush1.msra.mxu0 0.0
    %1997 = vmatprep.subr.mxu0 0.0
    %1998 = vmatpush1.msra.mxu0 0.0
    %1999 = vmatprep.subr.mxu0 0.0
    %2000 = vmatpush1.msra.mxu0 0.0
    %2001 = vmatprep.subr.mxu0 0.0
    %2002 = vmatpush1.msra.mxu0 %v1966
    %2003 = vmatprep.subr.mxu0 0.0
    %2004 = vmatpush2.msra.mxu0 0.0
    %2005 = vmatprep.subr.mxu0 0.0
    %2006 = vmatpush2.msra.mxu0 0.0
    %2007 = vmatprep.subr.mxu0 0.0
    %2008 = vmatpush2.msra.mxu0 0.0
    %2009 = vmatprep.subr.mxu0 0.0
    %2010 = vmatpush2.msra.mxu0 0.0
    %2011 = vmatprep.subr.mxu0 0.0
    %2012 = vmatpush2.msra.mxu0 0.0
    %2013 = vmatprep.subr.mxu0 0.0
    %2014 = vmatpush2.msra.mxu0 0.0
    %2015 = vmatprep.subr.mxu0 0.0
    %2016 = vmatpush2.msra.mxu0 0.0
    %2017 = vmatprep.subr.mxu0 0.0
    %2018 = vmatpush2.msra.mxu0 0.0
    %2019 = vmatprep.subr.mxu0 0.0
    %2020 = vmatpush2.msra.mxu0 0.0
    %2021 = vmatprep.subr.mxu0 0.0
    %2022 = vmatpush2.msra.mxu0 0.0
    %2023 = vmatprep.subr.mxu0 0.0
    %2024 = vmatpush2.msra.mxu0 0.0
    %2025 = vmatprep.subr.mxu0 0.0
    %2026 = vmatpush2.msra.mxu0 0.0
    %2027 = vmatprep.subr.mxu0 0.0
    %2028 = vmatpush2.msra.mxu0 0.0
    %2029 = vmatprep.subr.mxu0 0.0
    %2030 = vmatpush2.msra.mxu0 0.0
    %2031 = vmatprep.subr.mxu0 0.0
    %2032 = vmatpush2.msra.mxu0 0.0
    %2033 = vmatprep.subr.mxu0 0.0
    %2034 = vmatpush2.msra.mxu0 0.0
    %2035 = vmatprep.mubr.f32.mxu0 0.0
    %2036 = vmatmul.mubr.f32.gmra.mxu0 %v1969
    %v2037 = vpop.f32.mrf.mxu0
    %v2038 = vadd.f32 0.0, %v2037
    %v2039 = vpop.f32.mrf.mxu0
    %2040 = vdwg.mxu0
    %2042 = vrot.lane.b32.xlu0 %v2038, 16
    %v2043 = vpop.permute.xlu0 %2042
    %2045 = vst.msk [vmem:[#allocation2 + $0x8] sm:$0xff] %vm566, %v2043
    %v2046 = vld [vmem:[#allocation2] sm:$0xff]
    %v2047 = vld [vmem:[#allocation2 + $0x8] sm:$0xff]
    %v2049 = vlaneseq
    %v2050 = vshrl.u32 %v2049, 7
    %v2051 = vsub.s32 0, %v2050
    %v2052 = vrot.slane %v1270, %v2051
    %v2055 = vsel %vm148, %v2046, 0
    %v2058 = vsel %vm148, %v2047, 0
    %2060 = vmatprep.subr.mxu0 0.0
    %2061 = vmatpush1.msra.mxu0 0.0
    %2062 = vmatprep.subr.mxu0 0.0
    %2063 = vmatpush1.msra.mxu0 0.0
    %2064 = vmatprep.subr.mxu0 0.0
    %2065 = vmatpush1.msra.mxu0 0.0
    %2066 = vmatprep.subr.mxu0 0.0
    %2067 = vmatpush1.msra.mxu0 0.0
    %2068 = vmatprep.subr.mxu0 0.0
    %2069 = vmatpush1.msra.mxu0 0.0
    %2070 = vmatprep.subr.mxu0 0.0
    %2071 = vmatpush1.msra.mxu0 0.0
    %2072 = vmatprep.subr.mxu0 0.0
    %2073 = vmatpush1.msra.mxu0 0.0
    %2074 = vmatprep.subr.mxu0 0.0
    %2075 = vmatpush1.msra.mxu0 0.0
    %2076 = vmatprep.subr.mxu0 0.0
    %2077 = vmatpush1.msra.mxu0 0.0
    %2078 = vmatprep.subr.mxu0 0.0
    %2079 = vmatpush1.msra.mxu0 0.0
    %2080 = vmatprep.subr.mxu0 0.0
    %2081 = vmatpush1.msra.mxu0 0.0
    %2082 = vmatprep.subr.mxu0 0.0
    %2083 = vmatpush1.msra.mxu0 0.0
    %2084 = vmatprep.subr.mxu0 0.0
    %2085 = vmatpush1.msra.mxu0 %v1268
    %2086 = vmatprep.subr.mxu0 0.0
    %2087 = vmatpush1.msra.mxu0 %v1267
    %2088 = vmatprep.subr.mxu0 0.0
    %2089 = vmatpush1.msra.mxu0 %v1266
    %2090 = vmatprep.subr.mxu0 0.0
    %2091 = vmatpush1.msra.mxu0 %v1265
    %2092 = vmatprep.subr.mxu0 0.0
    %2093 = vmatpush2.msra.mxu0 0.0
    %2094 = vmatprep.subr.mxu0 0.0
    %2095 = vmatpush2.msra.mxu0 0.0
    %2096 = vmatprep.subr.mxu0 0.0
    %2097 = vmatpush2.msra.mxu0 0.0
    %2098 = vmatprep.subr.mxu0 0.0
    %2099 = vmatpush2.msra.mxu0 0.0
    %2100 = vmatprep.subr.mxu0 0.0
    %2101 = vmatpush2.msra.mxu0 0.0
    %2102 = vmatprep.subr.mxu0 0.0
    %2103 = vmatpush2.msra.mxu0 0.0
    %2104 = vmatprep.subr.mxu0 0.0
    %2105 = vmatpush2.msra.mxu0 0.0
    %2106 = vmatprep.subr.mxu0 0.0
    %2107 = vmatpush2.msra.mxu0 0.0
    %2108 = vmatprep.subr.mxu0 0.0
    %2109 = vmatpush2.msra.mxu0 0.0
    %2110 = vmatprep.subr.mxu0 0.0
    %2111 = vmatpush2.msra.mxu0 0.0
    %2112 = vmatprep.subr.mxu0 0.0
    %2113 = vmatpush2.msra.mxu0 0.0
    %2114 = vmatprep.subr.mxu0 0.0
    %2115 = vmatpush2.msra.mxu0 0.0
    %2116 = vmatprep.subr.mxu0 0.0
    %2117 = vmatpush2.msra.mxu0 0.0
    %2118 = vmatprep.subr.mxu0 0.0
    %2119 = vmatpush2.msra.mxu0 0.0
    %2120 = vmatprep.subr.mxu0 0.0
    %2121 = vmatpush2.msra.mxu0 0.0
    %2122 = vmatprep.subr.mxu0 0.0
    %2123 = vmatpush2.msra.mxu0 0.0
    %2124 = vmatprep.mubr.f32.mxu0 0.0
    %2125 = vmatmul.mubr.f32.gmra.mxu0 %v2055
    %v2126 = vpop.f32.mrf.mxu0
    %v2127 = vadd.f32 %v2052, %v2126
    %v2128 = vpop.f32.mrf.mxu0
    %2129 = vmatprep.mubr.f32.mxu0 0.0
    %2130 = vmatmul.mubr.f32.gmra.mxu0 %v2058
    %v2131 = vpop.f32.mrf.mxu0
    %v2132 = vadd.f32 %v2052, %v2131
    %v2133 = vpop.f32.mrf.mxu0
    %2134 = vdwg.mxu0
    %v2135 = vadd.f32 %v1255, %v2127
    %v2136 = vadd.f32 %v1256, %v2132
    %v2137 = vsel %vm148, %v2135, 0.0
    %2138 = vadd.xlane.f32.xlu0 %v2137
    %v2139 = vpop.xlane.xlu0 %2138
    %v2140 = vsel %vm148, %v2136, 0.0
    %2141 = vadd.xlane.f32.xlu0 %v2140
    %v2142 = vpop.xlane.xlu0 %2141
    %v2143 = vmul.f32 %v2139, %v1000
    %v2144 = vmul.f32 %v2142, %v1000
    %v2145 = vmul.f32 %v2135, %v2135
    %v2146 = vmul.f32 %v2136, %v2136
    %v2147 = vsel %vm148, %v2145, 0.0
    %2148 = vadd.xlane.f32.xlu0 %v2147
    %v2149 = vpop.xlane.xlu0 %2148
    %v2150 = vsel %vm148, %v2146, 0.0
    %2151 = vadd.xlane.f32.xlu0 %v2150
    %v2152 = vpop.xlane.xlu0 %2151
    %v2153 = vmul.f32 %v2149, %v1000
    %v2154 = vmul.f32 %v2152, %v1000
    %v2155 = vmul.f32 %v2143, %v2143
    %v2156 = vmul.f32 %v2144, %v2144
    %v2157 = vsub.f32 %v2153, %v2155
    %v2158 = vsub.f32 %v2154, %v2156
    %v2159 = vmax.f32 %v2157, 0.0
    %v2160 = vmax.f32 %v2158, 0.0
    %v2161 = vsub.f32 %v2135, %v2143
    %v2162 = vsub.f32 %v2136, %v2144
    %v2163 = vadd.f32 %v2159, 1e-05
    %v2164 = vadd.f32 %v2160, 1e-05
    %v2165 = vrsqrt.pop %v2163
    %v2166 = vrsqrt.pop %v2164
    %v2167 = vmul.f32 %v2161, %v2165
    %v2168 = vmul.f32 %v2162, %v2166
    %v2170 = vlaneseq
    %v2171 = vshrl.u32 %v2170, 7
    %v2172 = vsub.s32 0, %v2171
    %v2173 = vrot.slane %v1272, %v2172
    %v2175 = vmul.f32 %v2167, %v2173
    %v2176 = vmul.f32 %v2168, %v2173
    %v2178 = vlaneseq
    %v2179 = vshrl.u32 %v2178, 7
    %v2180 = vsub.s32 0, %v2179
    %v2181 = vrot.slane %v1274, %v2180
    %v2183 = vadd.f32 %v2175, %v2181
    %v2184 = vadd.f32 %v2176, %v2181
    %v2186 = vlaneseq
    %v2187 = vshrl.u32 %v2186, 7
    %v2188 = vsub.s32 0, %v2187
    %v2189 = vrot.slane %v1281, %v2188
    %v2192 = vsel %vm148, %v2183, 0
    %v2195 = vsel %vm148, %v2184, 0
    %2197 = vmatprep.subr.mxu0 0.0
    %2198 = vmatpush1.msra.mxu0 0.0
    %2199 = vmatprep.subr.mxu0 0.0
    %2200 = vmatpush1.msra.mxu0 0.0
    %2201 = vmatprep.subr.mxu0 0.0
    %2202 = vmatpush1.msra.mxu0 0.0
    %2203 = vmatprep.subr.mxu0 0.0
    %2204 = vmatpush1.msra.mxu0 0.0
    %2205 = vmatprep.subr.mxu0 0.0
    %2206 = vmatpush1.msra.mxu0 0.0
    %2207 = vmatprep.subr.mxu0 0.0
    %2208 = vmatpush1.msra.mxu0 0.0
    %2209 = vmatprep.subr.mxu0 0.0
    %2210 = vmatpush1.msra.mxu0 0.0
    %2211 = vmatprep.subr.mxu0 0.0
    %2212 = vmatpush1.msra.mxu0 0.0
    %2213 = vmatprep.subr.mxu0 0.0
    %2214 = vmatpush1.msra.mxu0 0.0
    %2215 = vmatprep.subr.mxu0 0.0
    %2216 = vmatpush1.msra.mxu0 0.0
    %2217 = vmatprep.subr.mxu0 0.0
    %2218 = vmatpush1.msra.mxu0 0.0
    %2219 = vmatprep.subr.mxu0 0.0
    %2220 = vmatpush1.msra.mxu0 0.0
    %2221 = vmatprep.subr.mxu0 0.0
    %2222 = vmatpush1.msra.mxu0 %v1279
    %2223 = vmatprep.subr.mxu0 0.0
    %2224 = vmatpush1.msra.mxu0 %v1278
    %2225 = vmatprep.subr.mxu0 0.0
    %2226 = vmatpush1.msra.mxu0 %v1277
    %2227 = vmatprep.subr.mxu0 0.0
    %2228 = vmatpush1.msra.mxu0 %v1276
    %2229 = vmatprep.subr.mxu0 0.0
    %2230 = vmatpush2.msra.mxu0 0.0
    %2231 = vmatprep.subr.mxu0 0.0
    %2232 = vmatpush2.msra.mxu0 0.0
    %2233 = vmatprep.subr.mxu0 0.0
    %2234 = vmatpush2.msra.mxu0 0.0
    %2235 = vmatprep.subr.mxu0 0.0
    %2236 = vmatpush2.msra.mxu0 0.0
    %2237 = vmatprep.subr.mxu0 0.0
    %2238 = vmatpush2.msra.mxu0 0.0
    %2239 = vmatprep.subr.mxu0 0.0
    %2240 = vmatpush2.msra.mxu0 0.0
    %2241 = vmatprep.subr.mxu0 0.0
    %2242 = vmatpush2.msra.mxu0 0.0
    %2243 = vmatprep.subr.mxu0 0.0
    %2244 = vmatpush2.msra.mxu0 0.0
    %2245 = vmatprep.subr.mxu0 0.0
    %2246 = vmatpush2.msra.mxu0 0.0
    %2247 = vmatprep.subr.mxu0 0.0
    %2248 = vmatpush2.msra.mxu0 0.0
    %2249 = vmatprep.subr.mxu0 0.0
    %2250 = vmatpush2.msra.mxu0 0.0
    %2251 = vmatprep.subr.mxu0 0.0
    %2252 = vmatpush2.msra.mxu0 0.0
    %2253 = vmatprep.subr.mxu0 0.0
    %2254 = vmatpush2.msra.mxu0 0.0
    %2255 = vmatprep.subr.mxu0 0.0
    %2256 = vmatpush2.msra.mxu0 0.0
    %2257 = vmatprep.subr.mxu0 0.0
    %2258 = vmatpush2.msra.mxu0 0.0
    %2259 = vmatprep.subr.mxu0 0.0
    %2260 = vmatpush2.msra.mxu0 0.0
    %2261 = vmatprep.mubr.f32.mxu0 0.0
    %2262 = vmatmul.mubr.f32.gmra.mxu0 %v2192
    %v2263 = vpop.f32.mrf.mxu0
    %v2264 = vadd.f32 %v2189, %v2263
    %v2265 = vpop.f32.mrf.mxu0
    %2266 = vmatprep.mubr.f32.mxu0 0.0
    %2267 = vmatmul.mubr.f32.gmra.mxu0 %v2195
    %v2268 = vpop.f32.mrf.mxu0
    %v2269 = vadd.f32 %v2189, %v2268
    %v2270 = vpop.f32.mrf.mxu0
    %2271 = vdwg.mxu0
    %v2272 = vmax.f32 %v2264, 0.0
    %v2273 = vmax.f32 %v2269, 0.0
    %v2275 = vlaneseq
    %v2276 = vshrl.u32 %v2275, 7
    %v2277 = vsub.s32 0, %v2276
    %v2278 = vrot.slane %v1288, %v2277
    %v2281 = vsel %vm148, %v2272, 0
    %v2284 = vsel %vm148, %v2273, 0
    %2286 = vmatprep.subr.mxu0 0.0
    %2287 = vmatpush1.msra.mxu0 0.0
    %2288 = vmatprep.subr.mxu0 0.0
    %2289 = vmatpush1.msra.mxu0 0.0
    %2290 = vmatprep.subr.mxu0 0.0
    %2291 = vmatpush1.msra.mxu0 0.0
    %2292 = vmatprep.subr.mxu0 0.0
    %2293 = vmatpush1.msra.mxu0 0.0
    %2294 = vmatprep.subr.mxu0 0.0
    %2295 = vmatpush1.msra.mxu0 0.0
    %2296 = vmatprep.subr.mxu0 0.0
    %2297 = vmatpush1.msra.mxu0 0.0
    %2298 = vmatprep.subr.mxu0 0.0
    %2299 = vmatpush1.msra.mxu0 0.0
    %2300 = vmatprep.subr.mxu0 0.0
    %2301 = vmatpush1.msra.mxu0 0.0
    %2302 = vmatprep.subr.mxu0 0.0
    %2303 = vmatpush1.msra.mxu0 0.0
    %2304 = vmatprep.subr.mxu0 0.0
    %2305 = vmatpush1.msra.mxu0 0.0
    %2306 = vmatprep.subr.mxu0 0.0
    %2307 = vmatpush1.msra.mxu0 0.0
    %2308 = vmatprep.subr.mxu0 0.0
    %2309 = vmatpush1.msra.mxu0 0.0
    %2310 = vmatprep.subr.mxu0 0.0
    %2311 = vmatpush1.msra.mxu0 %v1286
    %2312 = vmatprep.subr.mxu0 0.0
    %2313 = vmatpush1.msra.mxu0 %v1285
    %2314 = vmatprep.subr.mxu0 0.0
    %2315 = vmatpush1.msra.mxu0 %v1284
    %2316 = vmatprep.subr.mxu0 0.0
    %2317 = vmatpush1.msra.mxu0 %v1283
    %2318 = vmatprep.subr.mxu0 0.0
    %2319 = vmatpush2.msra.mxu0 0.0
    %2320 = vmatprep.subr.mxu0 0.0
    %2321 = vmatpush2.msra.mxu0 0.0
    %2322 = vmatprep.subr.mxu0 0.0
    %2323 = vmatpush2.msra.mxu0 0.0
    %2324 = vmatprep.subr.mxu0 0.0
    %2325 = vmatpush2.msra.mxu0 0.0
    %2326 = vmatprep.subr.mxu0 0.0
    %2327 = vmatpush2.msra.mxu0 0.0
    %2328 = vmatprep.subr.mxu0 0.0
    %2329 = vmatpush2.msra.mxu0 0.0
    %2330 = vmatprep.subr.mxu0 0.0
    %2331 = vmatpush2.msra.mxu0 0.0
    %2332 = vmatprep.subr.mxu0 0.0
    %2333 = vmatpush2.msra.mxu0 0.0
    %2334 = vmatprep.subr.mxu0 0.0
    %2335 = vmatpush2.msra.mxu0 0.0
    %2336 = vmatprep.subr.mxu0 0.0
    %2337 = vmatpush2.msra.mxu0 0.0
    %2338 = vmatprep.subr.mxu0 0.0
    %2339 = vmatpush2.msra.mxu0 0.0
    %2340 = vmatprep.subr.mxu0 0.0
    %2341 = vmatpush2.msra.mxu0 0.0
    %2342 = vmatprep.subr.mxu0 0.0
    %2343 = vmatpush2.msra.mxu0 0.0
    %2344 = vmatprep.subr.mxu0 0.0
    %2345 = vmatpush2.msra.mxu0 0.0
    %2346 = vmatprep.subr.mxu0 0.0
    %2347 = vmatpush2.msra.mxu0 0.0
    %2348 = vmatprep.subr.mxu0 0.0
    %2349 = vmatpush2.msra.mxu0 0.0
    %2350 = vmatprep.mubr.f32.mxu0 0.0
    %2351 = vmatmul.mubr.f32.gmra.mxu0 %v2281
    %v2352 = vpop.f32.mrf.mxu0
    %v2353 = vadd.f32 %v2278, %v2352
    %v2354 = vpop.f32.mrf.mxu0
    %2355 = vmatprep.mubr.f32.mxu0 0.0
    %2356 = vmatmul.mubr.f32.gmra.mxu0 %v2284
    %v2357 = vpop.f32.mrf.mxu0
    %v2358 = vadd.f32 %v2278, %v2357
    %v2359 = vpop.f32.mrf.mxu0
    %2360 = vdwg.mxu0
    %v2361 = vadd.f32 %v2183, %v2353
    %v2362 = vadd.f32 %v2184, %v2358
    %v2363 = vsel %vm148, %v2361, 0.0
    %2364 = vadd.xlane.f32.xlu0 %v2363
    %v2365 = vpop.xlane.xlu0 %2364
    %v2366 = vsel %vm148, %v2362, 0.0
    %2367 = vadd.xlane.f32.xlu0 %v2366
    %v2368 = vpop.xlane.xlu0 %2367
    %v2369 = vmul.f32 %v2365, %v1000
    %v2370 = vmul.f32 %v2368, %v1000
    %v2371 = vmul.f32 %v2361, %v2361
    %v2372 = vmul.f32 %v2362, %v2362
    %v2373 = vsel %vm148, %v2371, 0.0
    %2374 = vadd.xlane.f32.xlu0 %v2373
    %v2375 = vpop.xlane.xlu0 %2374
    %v2376 = vsel %vm148, %v2372, 0.0
    %2377 = vadd.xlane.f32.xlu0 %v2376
    %v2378 = vpop.xlane.xlu0 %2377
    %v2379 = vmul.f32 %v2375, %v1000
    %v2380 = vmul.f32 %v2378, %v1000
    %v2381 = vmul.f32 %v2369, %v2369
    %v2382 = vmul.f32 %v2370, %v2370
    %v2383 = vsub.f32 %v2379, %v2381
    %v2384 = vsub.f32 %v2380, %v2382
    %v2385 = vmax.f32 %v2383, 0.0
    %v2386 = vmax.f32 %v2384, 0.0
    %v2387 = vsub.f32 %v2361, %v2369
    %v2388 = vsub.f32 %v2362, %v2370
    %v2389 = vadd.f32 %v2385, 1e-05
    %v2390 = vadd.f32 %v2386, 1e-05
    %v2391 = vrsqrt.pop %v2389
    %v2392 = vrsqrt.pop %v2390
    %v2393 = vmul.f32 %v2387, %v2391
    %v2394 = vmul.f32 %v2388, %v2392
    %v2395 = vmul.f32 %v2393, %v2173
    %v2396 = vmul.f32 %v2394, %v2173
    %v2397 = vadd.f32 %v2395, %v2181
    %v2398 = vadd.f32 %v2396, %v2181
    %v2399 = vld [vmem:[#allocation12] sm:$0xff]
    %v2400 = vld [vmem:[#allocation12 + $0x8] sm:$0xff]
    %v2401 = vmul.f32 %v2397, %v2399
    %v2402 = vmul.f32 %v2398, %v2400
    %v2403 = vsel %vm148, %v2401, 0.0
    %2404 = vadd.xlane.f32.xlu0 %v2403
    %v2405 = vpop.xlane.xlu0 %2404
    %v2406 = vsel %vm148, %v2402, 0.0
    %2407 = vadd.xlane.f32.xlu0 %v2406
    %v2408 = vpop.xlane.xlu0 %2407
    %v2409 = vld [vmem:[%s12] sm:$0xff]
    %v2410 = vld [vmem:[%s12 + $0x8] sm:$0xff]
    %v2411 = vmul.f32 %v2405, %v2409
    %v2412 = vmul.f32 %v2408, %v2410
    %vm2413 = vcmask 15360
    %v2414 = vsel %vm2413, %v2411, 0.0
    %v2415 = vsel %vm2413, %v2412, 0.0
    %v2416 = vadd.f32 %v2414, %v2415
    %v2417 = vrot.slane %v2416, 4
    %v2418 = vadd.f32 %v2416, %v2417
    %v2419 = vrot.slane %v2418, 2
    %v2420 = vadd.f32 %v2418, %v2419
    %v2421 = vrot.slane %v2420, 1
    %v2422 = vadd.f32 %v2420, %v2421
    %v2423 = vld [vmem:[#allocation3] sm:$0x1]
    %2425 = vset.pattern.permute.xlu0 0
    %2426 = vperm.xlu0 %2425, %v2423
    %v2427 = vpop.permute.xlu0 %2426
    %v2429 = vlaneseq
    %v2430 = vshrl.u32 %v2429, 7
    %v2431 = vsub.s32 0, %v2430
    %v2432 = vrot.slane %v2427, %v2431
    %v2433 = vadd.f32 %v2422, %v2432
    %vm2434 = vcmask 8192
    %2435 = vst.msk [vmem:[#allocation13] sm:$0x1] %vm2434, %v2433
    // Predicated region
    $region78: #{value_encoder_forward.1} parent=1 // pred_check
      _
    $region79: #{value_encoder_forward.1} parent=1 // pred_check_branch
      %2437 = sbr.rel (0) target = $region81
    $region80: #{value_encoder_forward.1} parent=1 // pred_region
      %s2439 = ssub.s32 16, 16
      %2440 = vsyncadd [#allocation6], %s2439
      %s2442 = sshll.u32 [#allocation13], 4
      %s2443 = int_to_ptr.vmem [resolvable:$true] %s2442
      %2445 = dma.vmem_to_hbm [thread:$0]  %s2443, 16, %s14, [#allocation6]
    $region81: #{value_encoder_forward.1} parent=1 // pred_fallthru
      _
    // Predicated region
    $region82: #{value_encoder_forward.1} parent=1 // pred_check
      _
    $region83: #{value_encoder_forward.1} parent=1 // pred_check_branch
      %2447 = sbr.rel (0) target = $region85
    $region84: #{value_encoder_forward.1} parent=1 // pred_region
      %2448 = dma.done [#allocation6], 16
    $region85: #{value_encoder_forward.1} parent=1 // pred_fallthru
      _
    %2449 = vsyncpa [#allocation5], 1
    %2450 = vsyncpa [#allocation8], 1
    %2451 = vsyncpa [#allocation11], 1
    %2452 = vsyncpa [#allocation6], 1

</llo_original>
